<compile_context>
chip_gen: v7x
topology: tpu7x:2x2x1
jax: 0.10.0
libtpu: 0.0.40
codegen_flags: <defaults>
</compile_context>

<pallas_src>
import jax
import jax.numpy as jnp
from jax.experimental import pallas as pl
from jax.experimental.pallas import tpu as pltpu


# ---------------------------------------------------------------------------
# Fused kernel: whole network for one sample per grid step.
# ---------------------------------------------------------------------------
def _hand_classify_kernel(x_ref, w1_ref, b1_ref, w2_ref, b2_ref,
                          sel1_ref, sel2_ref, fc1w_ref, fc1b_ref,
                          fc2w_ref, fc2b_ref, o_ref,
                          c1_scr, p1_scr, c2_scr, p2_scr):
    f32 = jnp.float32
    L1 = 726   # 25*28 + 26 : conv1 "overscan" row-major output length
    L2 = 127   # 9*13 + 10  : conv2 "overscan" row-major output length

    # ---- conv1 (Cin=1, 3x3) + bias + ReLU: shifted-window accumulation ------
    acc1 = jnp.zeros((10, L1), f32)
    for t in range(9):
        i, j = divmod(t, 3)
        xs = x_ref[0, :, pl.ds(i * 28 + j, L1)]        # (1, L1)
        acc1 = acc1 + w1_ref[t] * xs                   # (10,1)*(1,L1) -> (10,L1)
    c1_scr[...] = jnp.maximum(acc1 + b1_ref[...], 0.0)

    # ---- maxpool 2x2 (26x26 -> 13x13), fused --------------------------------
    m1 = jnp.maximum(
        jnp.maximum(c1_scr[:, pl.ds(0, 697)], c1_scr[:, pl.ds(1, 697)]),
        jnp.maximum(c1_scr[:, pl.ds(28, 697)], c1_scr[:, pl.ds(29, 697)]))
    p1_scr[...] = jnp.dot(m1, sel1_ref[...],
                          preferred_element_type=f32)          # (10, 169)

    # ---- conv2 (10->10, 4x4) + bias + ReLU: 16 taps of (10,10)@(10,127) -----
    acc2 = jnp.zeros((10, L2), f32)
    for t in range(16):
        i, j = divmod(t, 4)
        acc2 = acc2 + jnp.dot(w2_ref[t],
                              p1_scr[:, pl.ds(i * 13 + j, L2)],
                              preferred_element_type=f32)
    c2_scr[...] = jnp.maximum(acc2 + b2_ref[...], 0.0)

    # ---- maxpool 2x2 (10x10 -> 5x5), fused ----------------------------------
    m2 = jnp.maximum(
        jnp.maximum(c2_scr[:, pl.ds(0, 113)], c2_scr[:, pl.ds(1, 113)]),
        jnp.maximum(c2_scr[:, pl.ds(13, 113)], c2_scr[:, pl.ds(14, 113)]))
    p2_scr[...] = jnp.dot(m2, sel2_ref[...],
                          preferred_element_type=f32)          # (10, 25)

    # ---- fc1 (250->50) + ReLU: channel-major flatten folded into 10 matmuls -
    h = fc1b_ref[...]                                          # (1, 50)
    for co in range(10):
        row = p2_scr[pl.ds(co, 1), :]                          # (1, 25)
        h = h + jnp.dot(row, fc1w_ref[co], preferred_element_type=f32)
    h = jnp.maximum(h, 0.0)

    # ---- fc2 (50->10) + log_softmax -----------------------------------------
    logits = jnp.dot(h, fc2w_ref[...],
                     preferred_element_type=f32) + fc2b_ref[...]   # (1, 10)
    mx = jnp.max(logits, axis=1, keepdims=True)
    sh = logits - mx
    lse = jnp.log(jnp.sum(jnp.exp(sh), axis=1, keepdims=True))
    o_ref[0] = sh - lse


# ---------------------------------------------------------------------------
# One-time parameter preparation (hoisted out of the forward pass).
# ---------------------------------------------------------------------------
def _pool_select(in_w, out_hw, n_rows):
    """0/1 matrix S with S[2*yo*in_w + 2*xo, yo*out_hw + xo] = 1."""
    yo = jnp.arange(out_hw)
    rows = (2 * yo[:, None] * in_w + 2 * yo[None, :]).reshape(-1)
    cols = jnp.arange(out_hw * out_hw)
    sel = jnp.zeros((n_rows, out_hw * out_hw), jnp.float32)
    return sel.at[rows, cols].set(1.0)


def prepare_params(params):
    """Rearrange torch-layout params into kernel-ready VMEM-resident constants."""
    w1 = params["conv1_w"].astype(jnp.float32)        # (10, 1, 3, 3)
    w2 = params["conv2_w"].astype(jnp.float32)        # (10, 10, 4, 4)
    return {
        "w1": w1.reshape(10, 9).T.reshape(9, 10, 1),             # [tap, co, 1]
        "b1": params["conv1_b"].reshape(10, 1).astype(jnp.float32),
        "w2": w2.transpose(2, 3, 0, 1).reshape(16, 10, 10),      # [tap, do, ci]
        "b2": params["conv2_b"].reshape(10, 1).astype(jnp.float32),
        "sel1": _pool_select(28, 13, 697),                       # (697, 169)
        "sel2": _pool_select(13, 5, 113),                        # (113, 25)
        "fc1w": params["fc1_w"].T.reshape(10, 25, 50).astype(jnp.float32),
        "fc1b": params["fc1_b"].reshape(1, 50).astype(jnp.float32),
        "fc2w": params["fc2_w"].T.astype(jnp.float32),           # (50, 10)
        "fc2b": params["fc2_b"].reshape(1, 10).astype(jnp.float32),
    }


# ---------------------------------------------------------------------------
# Forward pass: a single fused pallas_call.
# ---------------------------------------------------------------------------
def hand_classify_forward(prep, x):
    """x: (B, 1, 28, 28) float32 -> (B, 10) log-probabilities."""
    B = x.shape[0]
    x2 = x.astype(jnp.float32).reshape(B, 1, 28 * 28)

    weights = (prep["w1"], prep["b1"], prep["w2"], prep["b2"],
               prep["sel1"], prep["sel2"],
               prep["fc1w"], prep["fc1b"], prep["fc2w"], prep["fc2b"])

    def _resident_spec(arr):
        zeros = (0,) * arr.ndim
        return pl.BlockSpec(arr.shape, lambda b: zeros)   # fetched once, stays in VMEM

    out = pl.pallas_call(
        _hand_classify_kernel,
        out_shape=jax.ShapeDtypeStruct((B, 1, 10), jnp.float32),
        grid_spec=pltpu.PrefetchScalarGridSpec(
            num_scalar_prefetch=0,
            grid=(B,),
            in_specs=[pl.BlockSpec((1, 1, 784), lambda b: (b, 0, 0))]
                     + [_resident_spec(w) for w in weights],
            out_specs=pl.BlockSpec((1, 1, 10), lambda b: (b, 0, 0)),
            scratch_shapes=[
                pltpu.VMEM((10, 726), jnp.float32),   # conv1 raw output
                pltpu.VMEM((10, 169), jnp.float32),   # pooled1 (13*13)
                pltpu.VMEM((10, 127), jnp.float32),   # conv2 raw output
                pltpu.VMEM((10, 25), jnp.float32),    # pooled2 (5*5)
            ]),
        compiler_params=pltpu.CompilerParams(
            dimension_semantics=("parallel",)),
    )(x2, *weights)
    return out.reshape(B, 10)


# ---------------------------------------------------------------------------
# Pure-JAX reference (for correctness check) + init.
# ---------------------------------------------------------------------------
def _reference_forward(params, x):
    hp = jax.lax.Precision.HIGHEST

    def conv(y, w, b):
        y = jax.lax.conv_general_dilated(
            y, w, window_strides=(1, 1), padding="VALID",
            dimension_numbers=("NCHW", "OIHW", "NCHW"), precision=hp)
        return jax.nn.relu(y + b[None, :, None, None])

    def pool(y):
        B, C, H, W = y.shape
        return y.reshape(B, C, H // 2, 2, W // 2, 2).max(axis=(3, 5))

    t = pool(conv(x, params["conv1_w"], params["conv1_b"]))
    t = pool(conv(t, params["conv2_w"], params["conv2_b"]))
    f = t.reshape(t.shape[0], -1)
    h = jax.nn.relu(jnp.dot(f, params["fc1_w"].T, precision=hp) + params["fc1_b"])
    logits = jnp.dot(h, params["fc2_w"].T, precision=hp) + params["fc2_b"]
    return jax.nn.log_softmax(logits, axis=-1)


def init_params(key):
    """PyTorch-default-style uniform init (bound = 1/sqrt(fan_in))."""
    ks = jax.random.split(key, 8)

    def u(k, shape, fan_in):
        bound = 1.0 / jnp.sqrt(jnp.float32(fan_in))
        return jax.random.uniform(k, shape, jnp.float32, -bound, bound)

    return {
        "conv1_w": u(ks[0], (10, 1, 3, 3), 1 * 3 * 3),
        "conv1_b": u(ks[1], (10,), 1 * 3 * 3),
        "conv2_w": u(ks[2], (10, 10, 4, 4), 10 * 4 * 4),
        "conv2_b": u(ks[3], (10,), 10 * 4 * 4),
        "fc1_w": u(ks[4], (50, 250), 250),      # torch Linear layout (out, in)
        "fc1_b": u(ks[5], (50,), 250),
        "fc2_w": u(ks[6], (10, 50), 50),
        "fc2_b": u(ks[7], (10,), 50),
    }


if __name__ == "__main__":
    key = jax.random.PRNGKey(0)
    pkey, xkey = jax.random.split(key)
    params = init_params(pkey)
    prep = prepare_params(params)

    # Flatten -> 250 = 10*5*5 implies a 28x28 single-channel input.
    x = jax.random.normal(xkey, (2, 1, 28, 28), jnp.float32)

    fwd = jax.jit(hand_classify_forward)
    out = jax.block_until_ready(fwd(prep, x))
    assert out.shape == (2, 10)

    # Sanity: rows of exp(log_softmax) sum to 1.
    assert bool(jnp.allclose(jnp.exp(out).sum(axis=1), 1.0, atol=1e-4))

    # Numerical check against a pure-JAX reference.
    ref = jax.block_until_ready(_reference_forward(params, x))
    assert bool(jnp.allclose(out, ref, atol=5e-2, rtol=5e-2)), (
        "max abs diff = %f" % float(jnp.max(jnp.abs(out - ref))))

    print("KERNEL_OK")
</pallas_src>

<mosaic_0001>
module attributes {stable_mosaic.version = 11 : i64} {
  func.func @_hand_classify_kernel(%arg0: i32, %arg1: memref<1x1x784xf32, #tpu.memory_space<vmem>>, %arg2: memref<9x10x1xf32, #tpu.memory_space<vmem>>, %arg3: memref<10x1xf32, #tpu.memory_space<vmem>>, %arg4: memref<16x10x10xf32, #tpu.memory_space<vmem>>, %arg5: memref<10x1xf32, #tpu.memory_space<vmem>>, %arg6: memref<697x169xf32, #tpu.memory_space<vmem>>, %arg7: memref<113x25xf32, #tpu.memory_space<vmem>>, %arg8: memref<10x25x50xf32, #tpu.memory_space<vmem>>, %arg9: memref<1x50xf32, #tpu.memory_space<vmem>>, %arg10: memref<50x10xf32, #tpu.memory_space<vmem>>, %arg11: memref<1x10xf32, #tpu.memory_space<vmem>>, %arg12: memref<1x1x10xf32, #tpu.memory_space<vmem>>, %arg13: memref<10x726xf32, #tpu.memory_space<vmem>>, %arg14: memref<10x169xf32, #tpu.memory_space<vmem>>, %arg15: memref<10x127xf32, #tpu.memory_space<vmem>>, %arg16: memref<10x25xf32, #tpu.memory_space<vmem>>) attributes {dimension_semantics = [#tpu.dimension_semantics<parallel>], iteration_bounds = array<i64: 2>, scalar_prefetch = 0 : i64, scratch_operands = 4 : i64, tpu.core_type = #tpu.core_type<tc>, window_params = [{transform_indices = @transform_0, window_bounds = array<i64: 1, 1, 784>}, {pipeline_mode = #tpu.pipeline_mode<synchronous>, transform_indices = @transform_1, window_bounds = array<i64: 9, 10, 1>}, {pipeline_mode = #tpu.pipeline_mode<synchronous>, transform_indices = @transform_2, window_bounds = array<i64: 10, 1>}, {pipeline_mode = #tpu.pipeline_mode<synchronous>, transform_indices = @transform_3, window_bounds = array<i64: 16, 10, 10>}, {pipeline_mode = #tpu.pipeline_mode<synchronous>, transform_indices = @transform_4, window_bounds = array<i64: 10, 1>}, {pipeline_mode = #tpu.pipeline_mode<synchronous>, transform_indices = @transform_5, window_bounds = array<i64: 697, 169>}, {pipeline_mode = #tpu.pipeline_mode<synchronous>, transform_indices = @transform_6, window_bounds = array<i64: 113, 25>}, {pipeline_mode = #tpu.pipeline_mode<synchronous>, transform_indices = @transform_7, window_bounds = array<i64: 10, 25, 50>}, {pipeline_mode = #tpu.pipeline_mode<synchronous>, transform_indices = @transform_8, window_bounds = array<i64: 1, 50>}, {pipeline_mode = #tpu.pipeline_mode<synchronous>, transform_indices = @transform_9, window_bounds = array<i64: 50, 10>}, {pipeline_mode = #tpu.pipeline_mode<synchronous>, transform_indices = @transform_10, window_bounds = array<i64: 1, 10>}, {transform_indices = @transform_11, window_bounds = array<i64: 1, 1, 10>}]} {
    %cst = arith.constant 0.000000e+00 : f32
    %0 = vector.broadcast %cst : f32 to vector<10x726xf32>
    %c0 = arith.constant 0 : index
    %c0_0 = arith.constant 0 : index
    %c0_1 = arith.constant 0 : index
    %1 = vector.load %arg1[%c0, %c0_0, %c0_1] : memref<1x1x784xf32, #tpu.memory_space<vmem>>, vector<1x1x726xf32>
    %2 = vector.shape_cast %1 : vector<1x1x726xf32> to vector<1x726xf32>
    %c0_2 = arith.constant 0 : index
    %c0_3 = arith.constant 0 : index
    %c0_4 = arith.constant 0 : index
    %3 = vector.load %arg2[%c0_2, %c0_3, %c0_4] : memref<9x10x1xf32, #tpu.memory_space<vmem>>, vector<1x10x1xf32>
    %4 = vector.shape_cast %3 : vector<1x10x1xf32> to vector<10x1xf32>
    %5 = vector.broadcast %4 : vector<10x1xf32> to vector<10x726xf32>
    %6 = vector.broadcast %2 : vector<1x726xf32> to vector<10x726xf32>
    %7 = arith.mulf %5, %6 : vector<10x726xf32>
    %8 = arith.addf %0, %7 : vector<10x726xf32>
    %c0_5 = arith.constant 0 : index
    %c0_6 = arith.constant 0 : index
    %c1 = arith.constant 1 : index
    %9 = vector.load %arg1[%c0_5, %c0_6, %c1] : memref<1x1x784xf32, #tpu.memory_space<vmem>>, vector<1x1x726xf32>
    %10 = vector.shape_cast %9 : vector<1x1x726xf32> to vector<1x726xf32>
    %c1_7 = arith.constant 1 : index
    %c0_8 = arith.constant 0 : index
    %c0_9 = arith.constant 0 : index
    %11 = vector.load %arg2[%c1_7, %c0_8, %c0_9] : memref<9x10x1xf32, #tpu.memory_space<vmem>>, vector<1x10x1xf32>
    %12 = vector.shape_cast %11 : vector<1x10x1xf32> to vector<10x1xf32>
    %13 = vector.broadcast %12 : vector<10x1xf32> to vector<10x726xf32>
    %14 = vector.broadcast %10 : vector<1x726xf32> to vector<10x726xf32>
    %15 = arith.mulf %13, %14 : vector<10x726xf32>
    %16 = arith.addf %8, %15 : vector<10x726xf32>
    %c0_10 = arith.constant 0 : index
    %c0_11 = arith.constant 0 : index
    %c2 = arith.constant 2 : index
    %17 = vector.load %arg1[%c0_10, %c0_11, %c2] : memref<1x1x784xf32, #tpu.memory_space<vmem>>, vector<1x1x726xf32>
    %18 = vector.shape_cast %17 : vector<1x1x726xf32> to vector<1x726xf32>
    %c2_12 = arith.constant 2 : index
    %c0_13 = arith.constant 0 : index
    %c0_14 = arith.constant 0 : index
    %19 = vector.load %arg2[%c2_12, %c0_13, %c0_14] : memref<9x10x1xf32, #tpu.memory_space<vmem>>, vector<1x10x1xf32>
    %20 = vector.shape_cast %19 : vector<1x10x1xf32> to vector<10x1xf32>
    %21 = vector.broadcast %20 : vector<10x1xf32> to vector<10x726xf32>
    %22 = vector.broadcast %18 : vector<1x726xf32> to vector<10x726xf32>
    %23 = arith.mulf %21, %22 : vector<10x726xf32>
    %24 = arith.addf %16, %23 : vector<10x726xf32>
    %c0_15 = arith.constant 0 : index
    %c0_16 = arith.constant 0 : index
    %c28 = arith.constant 28 : index
    %25 = vector.load %arg1[%c0_15, %c0_16, %c28] : memref<1x1x784xf32, #tpu.memory_space<vmem>>, vector<1x1x726xf32>
    %26 = vector.shape_cast %25 : vector<1x1x726xf32> to vector<1x726xf32>
    %c3 = arith.constant 3 : index
    %c0_17 = arith.constant 0 : index
    %c0_18 = arith.constant 0 : index
    %27 = vector.load %arg2[%c3, %c0_17, %c0_18] : memref<9x10x1xf32, #tpu.memory_space<vmem>>, vector<1x10x1xf32>
    %28 = vector.shape_cast %27 : vector<1x10x1xf32> to vector<10x1xf32>
    %29 = vector.broadcast %28 : vector<10x1xf32> to vector<10x726xf32>
    %30 = vector.broadcast %26 : vector<1x726xf32> to vector<10x726xf32>
    %31 = arith.mulf %29, %30 : vector<10x726xf32>
    %32 = arith.addf %24, %31 : vector<10x726xf32>
    %c0_19 = arith.constant 0 : index
    %c0_20 = arith.constant 0 : index
    %c29 = arith.constant 29 : index
    %33 = vector.load %arg1[%c0_19, %c0_20, %c29] : memref<1x1x784xf32, #tpu.memory_space<vmem>>, vector<1x1x726xf32>
    %34 = vector.shape_cast %33 : vector<1x1x726xf32> to vector<1x726xf32>
    %c4 = arith.constant 4 : index
    %c0_21 = arith.constant 0 : index
    %c0_22 = arith.constant 0 : index
    %35 = vector.load %arg2[%c4, %c0_21, %c0_22] : memref<9x10x1xf32, #tpu.memory_space<vmem>>, vector<1x10x1xf32>
    %36 = vector.shape_cast %35 : vector<1x10x1xf32> to vector<10x1xf32>
    %37 = vector.broadcast %36 : vector<10x1xf32> to vector<10x726xf32>
    %38 = vector.broadcast %34 : vector<1x726xf32> to vector<10x726xf32>
    %39 = arith.mulf %37, %38 : vector<10x726xf32>
    %40 = arith.addf %32, %39 : vector<10x726xf32>
    %c0_23 = arith.constant 0 : index
    %c0_24 = arith.constant 0 : index
    %c30 = arith.constant 30 : index
    %41 = vector.load %arg1[%c0_23, %c0_24, %c30] : memref<1x1x784xf32, #tpu.memory_space<vmem>>, vector<1x1x726xf32>
    %42 = vector.shape_cast %41 : vector<1x1x726xf32> to vector<1x726xf32>
    %c5 = arith.constant 5 : index
    %c0_25 = arith.constant 0 : index
    %c0_26 = arith.constant 0 : index
    %43 = vector.load %arg2[%c5, %c0_25, %c0_26] : memref<9x10x1xf32, #tpu.memory_space<vmem>>, vector<1x10x1xf32>
    %44 = vector.shape_cast %43 : vector<1x10x1xf32> to vector<10x1xf32>
    %45 = vector.broadcast %44 : vector<10x1xf32> to vector<10x726xf32>
    %46 = vector.broadcast %42 : vector<1x726xf32> to vector<10x726xf32>
    %47 = arith.mulf %45, %46 : vector<10x726xf32>
    %48 = arith.addf %40, %47 : vector<10x726xf32>
    %c0_27 = arith.constant 0 : index
    %c0_28 = arith.constant 0 : index
    %c56 = arith.constant 56 : index
    %49 = vector.load %arg1[%c0_27, %c0_28, %c56] : memref<1x1x784xf32, #tpu.memory_space<vmem>>, vector<1x1x726xf32>
    %50 = vector.shape_cast %49 : vector<1x1x726xf32> to vector<1x726xf32>
    %c6 = arith.constant 6 : index
    %c0_29 = arith.constant 0 : index
    %c0_30 = arith.constant 0 : index
    %51 = vector.load %arg2[%c6, %c0_29, %c0_30] : memref<9x10x1xf32, #tpu.memory_space<vmem>>, vector<1x10x1xf32>
    %52 = vector.shape_cast %51 : vector<1x10x1xf32> to vector<10x1xf32>
    %53 = vector.broadcast %52 : vector<10x1xf32> to vector<10x726xf32>
    %54 = vector.broadcast %50 : vector<1x726xf32> to vector<10x726xf32>
    %55 = arith.mulf %53, %54 : vector<10x726xf32>
    %56 = arith.addf %48, %55 : vector<10x726xf32>
    %c0_31 = arith.constant 0 : index
    %c0_32 = arith.constant 0 : index
    %c57 = arith.constant 57 : index
    %57 = vector.load %arg1[%c0_31, %c0_32, %c57] : memref<1x1x784xf32, #tpu.memory_space<vmem>>, vector<1x1x726xf32>
    %58 = vector.shape_cast %57 : vector<1x1x726xf32> to vector<1x726xf32>
    %c7 = arith.constant 7 : index
    %c0_33 = arith.constant 0 : index
    %c0_34 = arith.constant 0 : index
    %59 = vector.load %arg2[%c7, %c0_33, %c0_34] : memref<9x10x1xf32, #tpu.memory_space<vmem>>, vector<1x10x1xf32>
    %60 = vector.shape_cast %59 : vector<1x10x1xf32> to vector<10x1xf32>
    %61 = vector.broadcast %60 : vector<10x1xf32> to vector<10x726xf32>
    %62 = vector.broadcast %58 : vector<1x726xf32> to vector<10x726xf32>
    %63 = arith.mulf %61, %62 : vector<10x726xf32>
    %64 = arith.addf %56, %63 : vector<10x726xf32>
    %c0_35 = arith.constant 0 : index
    %c0_36 = arith.constant 0 : index
    %c58 = arith.constant 58 : index
    %65 = vector.load %arg1[%c0_35, %c0_36, %c58] : memref<1x1x784xf32, #tpu.memory_space<vmem>>, vector<1x1x726xf32>
    %66 = vector.shape_cast %65 : vector<1x1x726xf32> to vector<1x726xf32>
    %c8 = arith.constant 8 : index
    %c0_37 = arith.constant 0 : index
    %c0_38 = arith.constant 0 : index
    %67 = vector.load %arg2[%c8, %c0_37, %c0_38] : memref<9x10x1xf32, #tpu.memory_space<vmem>>, vector<1x10x1xf32>
    %68 = vector.shape_cast %67 : vector<1x10x1xf32> to vector<10x1xf32>
    %69 = vector.broadcast %68 : vector<10x1xf32> to vector<10x726xf32>
    %70 = vector.broadcast %66 : vector<1x726xf32> to vector<10x726xf32>
    %71 = arith.mulf %69, %70 : vector<10x726xf32>
    %72 = arith.addf %64, %71 : vector<10x726xf32>
    %c0_39 = arith.constant 0 : index
    %c0_40 = arith.constant 0 : index
    %73 = vector.load %arg3[%c0_39, %c0_40] : memref<10x1xf32, #tpu.memory_space<vmem>>, vector<10x1xf32>
    %74 = vector.broadcast %73 : vector<10x1xf32> to vector<10x726xf32>
    %75 = arith.addf %72, %74 : vector<10x726xf32>
    %cst_41 = arith.constant 0.000000e+00 : f32
    %76 = vector.broadcast %cst_41 : f32 to vector<10x726xf32>
    %77 = arith.maximumf %75, %76 : vector<10x726xf32>
    %c0_42 = arith.constant 0 : index
    %c0_43 = arith.constant 0 : index
    %78 = vector.load %arg13[%c0_42, %c0_43] : memref<10x726xf32, #tpu.memory_space<vmem>>, vector<10x726xf32>
    tpu.vector_store %arg13[%c0_42, %c0_43], %77 {strides = array<i32>} : memref<10x726xf32, #tpu.memory_space<vmem>>, vector<10x726xf32>,
    %c0_44 = arith.constant 0 : index
    %c0_45 = arith.constant 0 : index
    %79 = vector.load %arg13[%c0_44, %c0_45] : memref<10x726xf32, #tpu.memory_space<vmem>>, vector<10x697xf32>
    %c0_46 = arith.constant 0 : index
    %c1_47 = arith.constant 1 : index
    %80 = vector.load %arg13[%c0_46, %c1_47] : memref<10x726xf32, #tpu.memory_space<vmem>>, vector<10x697xf32>
    %81 = arith.maximumf %79, %80 : vector<10x697xf32>
    %c0_48 = arith.constant 0 : index
    %c28_49 = arith.constant 28 : index
    %82 = vector.load %arg13[%c0_48, %c28_49] : memref<10x726xf32, #tpu.memory_space<vmem>>, vector<10x697xf32>
    %c0_50 = arith.constant 0 : index
    %c29_51 = arith.constant 29 : index
    %83 = vector.load %arg13[%c0_50, %c29_51] : memref<10x726xf32, #tpu.memory_space<vmem>>, vector<10x697xf32>
    %84 = arith.maximumf %82, %83 : vector<10x697xf32>
    %85 = arith.maximumf %81, %84 : vector<10x697xf32>
    %c0_52 = arith.constant 0 : index
    %c0_53 = arith.constant 0 : index
    %86 = vector.load %arg6[%c0_52, %c0_53] : memref<697x169xf32, #tpu.memory_space<vmem>>, vector<697x169xf32>
    %cst_54 = arith.constant dense<0.000000e+00> : vector<10x169xf32>
    %87 = tpu.matmul %85, %86, %cst_54 {dimension_numbers = #tpu.dot_dimension_numbers<[1], [0], [0], [1], [0, 0, 1, 1], [], []>} : vector<10x697xf32>, vector<697x169xf32>, vector<10x169xf32> -> vector<10x169xf32>
    %c0_55 = arith.constant 0 : index
    %c0_56 = arith.constant 0 : index
    %88 = vector.load %arg14[%c0_55, %c0_56] : memref<10x169xf32, #tpu.memory_space<vmem>>, vector<10x169xf32>
    tpu.vector_store %arg14[%c0_55, %c0_56], %87 {strides = array<i32>} : memref<10x169xf32, #tpu.memory_space<vmem>>, vector<10x169xf32>,
    %cst_57 = arith.constant 0.000000e+00 : f32
    %89 = vector.broadcast %cst_57 : f32 to vector<10x127xf32>
    %c0_58 = arith.constant 0 : index
    %c0_59 = arith.constant 0 : index
    %c0_60 = arith.constant 0 : index
    %90 = vector.load %arg4[%c0_58, %c0_59, %c0_60] : memref<16x10x10xf32, #tpu.memory_space<vmem>>, vector<1x10x10xf32>
    %91 = vector.shape_cast %90 : vector<1x10x10xf32> to vector<10x10xf32>
    %c0_61 = arith.constant 0 : index
    %c0_62 = arith.constant 0 : index
    %92 = vector.load %arg14[%c0_61, %c0_62] : memref<10x169xf32, #tpu.memory_space<vmem>>, vector<10x127xf32>
    %cst_63 = arith.constant dense<0.000000e+00> : vector<10x127xf32>
    %93 = tpu.matmul %91, %92, %cst_63 {dimension_numbers = #tpu.dot_dimension_numbers<[1], [0], [0], [1], [0, 0, 1, 1], [], []>} : vector<10x10xf32>, vector<10x127xf32>, vector<10x127xf32> -> vector<10x127xf32>
    %94 = arith.addf %89, %93 : vector<10x127xf32>
    %c1_64 = arith.constant 1 : index
    %c0_65 = arith.constant 0 : index
    %c0_66 = arith.constant 0 : index
    %95 = vector.load %arg4[%c1_64, %c0_65, %c0_66] : memref<16x10x10xf32, #tpu.memory_space<vmem>>, vector<1x10x10xf32>
    %96 = vector.shape_cast %95 : vector<1x10x10xf32> to vector<10x10xf32>
    %c0_67 = arith.constant 0 : index
    %c1_68 = arith.constant 1 : index
    %97 = vector.load %arg14[%c0_67, %c1_68] : memref<10x169xf32, #tpu.memory_space<vmem>>, vector<10x127xf32>
    %cst_69 = arith.constant dense<0.000000e+00> : vector<10x127xf32>
    %98 = tpu.matmul %96, %97, %cst_69 {dimension_numbers = #tpu.dot_dimension_numbers<[1], [0], [0], [1], [0, 0, 1, 1], [], []>} : vector<10x10xf32>, vector<10x127xf32>, vector<10x127xf32> -> vector<10x127xf32>
    %99 = arith.addf %94, %98 : vector<10x127xf32>
    %c2_70 = arith.constant 2 : index
    %c0_71 = arith.constant 0 : index
    %c0_72 = arith.constant 0 : index
    %100 = vector.load %arg4[%c2_70, %c0_71, %c0_72] : memref<16x10x10xf32, #tpu.memory_space<vmem>>, vector<1x10x10xf32>
    %101 = vector.shape_cast %100 : vector<1x10x10xf32> to vector<10x10xf32>
    %c0_73 = arith.constant 0 : index
    %c2_74 = arith.constant 2 : index
    %102 = vector.load %arg14[%c0_73, %c2_74] : memref<10x169xf32, #tpu.memory_space<vmem>>, vector<10x127xf32>
    %cst_75 = arith.constant dense<0.000000e+00> : vector<10x127xf32>
    %103 = tpu.matmul %101, %102, %cst_75 {dimension_numbers = #tpu.dot_dimension_numbers<[1], [0], [0], [1], [0, 0, 1, 1], [], []>} : vector<10x10xf32>, vector<10x127xf32>, vector<10x127xf32> -> vector<10x127xf32>
    %104 = arith.addf %99, %103 : vector<10x127xf32>
    %c3_76 = arith.constant 3 : index
    %c0_77 = arith.constant 0 : index
    %c0_78 = arith.constant 0 : index
    %105 = vector.load %arg4[%c3_76, %c0_77, %c0_78] : memref<16x10x10xf32, #tpu.memory_space<vmem>>, vector<1x10x10xf32>
    %106 = vector.shape_cast %105 : vector<1x10x10xf32> to vector<10x10xf32>
    %c0_79 = arith.constant 0 : index
    %c3_80 = arith.constant 3 : index
    %107 = vector.load %arg14[%c0_79, %c3_80] : memref<10x169xf32, #tpu.memory_space<vmem>>, vector<10x127xf32>
    %cst_81 = arith.constant dense<0.000000e+00> : vector<10x127xf32>
    %108 = tpu.matmul %106, %107, %cst_81 {dimension_numbers = #tpu.dot_dimension_numbers<[1], [0], [0], [1], [0, 0, 1, 1], [], []>} : vector<10x10xf32>, vector<10x127xf32>, vector<10x127xf32> -> vector<10x127xf32>
    %109 = arith.addf %104, %108 : vector<10x127xf32>
    %c4_82 = arith.constant 4 : index
    %c0_83 = arith.constant 0 : index
    %c0_84 = arith.constant 0 : index
    %110 = vector.load %arg4[%c4_82, %c0_83, %c0_84] : memref<16x10x10xf32, #tpu.memory_space<vmem>>, vector<1x10x10xf32>
    %111 = vector.shape_cast %110 : vector<1x10x10xf32> to vector<10x10xf32>
    %c0_85 = arith.constant 0 : index
    %c13 = arith.constant 13 : index
    %112 = vector.load %arg14[%c0_85, %c13] : memref<10x169xf32, #tpu.memory_space<vmem>>, vector<10x127xf32>
    %cst_86 = arith.constant dense<0.000000e+00> : vector<10x127xf32>
    %113 = tpu.matmul %111, %112, %cst_86 {dimension_numbers = #tpu.dot_dimension_numbers<[1], [0], [0], [1], [0, 0, 1, 1], [], []>} : vector<10x10xf32>, vector<10x127xf32>, vector<10x127xf32> -> vector<10x127xf32>
    %114 = arith.addf %109, %113 : vector<10x127xf32>
    %c5_87 = arith.constant 5 : index
    %c0_88 = arith.constant 0 : index
    %c0_89 = arith.constant 0 : index
    %115 = vector.load %arg4[%c5_87, %c0_88, %c0_89] : memref<16x10x10xf32, #tpu.memory_space<vmem>>, vector<1x10x10xf32>
    %116 = vector.shape_cast %115 : vector<1x10x10xf32> to vector<10x10xf32>
    %c0_90 = arith.constant 0 : index
    %c14 = arith.constant 14 : index
    %117 = vector.load %arg14[%c0_90, %c14] : memref<10x169xf32, #tpu.memory_space<vmem>>, vector<10x127xf32>
    %cst_91 = arith.constant dense<0.000000e+00> : vector<10x127xf32>
    %118 = tpu.matmul %116, %117, %cst_91 {dimension_numbers = #tpu.dot_dimension_numbers<[1], [0], [0], [1], [0, 0, 1, 1], [], []>} : vector<10x10xf32>, vector<10x127xf32>, vector<10x127xf32> -> vector<10x127xf32>
    %119 = arith.addf %114, %118 : vector<10x127xf32>
    %c6_92 = arith.constant 6 : index
    %c0_93 = arith.constant 0 : index
    %c0_94 = arith.constant 0 : index
    %120 = vector.load %arg4[%c6_92, %c0_93, %c0_94] : memref<16x10x10xf32, #tpu.memory_space<vmem>>, vector<1x10x10xf32>
    %121 = vector.shape_cast %120 : vector<1x10x10xf32> to vector<10x10xf32>
    %c0_95 = arith.constant 0 : index
    %c15 = arith.constant 15 : index
    %122 = vector.load %arg14[%c0_95, %c15] : memref<10x169xf32, #tpu.memory_space<vmem>>, vector<10x127xf32>
    %cst_96 = arith.constant dense<0.000000e+00> : vector<10x127xf32>
    %123 = tpu.matmul %121, %122, %cst_96 {dimension_numbers = #tpu.dot_dimension_numbers<[1], [0], [0], [1], [0, 0, 1, 1], [], []>} : vector<10x10xf32>, vector<10x127xf32>, vector<10x127xf32> -> vector<10x127xf32>
    %124 = arith.addf %119, %123 : vector<10x127xf32>
    %c7_97 = arith.constant 7 : index
    %c0_98 = arith.constant 0 : index
    %c0_99 = arith.constant 0 : index
    %125 = vector.load %arg4[%c7_97, %c0_98, %c0_99] : memref<16x10x10xf32, #tpu.memory_space<vmem>>, vector<1x10x10xf32>
    %126 = vector.shape_cast %125 : vector<1x10x10xf32> to vector<10x10xf32>
    %c0_100 = arith.constant 0 : index
    %c16 = arith.constant 16 : index
    %127 = vector.load %arg14[%c0_100, %c16] : memref<10x169xf32, #tpu.memory_space<vmem>>, vector<10x127xf32>
    %cst_101 = arith.constant dense<0.000000e+00> : vector<10x127xf32>
    %128 = tpu.matmul %126, %127, %cst_101 {dimension_numbers = #tpu.dot_dimension_numbers<[1], [0], [0], [1], [0, 0, 1, 1], [], []>} : vector<10x10xf32>, vector<10x127xf32>, vector<10x127xf32> -> vector<10x127xf32>
    %129 = arith.addf %124, %128 : vector<10x127xf32>
    %c8_102 = arith.constant 8 : index
    %c0_103 = arith.constant 0 : index
    %c0_104 = arith.constant 0 : index
    %130 = vector.load %arg4[%c8_102, %c0_103, %c0_104] : memref<16x10x10xf32, #tpu.memory_space<vmem>>, vector<1x10x10xf32>
    %131 = vector.shape_cast %130 : vector<1x10x10xf32> to vector<10x10xf32>
    %c0_105 = arith.constant 0 : index
    %c26 = arith.constant 26 : index
    %132 = vector.load %arg14[%c0_105, %c26] : memref<10x169xf32, #tpu.memory_space<vmem>>, vector<10x127xf32>
    %cst_106 = arith.constant dense<0.000000e+00> : vector<10x127xf32>
    %133 = tpu.matmul %131, %132, %cst_106 {dimension_numbers = #tpu.dot_dimension_numbers<[1], [0], [0], [1], [0, 0, 1, 1], [], []>} : vector<10x10xf32>, vector<10x127xf32>, vector<10x127xf32> -> vector<10x127xf32>
    %134 = arith.addf %129, %133 : vector<10x127xf32>
    %c9 = arith.constant 9 : index
    %c0_107 = arith.constant 0 : index
    %c0_108 = arith.constant 0 : index
    %135 = vector.load %arg4[%c9, %c0_107, %c0_108] : memref<16x10x10xf32, #tpu.memory_space<vmem>>, vector<1x10x10xf32>
    %136 = vector.shape_cast %135 : vector<1x10x10xf32> to vector<10x10xf32>
    %c0_109 = arith.constant 0 : index
    %c27 = arith.constant 27 : index
    %137 = vector.load %arg14[%c0_109, %c27] : memref<10x169xf32, #tpu.memory_space<vmem>>, vector<10x127xf32>
    %cst_110 = arith.constant dense<0.000000e+00> : vector<10x127xf32>
    %138 = tpu.matmul %136, %137, %cst_110 {dimension_numbers = #tpu.dot_dimension_numbers<[1], [0], [0], [1], [0, 0, 1, 1], [], []>} : vector<10x10xf32>, vector<10x127xf32>, vector<10x127xf32> -> vector<10x127xf32>
    %139 = arith.addf %134, %138 : vector<10x127xf32>
    %c10 = arith.constant 10 : index
    %c0_111 = arith.constant 0 : index
    %c0_112 = arith.constant 0 : index
    %140 = vector.load %arg4[%c10, %c0_111, %c0_112] : memref<16x10x10xf32, #tpu.memory_space<vmem>>, vector<1x10x10xf32>
    %141 = vector.shape_cast %140 : vector<1x10x10xf32> to vector<10x10xf32>
    %c0_113 = arith.constant 0 : index
    %c28_114 = arith.constant 28 : index
    %142 = vector.load %arg14[%c0_113, %c28_114] : memref<10x169xf32, #tpu.memory_space<vmem>>, vector<10x127xf32>
    %cst_115 = arith.constant dense<0.000000e+00> : vector<10x127xf32>
    %143 = tpu.matmul %141, %142, %cst_115 {dimension_numbers = #tpu.dot_dimension_numbers<[1], [0], [0], [1], [0, 0, 1, 1], [], []>} : vector<10x10xf32>, vector<10x127xf32>, vector<10x127xf32> -> vector<10x127xf32>
    %144 = arith.addf %139, %143 : vector<10x127xf32>
    %c11 = arith.constant 11 : index
    %c0_116 = arith.constant 0 : index
    %c0_117 = arith.constant 0 : index
    %145 = vector.load %arg4[%c11, %c0_116, %c0_117] : memref<16x10x10xf32, #tpu.memory_space<vmem>>, vector<1x10x10xf32>
    %146 = vector.shape_cast %145 : vector<1x10x10xf32> to vector<10x10xf32>
    %c0_118 = arith.constant 0 : index
    %c29_119 = arith.constant 29 : index
    %147 = vector.load %arg14[%c0_118, %c29_119] : memref<10x169xf32, #tpu.memory_space<vmem>>, vector<10x127xf32>
    %cst_120 = arith.constant dense<0.000000e+00> : vector<10x127xf32>
    %148 = tpu.matmul %146, %147, %cst_120 {dimension_numbers = #tpu.dot_dimension_numbers<[1], [0], [0], [1], [0, 0, 1, 1], [], []>} : vector<10x10xf32>, vector<10x127xf32>, vector<10x127xf32> -> vector<10x127xf32>
    %149 = arith.addf %144, %148 : vector<10x127xf32>
    %c12 = arith.constant 12 : index
    %c0_121 = arith.constant 0 : index
    %c0_122 = arith.constant 0 : index
    %150 = vector.load %arg4[%c12, %c0_121, %c0_122] : memref<16x10x10xf32, #tpu.memory_space<vmem>>, vector<1x10x10xf32>
    %151 = vector.shape_cast %150 : vector<1x10x10xf32> to vector<10x10xf32>
    %c0_123 = arith.constant 0 : index
    %c39 = arith.constant 39 : index
    %152 = vector.load %arg14[%c0_123, %c39] : memref<10x169xf32, #tpu.memory_space<vmem>>, vector<10x127xf32>
    %cst_124 = arith.constant dense<0.000000e+00> : vector<10x127xf32>
    %153 = tpu.matmul %151, %152, %cst_124 {dimension_numbers = #tpu.dot_dimension_numbers<[1], [0], [0], [1], [0, 0, 1, 1], [], []>} : vector<10x10xf32>, vector<10x127xf32>, vector<10x127xf32> -> vector<10x127xf32>
    %154 = arith.addf %149, %153 : vector<10x127xf32>
    %c13_125 = arith.constant 13 : index
    %c0_126 = arith.constant 0 : index
    %c0_127 = arith.constant 0 : index
    %155 = vector.load %arg4[%c13_125, %c0_126, %c0_127] : memref<16x10x10xf32, #tpu.memory_space<vmem>>, vector<1x10x10xf32>
    %156 = vector.shape_cast %155 : vector<1x10x10xf32> to vector<10x10xf32>
    %c0_128 = arith.constant 0 : index
    %c40 = arith.constant 40 : index
    %157 = vector.load %arg14[%c0_128, %c40] : memref<10x169xf32, #tpu.memory_space<vmem>>, vector<10x127xf32>
    %cst_129 = arith.constant dense<0.000000e+00> : vector<10x127xf32>
    %158 = tpu.matmul %156, %157, %cst_129 {dimension_numbers = #tpu.dot_dimension_numbers<[1], [0], [0], [1], [0, 0, 1, 1], [], []>} : vector<10x10xf32>, vector<10x127xf32>, vector<10x127xf32> -> vector<10x127xf32>
    %159 = arith.addf %154, %158 : vector<10x127xf32>
    %c14_130 = arith.constant 14 : index
    %c0_131 = arith.constant 0 : index
    %c0_132 = arith.constant 0 : index
    %160 = vector.load %arg4[%c14_130, %c0_131, %c0_132] : memref<16x10x10xf32, #tpu.memory_space<vmem>>, vector<1x10x10xf32>
    %161 = vector.shape_cast %160 : vector<1x10x10xf32> to vector<10x10xf32>
    %c0_133 = arith.constant 0 : index
    %c41 = arith.constant 41 : index
    %162 = vector.load %arg14[%c0_133, %c41] : memref<10x169xf32, #tpu.memory_space<vmem>>, vector<10x127xf32>
    %cst_134 = arith.constant dense<0.000000e+00> : vector<10x127xf32>
    %163 = tpu.matmul %161, %162, %cst_134 {dimension_numbers = #tpu.dot_dimension_numbers<[1], [0], [0], [1], [0, 0, 1, 1], [], []>} : vector<10x10xf32>, vector<10x127xf32>, vector<10x127xf32> -> vector<10x127xf32>
    %164 = arith.addf %159, %163 : vector<10x127xf32>
    %c15_135 = arith.constant 15 : index
    %c0_136 = arith.constant 0 : index
    %c0_137 = arith.constant 0 : index
    %165 = vector.load %arg4[%c15_135, %c0_136, %c0_137] : memref<16x10x10xf32, #tpu.memory_space<vmem>>, vector<1x10x10xf32>
    %166 = vector.shape_cast %165 : vector<1x10x10xf32> to vector<10x10xf32>
    %c0_138 = arith.constant 0 : index
    %c42 = arith.constant 42 : index
    %167 = vector.load %arg14[%c0_138, %c42] : memref<10x169xf32, #tpu.memory_space<vmem>>, vector<10x127xf32>
    %cst_139 = arith.constant dense<0.000000e+00> : vector<10x127xf32>
    %168 = tpu.matmul %166, %167, %cst_139 {dimension_numbers = #tpu.dot_dimension_numbers<[1], [0], [0], [1], [0, 0, 1, 1], [], []>} : vector<10x10xf32>, vector<10x127xf32>, vector<10x127xf32> -> vector<10x127xf32>
    %169 = arith.addf %164, %168 : vector<10x127xf32>
    %c0_140 = arith.constant 0 : index
    %c0_141 = arith.constant 0 : index
    %170 = vector.load %arg5[%c0_140, %c0_141] : memref<10x1xf32, #tpu.memory_space<vmem>>, vector<10x1xf32>
    %171 = vector.broadcast %170 : vector<10x1xf32> to vector<10x127xf32>
    %172 = arith.addf %169, %171 : vector<10x127xf32>
    %cst_142 = arith.constant 0.000000e+00 : f32
    %173 = vector.broadcast %cst_142 : f32 to vector<10x127xf32>
    %174 = arith.maximumf %172, %173 : vector<10x127xf32>
    %c0_143 = arith.constant 0 : index
    %c0_144 = arith.constant 0 : index
    %175 = vector.load %arg15[%c0_143, %c0_144] : memref<10x127xf32, #tpu.memory_space<vmem>>, vector<10x127xf32>
    tpu.vector_store %arg15[%c0_143, %c0_144], %174 {strides = array<i32>} : memref<10x127xf32, #tpu.memory_space<vmem>>, vector<10x127xf32>,
    %c0_145 = arith.constant 0 : index
    %c0_146 = arith.constant 0 : index
    %176 = vector.load %arg15[%c0_145, %c0_146] : memref<10x127xf32, #tpu.memory_space<vmem>>, vector<10x113xf32>
    %c0_147 = arith.constant 0 : index
    %c1_148 = arith.constant 1 : index
    %177 = vector.load %arg15[%c0_147, %c1_148] : memref<10x127xf32, #tpu.memory_space<vmem>>, vector<10x113xf32>
    %178 = arith.maximumf %176, %177 : vector<10x113xf32>
    %c0_149 = arith.constant 0 : index
    %c13_150 = arith.constant 13 : index
    %179 = vector.load %arg15[%c0_149, %c13_150] : memref<10x127xf32, #tpu.memory_space<vmem>>, vector<10x113xf32>
    %c0_151 = arith.constant 0 : index
    %c14_152 = arith.constant 14 : index
    %180 = vector.load %arg15[%c0_151, %c14_152] : memref<10x127xf32, #tpu.memory_space<vmem>>, vector<10x113xf32>
    %181 = arith.maximumf %179, %180 : vector<10x113xf32>
    %182 = arith.maximumf %178, %181 : vector<10x113xf32>
    %c0_153 = arith.constant 0 : index
    %c0_154 = arith.constant 0 : index
    %183 = vector.load %arg7[%c0_153, %c0_154] : memref<113x25xf32, #tpu.memory_space<vmem>>, vector<113x25xf32>
    %cst_155 = arith.constant dense<0.000000e+00> : vector<10x25xf32>
    %184 = tpu.matmul %182, %183, %cst_155 {dimension_numbers = #tpu.dot_dimension_numbers<[1], [0], [0], [1], [0, 0, 1, 1], [], []>} : vector<10x113xf32>, vector<113x25xf32>, vector<10x25xf32> -> vector<10x25xf32>
    %c0_156 = arith.constant 0 : index
    %c0_157 = arith.constant 0 : index
    %185 = vector.load %arg16[%c0_156, %c0_157] : memref<10x25xf32, #tpu.memory_space<vmem>>, vector<10x25xf32>
    tpu.vector_store %arg16[%c0_156, %c0_157], %184 {strides = array<i32>} : memref<10x25xf32, #tpu.memory_space<vmem>>, vector<10x25xf32>,
    %c0_158 = arith.constant 0 : index
    %c0_159 = arith.constant 0 : index
    %186 = vector.load %arg9[%c0_158, %c0_159] : memref<1x50xf32, #tpu.memory_space<vmem>>, vector<1x50xf32>
    %c0_160 = arith.constant 0 : index
    %c0_161 = arith.constant 0 : index
    %187 = vector.load %arg16[%c0_160, %c0_161] : memref<10x25xf32, #tpu.memory_space<vmem>>, vector<1x25xf32>
    %c0_162 = arith.constant 0 : index
    %c0_163 = arith.constant 0 : index
    %c0_164 = arith.constant 0 : index
    %188 = vector.load %arg8[%c0_162, %c0_163, %c0_164] : memref<10x25x50xf32, #tpu.memory_space<vmem>>, vector<1x25x50xf32>
    %189 = vector.shape_cast %188 : vector<1x25x50xf32> to vector<25x50xf32>
    %cst_165 = arith.constant dense<0.000000e+00> : vector<1x50xf32>
    %190 = tpu.matmul %187, %189, %cst_165 {dimension_numbers = #tpu.dot_dimension_numbers<[1], [0], [0], [1], [0, 0, 1, 1], [], []>} : vector<1x25xf32>, vector<25x50xf32>, vector<1x50xf32> -> vector<1x50xf32>
    %191 = arith.addf %186, %190 : vector<1x50xf32>
    %c1_166 = arith.constant 1 : index
    %c0_167 = arith.constant 0 : index
    %192 = vector.load %arg16[%c1_166, %c0_167] : memref<10x25xf32, #tpu.memory_space<vmem>>, vector<1x25xf32>
    %c1_168 = arith.constant 1 : index
    %c0_169 = arith.constant 0 : index
    %c0_170 = arith.constant 0 : index
    %193 = vector.load %arg8[%c1_168, %c0_169, %c0_170] : memref<10x25x50xf32, #tpu.memory_space<vmem>>, vector<1x25x50xf32>
    %194 = vector.shape_cast %193 : vector<1x25x50xf32> to vector<25x50xf32>
    %cst_171 = arith.constant dense<0.000000e+00> : vector<1x50xf32>
    %195 = tpu.matmul %192, %194, %cst_171 {dimension_numbers = #tpu.dot_dimension_numbers<[1], [0], [0], [1], [0, 0, 1, 1], [], []>} : vector<1x25xf32>, vector<25x50xf32>, vector<1x50xf32> -> vector<1x50xf32>
    %196 = arith.addf %191, %195 : vector<1x50xf32>
    %c2_172 = arith.constant 2 : index
    %c0_173 = arith.constant 0 : index
    %197 = vector.load %arg16[%c2_172, %c0_173] : memref<10x25xf32, #tpu.memory_space<vmem>>, vector<1x25xf32>
    %c2_174 = arith.constant 2 : index
    %c0_175 = arith.constant 0 : index
    %c0_176 = arith.constant 0 : index
    %198 = vector.load %arg8[%c2_174, %c0_175, %c0_176] : memref<10x25x50xf32, #tpu.memory_space<vmem>>, vector<1x25x50xf32>
    %199 = vector.shape_cast %198 : vector<1x25x50xf32> to vector<25x50xf32>
    %cst_177 = arith.constant dense<0.000000e+00> : vector<1x50xf32>
    %200 = tpu.matmul %197, %199, %cst_177 {dimension_numbers = #tpu.dot_dimension_numbers<[1], [0], [0], [1], [0, 0, 1, 1], [], []>} : vector<1x25xf32>, vector<25x50xf32>, vector<1x50xf32> -> vector<1x50xf32>
    %201 = arith.addf %196, %200 : vector<1x50xf32>
    %c3_178 = arith.constant 3 : index
    %c0_179 = arith.constant 0 : index
    %202 = vector.load %arg16[%c3_178, %c0_179] : memref<10x25xf32, #tpu.memory_space<vmem>>, vector<1x25xf32>
    %c3_180 = arith.constant 3 : index
    %c0_181 = arith.constant 0 : index
    %c0_182 = arith.constant 0 : index
    %203 = vector.load %arg8[%c3_180, %c0_181, %c0_182] : memref<10x25x50xf32, #tpu.memory_space<vmem>>, vector<1x25x50xf32>
    %204 = vector.shape_cast %203 : vector<1x25x50xf32> to vector<25x50xf32>
    %cst_183 = arith.constant dense<0.000000e+00> : vector<1x50xf32>
    %205 = tpu.matmul %202, %204, %cst_183 {dimension_numbers = #tpu.dot_dimension_numbers<[1], [0], [0], [1], [0, 0, 1, 1], [], []>} : vector<1x25xf32>, vector<25x50xf32>, vector<1x50xf32> -> vector<1x50xf32>
    %206 = arith.addf %201, %205 : vector<1x50xf32>
    %c4_184 = arith.constant 4 : index
    %c0_185 = arith.constant 0 : index
    %207 = vector.load %arg16[%c4_184, %c0_185] : memref<10x25xf32, #tpu.memory_space<vmem>>, vector<1x25xf32>
    %c4_186 = arith.constant 4 : index
    %c0_187 = arith.constant 0 : index
    %c0_188 = arith.constant 0 : index
    %208 = vector.load %arg8[%c4_186, %c0_187, %c0_188] : memref<10x25x50xf32, #tpu.memory_space<vmem>>, vector<1x25x50xf32>
    %209 = vector.shape_cast %208 : vector<1x25x50xf32> to vector<25x50xf32>
    %cst_189 = arith.constant dense<0.000000e+00> : vector<1x50xf32>
    %210 = tpu.matmul %207, %209, %cst_189 {dimension_numbers = #tpu.dot_dimension_numbers<[1], [0], [0], [1], [0, 0, 1, 1], [], []>} : vector<1x25xf32>, vector<25x50xf32>, vector<1x50xf32> -> vector<1x50xf32>
    %211 = arith.addf %206, %210 : vector<1x50xf32>
    %c5_190 = arith.constant 5 : index
    %c0_191 = arith.constant 0 : index
    %212 = vector.load %arg16[%c5_190, %c0_191] : memref<10x25xf32, #tpu.memory_space<vmem>>, vector<1x25xf32>
    %c5_192 = arith.constant 5 : index
    %c0_193 = arith.constant 0 : index
    %c0_194 = arith.constant 0 : index
    %213 = vector.load %arg8[%c5_192, %c0_193, %c0_194] : memref<10x25x50xf32, #tpu.memory_space<vmem>>, vector<1x25x50xf32>
    %214 = vector.shape_cast %213 : vector<1x25x50xf32> to vector<25x50xf32>
    %cst_195 = arith.constant dense<0.000000e+00> : vector<1x50xf32>
    %215 = tpu.matmul %212, %214, %cst_195 {dimension_numbers = #tpu.dot_dimension_numbers<[1], [0], [0], [1], [0, 0, 1, 1], [], []>} : vector<1x25xf32>, vector<25x50xf32>, vector<1x50xf32> -> vector<1x50xf32>
    %216 = arith.addf %211, %215 : vector<1x50xf32>
    %c6_196 = arith.constant 6 : index
    %c0_197 = arith.constant 0 : index
    %217 = vector.load %arg16[%c6_196, %c0_197] : memref<10x25xf32, #tpu.memory_space<vmem>>, vector<1x25xf32>
    %c6_198 = arith.constant 6 : index
    %c0_199 = arith.constant 0 : index
    %c0_200 = arith.constant 0 : index
    %218 = vector.load %arg8[%c6_198, %c0_199, %c0_200] : memref<10x25x50xf32, #tpu.memory_space<vmem>>, vector<1x25x50xf32>
    %219 = vector.shape_cast %218 : vector<1x25x50xf32> to vector<25x50xf32>
    %cst_201 = arith.constant dense<0.000000e+00> : vector<1x50xf32>
    %220 = tpu.matmul %217, %219, %cst_201 {dimension_numbers = #tpu.dot_dimension_numbers<[1], [0], [0], [1], [0, 0, 1, 1], [], []>} : vector<1x25xf32>, vector<25x50xf32>, vector<1x50xf32> -> vector<1x50xf32>
    %221 = arith.addf %216, %220 : vector<1x50xf32>
    %c7_202 = arith.constant 7 : index
    %c0_203 = arith.constant 0 : index
    %222 = vector.load %arg16[%c7_202, %c0_203] : memref<10x25xf32, #tpu.memory_space<vmem>>, vector<1x25xf32>
    %c7_204 = arith.constant 7 : index
    %c0_205 = arith.constant 0 : index
    %c0_206 = arith.constant 0 : index
    %223 = vector.load %arg8[%c7_204, %c0_205, %c0_206] : memref<10x25x50xf32, #tpu.memory_space<vmem>>, vector<1x25x50xf32>
    %224 = vector.shape_cast %223 : vector<1x25x50xf32> to vector<25x50xf32>
    %cst_207 = arith.constant dense<0.000000e+00> : vector<1x50xf32>
    %225 = tpu.matmul %222, %224, %cst_207 {dimension_numbers = #tpu.dot_dimension_numbers<[1], [0], [0], [1], [0, 0, 1, 1], [], []>} : vector<1x25xf32>, vector<25x50xf32>, vector<1x50xf32> -> vector<1x50xf32>
    %226 = arith.addf %221, %225 : vector<1x50xf32>
    %c8_208 = arith.constant 8 : index
    %c0_209 = arith.constant 0 : index
    %227 = vector.load %arg16[%c8_208, %c0_209] : memref<10x25xf32, #tpu.memory_space<vmem>>, vector<1x25xf32>
    %c8_210 = arith.constant 8 : index
    %c0_211 = arith.constant 0 : index
    %c0_212 = arith.constant 0 : index
    %228 = vector.load %arg8[%c8_210, %c0_211, %c0_212] : memref<10x25x50xf32, #tpu.memory_space<vmem>>, vector<1x25x50xf32>
    %229 = vector.shape_cast %228 : vector<1x25x50xf32> to vector<25x50xf32>
    %cst_213 = arith.constant dense<0.000000e+00> : vector<1x50xf32>
    %230 = tpu.matmul %227, %229, %cst_213 {dimension_numbers = #tpu.dot_dimension_numbers<[1], [0], [0], [1], [0, 0, 1, 1], [], []>} : vector<1x25xf32>, vector<25x50xf32>, vector<1x50xf32> -> vector<1x50xf32>
    %231 = arith.addf %226, %230 : vector<1x50xf32>
    %c9_214 = arith.constant 9 : index
    %c0_215 = arith.constant 0 : index
    %232 = vector.load %arg16[%c9_214, %c0_215] : memref<10x25xf32, #tpu.memory_space<vmem>>, vector<1x25xf32>
    %c9_216 = arith.constant 9 : index
    %c0_217 = arith.constant 0 : index
    %c0_218 = arith.constant 0 : index
    %233 = vector.load %arg8[%c9_216, %c0_217, %c0_218] : memref<10x25x50xf32, #tpu.memory_space<vmem>>, vector<1x25x50xf32>
    %234 = vector.shape_cast %233 : vector<1x25x50xf32> to vector<25x50xf32>
    %cst_219 = arith.constant dense<0.000000e+00> : vector<1x50xf32>
    %235 = tpu.matmul %232, %234, %cst_219 {dimension_numbers = #tpu.dot_dimension_numbers<[1], [0], [0], [1], [0, 0, 1, 1], [], []>} : vector<1x25xf32>, vector<25x50xf32>, vector<1x50xf32> -> vector<1x50xf32>
    %236 = arith.addf %231, %235 : vector<1x50xf32>
    %cst_220 = arith.constant 0.000000e+00 : f32
    %237 = vector.broadcast %cst_220 : f32 to vector<1x50xf32>
    %238 = arith.maximumf %236, %237 : vector<1x50xf32>
    %c0_221 = arith.constant 0 : index
    %c0_222 = arith.constant 0 : index
    %239 = vector.load %arg10[%c0_221, %c0_222] : memref<50x10xf32, #tpu.memory_space<vmem>>, vector<50x10xf32>
    %cst_223 = arith.constant dense<0.000000e+00> : vector<1x10xf32>
    %240 = tpu.matmul %238, %239, %cst_223 {dimension_numbers = #tpu.dot_dimension_numbers<[1], [0], [0], [1], [0, 0, 1, 1], [], []>} : vector<1x50xf32>, vector<50x10xf32>, vector<1x10xf32> -> vector<1x10xf32>
    %c0_224 = arith.constant 0 : index
    %c0_225 = arith.constant 0 : index
    %241 = vector.load %arg11[%c0_224, %c0_225] : memref<1x10xf32, #tpu.memory_space<vmem>>, vector<1x10xf32>
    %242 = arith.addf %240, %241 : vector<1x10xf32>
    %cst_226 = arith.constant dense<0xFF800000> : vector<1xf32>
    %243 = vector.multi_reduction <maximumf>, %242, %cst_226 [1] : vector<1x10xf32> to vector<1xf32>
    %244 = vector.shape_cast %243 : vector<1xf32> to vector<1x1xf32>
    %245 = vector.broadcast %244 : vector<1x1xf32> to vector<1x10xf32>
    %246 = arith.subf %242, %245 : vector<1x10xf32>
    %247 = math.exp %246 : vector<1x10xf32>
    %cst_227 = arith.constant dense<0.000000e+00> : vector<1xf32>
    %248 = vector.multi_reduction <add>, %247, %cst_227 [1] : vector<1x10xf32> to vector<1xf32>
    %249 = vector.shape_cast %248 : vector<1xf32> to vector<1x1xf32>
    %250 = math.log %249 : vector<1x1xf32>
    %251 = vector.broadcast %250 : vector<1x1xf32> to vector<1x10xf32>
    %252 = arith.subf %246, %251 : vector<1x10xf32>
    %c0_228 = arith.constant 0 : index
    %c0_229 = arith.constant 0 : index
    %c0_230 = arith.constant 0 : index
    %253 = vector.load %arg12[%c0_228, %c0_229, %c0_230] : memref<1x1x10xf32, #tpu.memory_space<vmem>>, vector<1x1x10xf32>
    %254 = vector.shape_cast %253 : vector<1x1x10xf32> to vector<1x10xf32>
    %255 = vector.shape_cast %252 : vector<1x10xf32> to vector<1x1x10xf32>
    tpu.vector_store %arg12[%c0_228, %c0_229, %c0_230], %255 {strides = array<i32>} : memref<1x1x10xf32, #tpu.memory_space<vmem>>, vector<1x1x10xf32>,
    return
  }
  func.func @transform_0(%arg0: i32) -> (i32, i32, i32) {
    %c0_i32 = arith.constant 0 : i32
    %c0_i32_0 = arith.constant 0 : i32
    %c0_i32_1 = arith.constant 0 : i32
    return %arg0, %c0_i32, %c0_i32_0 : i32, i32, i32
  }
  func.func @transform_1(%arg0: i32) -> (i32, i32, i32) {
    %c0_i32 = arith.constant 0 : i32
    %c0_i32_0 = arith.constant 0 : i32
    %c0_i32_1 = arith.constant 0 : i32
    %c0_i32_2 = arith.constant 0 : i32
    return %c0_i32, %c0_i32_0, %c0_i32_1 : i32, i32, i32
  }
  func.func @transform_2(%arg0: i32) -> (i32, i32) {
    %c0_i32 = arith.constant 0 : i32
    %c0_i32_0 = arith.constant 0 : i32
    %c0_i32_1 = arith.constant 0 : i32
    return %c0_i32, %c0_i32_0 : i32, i32
  }
  func.func @transform_3(%arg0: i32) -> (i32, i32, i32) {
    %c0_i32 = arith.constant 0 : i32
    %c0_i32_0 = arith.constant 0 : i32
    %c0_i32_1 = arith.constant 0 : i32
    %c0_i32_2 = arith.constant 0 : i32
    return %c0_i32, %c0_i32_0, %c0_i32_1 : i32, i32, i32
  }
  func.func @transform_4(%arg0: i32) -> (i32, i32) {
    %c0_i32 = arith.constant 0 : i32
    %c0_i32_0 = arith.constant 0 : i32
    %c0_i32_1 = arith.constant 0 : i32
    return %c0_i32, %c0_i32_0 : i32, i32
  }
  func.func @transform_5(%arg0: i32) -> (i32, i32) {
    %c0_i32 = arith.constant 0 : i32
    %c0_i32_0 = arith.constant 0 : i32
    %c0_i32_1 = arith.constant 0 : i32
    return %c0_i32, %c0_i32_0 : i32, i32
  }
  func.func @transform_6(%arg0: i32) -> (i32, i32) {
    %c0_i32 = arith.constant 0 : i32
    %c0_i32_0 = arith.constant 0 : i32
    %c0_i32_1 = arith.constant 0 : i32
    return %c0_i32, %c0_i32_0 : i32, i32
  }
  func.func @transform_7(%arg0: i32) -> (i32, i32, i32) {
    %c0_i32 = arith.constant 0 : i32
    %c0_i32_0 = arith.constant 0 : i32
    %c0_i32_1 = arith.constant 0 : i32
    %c0_i32_2 = arith.constant 0 : i32
    return %c0_i32, %c0_i32_0, %c0_i32_1 : i32, i32, i32
  }
  func.func @transform_8(%arg0: i32) -> (i32, i32) {
    %c0_i32 = arith.constant 0 : i32
    %c0_i32_0 = arith.constant 0 : i32
    %c0_i32_1 = arith.constant 0 : i32
    return %c0_i32, %c0_i32_0 : i32, i32
  }
  func.func @transform_9(%arg0: i32) -> (i32, i32) {
    %c0_i32 = arith.constant 0 : i32
    %c0_i32_0 = arith.constant 0 : i32
    %c0_i32_1 = arith.constant 0 : i32
    return %c0_i32, %c0_i32_0 : i32, i32
  }
  func.func @transform_10(%arg0: i32) -> (i32, i32) {
    %c0_i32 = arith.constant 0 : i32
    %c0_i32_0 = arith.constant 0 : i32
    %c0_i32_1 = arith.constant 0 : i32
    return %c0_i32, %c0_i32_0 : i32, i32
  }
  func.func @transform_11(%arg0: i32) -> (i32, i32, i32) {
    %c0_i32 = arith.constant 0 : i32
    %c0_i32_0 = arith.constant 0 : i32
    %c0_i32_1 = arith.constant 0 : i32
    return %arg0, %c0_i32, %c0_i32_0 : i32, i32, i32
  }
}

</mosaic_0001>

<llo_original>
// kernel: hand_classify_forward.1
$region0: #{hand_classify_forward.1}
  #allocation0 [shape = 'u32[]', space=smem, size = 0x4, offset = 0x4, fixed_abs, tag = 'smem constant byte address 0x4 - core index']
  #allocation1 [shape = 'u32[144,128]{1,0:T(1,128)}', space=vmem, size = 0x12000, scoped, tag = 'internal scratch']
  #allocation2 [shape = 'f32[10,726]{1,0:T(8,128)}', space=vmem, size = 0xc000, scoped, tag = 'scratch operand']
  #allocation3 [shape = 'f32[10,169]{1,0:T(8,128)}', space=vmem, size = 0x4000, scoped, tag = 'scratch operand']
  #allocation4 [shape = 'f32[10,127]{1,0:T(8,128)}', space=vmem, size = 0x2000, scoped, tag = 'scratch operand']
  #allocation5 [shape = 'f32[10,25]{1,0:T(8,128)}', space=vmem, size = 0x2000, scoped, tag = 'scratch operand']
  %s0 = inlined_call_operand.vmem [shape: f32[2,1,784], index: 0, kind: input, shape index: {}]
  %s1 = inlined_call_operand.vmem [shape: f32[9,10,1], index: 1, kind: input, shape index: {}]
  %s2 = inlined_call_operand.vmem [shape: f32[10,1], index: 2, kind: input, shape index: {}]
  %s3 = inlined_call_operand.vmem [shape: f32[16,10,10], index: 3, kind: input, shape index: {}]
  %s4 = inlined_call_operand.vmem [shape: f32[10,1], index: 4, kind: input, shape index: {}]
  %s5 = inlined_call_operand.vmem [shape: f32[697,169], index: 5, kind: input, shape index: {}]
  %s6 = inlined_call_operand.vmem [shape: f32[113,25], index: 6, kind: input, shape index: {}]
  %s7 = inlined_call_operand.vmem [shape: f32[10,25,50], index: 7, kind: input, shape index: {}]
  %s8 = inlined_call_operand.vmem [shape: f32[1,50], index: 8, kind: input, shape index: {}]
  %s9 = inlined_call_operand.vmem [shape: f32[50,10], index: 9, kind: input, shape index: {}]
  %s10 = inlined_call_operand.vmem [shape: f32[1,10], index: 10, kind: input, shape index: {}]
  %s11 = inlined_call_operand.hbm [shape: f32[2,1,10], index: 11, kind: output, shape index: {}]
  %s12 = sld [smem:[#allocation0]]
  $region77: #{hand_classify_forward.1} parent=0
    _
  %s14 = ssub.s32 1, %s12
  %s15 = scalar_select 0, %s14, %s12
  $region1: #{hand_classify_forward.1} parent=0
    #allocation6 [shape = 'u8[1024]{0}', space=vmem, size = 0x400, scoped, tag = 'output window, operand 0']
    #allocation7 [shape = 's32[2]{0}', space=sflag, size = 0x8, scoped, tag = 'scoped memory for hand_classify_forward.1']
    %16 = vsyncpa [#allocation7], 0
    %s17 = scalar_lea.sflag [#allocation7], 1
    %18 = vsyncpa %s17, 0
    loop: start=0, step=1, limit=4
    $region2: #{hand_classify_forward.1} parent=1 // loop_pre_header
      _
    $region3: #{hand_classify_forward.1} parent=1 // loop_header
      %s20 = sphi 0, %s24
      %p21 = scmp.ge.s32.totalorder %s20, 4
      %s30 = sphi 0, %s32
      %s33 = sphi 0, %s30
      %s34 = sphi 0, %s33
      %s50 = sphi 0, %s34
      %s54 = sphi 0, %s54
      %s56 = sphi 0, %s54
      %s57 = sphi 0, %s56
      %s71 = sphi 0, %s57
      %s75 = sphi 0, %s75
      %s77 = sphi 0, %s75
      %s78 = sphi 0, %s77
      %s92 = sphi 0, %s78
      %s96 = sphi 0, %s96
      %s98 = sphi 0, %s96
      %s99 = sphi 0, %s98
      %s113 = sphi 0, %s99
      %s117 = sphi 0, %s117
      %s119 = sphi 0, %s117
      %s120 = sphi 0, %s119
      %s134 = sphi 0, %s120
      %s138 = sphi 0, %s138
      %s140 = sphi 0, %s138
      %s141 = sphi 0, %s140
      %s155 = sphi 0, %s141
      %s159 = sphi 0, %s159
      %s161 = sphi 0, %s159
      %s162 = sphi 0, %s161
      %s176 = sphi 0, %s162
      %s180 = sphi 0, %s180
      %s182 = sphi 0, %s180
      %s183 = sphi 0, %s182
      %s197 = sphi 0, %s183
      %s201 = sphi 0, %s201
      %s203 = sphi 0, %s201
      %s204 = sphi 0, %s203
      %s218 = sphi 0, %s204
      %s222 = sphi 0, %s222
      %s224 = sphi 0, %s222
      %s225 = sphi 0, %s224
      %s239 = sphi 0, %s225
      %s243 = sphi 0, %s243
      %s245 = sphi 0, %s243
      %s246 = sphi 0, %s245
      %s260 = sphi 0, %s246
      %s266 = sphi 0, %s268
      %s269 = sphi 0, %s266
      %s270 = sphi 0, %s269
      %s286 = sphi 0, %s270
    $region4: #{hand_classify_forward.1} parent=1 // loop_header_branch
      %23 = sbr.rel (%p21) target = $region8
    $region5: #{hand_classify_forward.1} parent=1 // loop_body
      %s25 = ssub.s32 %s20, 1
      %s26 = ssub.s32 %s20, 2
      %s27 = sadd.s32 %s20, 1
      %s28 = ssub.s32 %s20, %s27
      %p29 = scmp.eq.s32.totalorder %s28, 0
      %s31 = sadd.s32 %s30, 1
      %s32 = scalar_select %p29, %s30, %s31
      %p35 = pneg %p29
      %p36 = scmp.eq.s32.totalorder %s20, 1
      %p37 = por %p35, %p36
      %p38 = scmp.ne.s32.totalorder %s30, %s33
      %p39 = scmp.eq.s32.totalorder %s20, 0
      %p40 = por %p38, %p39
      %p41 = scmp.ne.s32.totalorder %s30, %s33
      %p42 = scmp.eq.s32.totalorder %s25, 1
      %p43 = por %p41, %p42
      %p44 = scmp.ne.s32.totalorder %s33, %s34
      %p45 = scmp.eq.s32.totalorder %s25, 0
      %p46 = por %p44, %p45
      %p47 = scmp.ne.s32.totalorder %s33, %s34
      %p48 = scmp.eq.s32.totalorder %s26, 1
      %p49 = por %p47, %p48
      %p51 = scmp.ne.s32.totalorder %s34, %s50
      %p52 = scmp.eq.s32.totalorder %s26, 0
      %p53 = por %p51, %p52
      %s55 = sadd.s32 %s54, 1
      %p58 = scmp.eq.s32.totalorder %s20, 1
      %p59 = scmp.ne.s32.totalorder %s54, %s56
      %p60 = scmp.eq.s32.totalorder %s20, 0
      %p61 = por %p59, %p60
      %p62 = scmp.ne.s32.totalorder %s54, %s56
      %p63 = scmp.eq.s32.totalorder %s25, 1
      %p64 = por %p62, %p63
      %p65 = scmp.ne.s32.totalorder %s56, %s57
      %p66 = scmp.eq.s32.totalorder %s25, 0
      %p67 = por %p65, %p66
      %p68 = scmp.ne.s32.totalorder %s56, %s57
      %p69 = scmp.eq.s32.totalorder %s26, 1
      %p70 = por %p68, %p69
      %p72 = scmp.ne.s32.totalorder %s57, %s71
      %p73 = scmp.eq.s32.totalorder %s26, 0
      %p74 = por %p72, %p73
      %s76 = sadd.s32 %s75, 1
      %p79 = scmp.eq.s32.totalorder %s20, 1
      %p80 = scmp.ne.s32.totalorder %s75, %s77
      %p81 = scmp.eq.s32.totalorder %s20, 0
      %p82 = por %p80, %p81
      %p83 = scmp.ne.s32.totalorder %s75, %s77
      %p84 = scmp.eq.s32.totalorder %s25, 1
      %p85 = por %p83, %p84
      %p86 = scmp.ne.s32.totalorder %s77, %s78
      %p87 = scmp.eq.s32.totalorder %s25, 0
      %p88 = por %p86, %p87
      %p89 = scmp.ne.s32.totalorder %s77, %s78
      %p90 = scmp.eq.s32.totalorder %s26, 1
      %p91 = por %p89, %p90
      %p93 = scmp.ne.s32.totalorder %s78, %s92
      %p94 = scmp.eq.s32.totalorder %s26, 0
      %p95 = por %p93, %p94
      %s97 = sadd.s32 %s96, 1
      %p100 = scmp.eq.s32.totalorder %s20, 1
      %p101 = scmp.ne.s32.totalorder %s96, %s98
      %p102 = scmp.eq.s32.totalorder %s20, 0
      %p103 = por %p101, %p102
      %p104 = scmp.ne.s32.totalorder %s96, %s98
      %p105 = scmp.eq.s32.totalorder %s25, 1
      %p106 = por %p104, %p105
      %p107 = scmp.ne.s32.totalorder %s98, %s99
      %p108 = scmp.eq.s32.totalorder %s25, 0
      %p109 = por %p107, %p108
      %p110 = scmp.ne.s32.totalorder %s98, %s99
      %p111 = scmp.eq.s32.totalorder %s26, 1
      %p112 = por %p110, %p111
      %p114 = scmp.ne.s32.totalorder %s99, %s113
      %p115 = scmp.eq.s32.totalorder %s26, 0
      %p116 = por %p114, %p115
      %s118 = sadd.s32 %s117, 1
      %p121 = scmp.eq.s32.totalorder %s20, 1
      %p122 = scmp.ne.s32.totalorder %s117, %s119
      %p123 = scmp.eq.s32.totalorder %s20, 0
      %p124 = por %p122, %p123
      %p125 = scmp.ne.s32.totalorder %s117, %s119
      %p126 = scmp.eq.s32.totalorder %s25, 1
      %p127 = por %p125, %p126
      %p128 = scmp.ne.s32.totalorder %s119, %s120
      %p129 = scmp.eq.s32.totalorder %s25, 0
      %p130 = por %p128, %p129
      %p131 = scmp.ne.s32.totalorder %s119, %s120
      %p132 = scmp.eq.s32.totalorder %s26, 1
      %p133 = por %p131, %p132
      %p135 = scmp.ne.s32.totalorder %s120, %s134
      %p136 = scmp.eq.s32.totalorder %s26, 0
      %p137 = por %p135, %p136
      %s139 = sadd.s32 %s138, 1
      %p142 = scmp.eq.s32.totalorder %s20, 1
      %p143 = scmp.ne.s32.totalorder %s138, %s140
      %p144 = scmp.eq.s32.totalorder %s20, 0
      %p145 = por %p143, %p144
      %p146 = scmp.ne.s32.totalorder %s138, %s140
      %p147 = scmp.eq.s32.totalorder %s25, 1
      %p148 = por %p146, %p147
      %p149 = scmp.ne.s32.totalorder %s140, %s141
      %p150 = scmp.eq.s32.totalorder %s25, 0
      %p151 = por %p149, %p150
      %p152 = scmp.ne.s32.totalorder %s140, %s141
      %p153 = scmp.eq.s32.totalorder %s26, 1
      %p154 = por %p152, %p153
      %p156 = scmp.ne.s32.totalorder %s141, %s155
      %p157 = scmp.eq.s32.totalorder %s26, 0
      %p158 = por %p156, %p157
      %s160 = sadd.s32 %s159, 1
      %p163 = scmp.eq.s32.totalorder %s20, 1
      %p164 = scmp.ne.s32.totalorder %s159, %s161
      %p165 = scmp.eq.s32.totalorder %s20, 0
      %p166 = por %p164, %p165
      %p167 = scmp.ne.s32.totalorder %s159, %s161
      %p168 = scmp.eq.s32.totalorder %s25, 1
      %p169 = por %p167, %p168
      %p170 = scmp.ne.s32.totalorder %s161, %s162
      %p171 = scmp.eq.s32.totalorder %s25, 0
      %p172 = por %p170, %p171
      %p173 = scmp.ne.s32.totalorder %s161, %s162
      %p174 = scmp.eq.s32.totalorder %s26, 1
      %p175 = por %p173, %p174
      %p177 = scmp.ne.s32.totalorder %s162, %s176
      %p178 = scmp.eq.s32.totalorder %s26, 0
      %p179 = por %p177, %p178
      %s181 = sadd.s32 %s180, 1
      %p184 = scmp.eq.s32.totalorder %s20, 1
      %p185 = scmp.ne.s32.totalorder %s180, %s182
      %p186 = scmp.eq.s32.totalorder %s20, 0
      %p187 = por %p185, %p186
      %p188 = scmp.ne.s32.totalorder %s180, %s182
      %p189 = scmp.eq.s32.totalorder %s25, 1
      %p190 = por %p188, %p189
      %p191 = scmp.ne.s32.totalorder %s182, %s183
      %p192 = scmp.eq.s32.totalorder %s25, 0
      %p193 = por %p191, %p192
      %p194 = scmp.ne.s32.totalorder %s182, %s183
      %p195 = scmp.eq.s32.totalorder %s26, 1
      %p196 = por %p194, %p195
      %p198 = scmp.ne.s32.totalorder %s183, %s197
      %p199 = scmp.eq.s32.totalorder %s26, 0
      %p200 = por %p198, %p199
      %s202 = sadd.s32 %s201, 1
      %p205 = scmp.eq.s32.totalorder %s20, 1
      %p206 = scmp.ne.s32.totalorder %s201, %s203
      %p207 = scmp.eq.s32.totalorder %s20, 0
      %p208 = por %p206, %p207
      %p209 = scmp.ne.s32.totalorder %s201, %s203
      %p210 = scmp.eq.s32.totalorder %s25, 1
      %p211 = por %p209, %p210
      %p212 = scmp.ne.s32.totalorder %s203, %s204
      %p213 = scmp.eq.s32.totalorder %s25, 0
      %p214 = por %p212, %p213
      %p215 = scmp.ne.s32.totalorder %s203, %s204
      %p216 = scmp.eq.s32.totalorder %s26, 1
      %p217 = por %p215, %p216
      %p219 = scmp.ne.s32.totalorder %s204, %s218
      %p220 = scmp.eq.s32.totalorder %s26, 0
      %p221 = por %p219, %p220
      %s223 = sadd.s32 %s222, 1
      %p226 = scmp.eq.s32.totalorder %s20, 1
      %p227 = scmp.ne.s32.totalorder %s222, %s224
      %p228 = scmp.eq.s32.totalorder %s20, 0
      %p229 = por %p227, %p228
      %p230 = scmp.ne.s32.totalorder %s222, %s224
      %p231 = scmp.eq.s32.totalorder %s25, 1
      %p232 = por %p230, %p231
      %p233 = scmp.ne.s32.totalorder %s224, %s225
      %p234 = scmp.eq.s32.totalorder %s25, 0
      %p235 = por %p233, %p234
      %p236 = scmp.ne.s32.totalorder %s224, %s225
      %p237 = scmp.eq.s32.totalorder %s26, 1
      %p238 = por %p236, %p237
      %p240 = scmp.ne.s32.totalorder %s225, %s239
      %p241 = scmp.eq.s32.totalorder %s26, 0
      %p242 = por %p240, %p241
      %s244 = sadd.s32 %s243, 1
      %p247 = scmp.eq.s32.totalorder %s20, 1
      %p248 = scmp.ne.s32.totalorder %s243, %s245
      %p249 = scmp.eq.s32.totalorder %s20, 0
      %p250 = por %p248, %p249
      %p251 = scmp.ne.s32.totalorder %s243, %s245
      %p252 = scmp.eq.s32.totalorder %s25, 1
      %p253 = por %p251, %p252
      %p254 = scmp.ne.s32.totalorder %s245, %s246
      %p255 = scmp.eq.s32.totalorder %s25, 0
      %p256 = por %p254, %p255
      %p257 = scmp.ne.s32.totalorder %s245, %s246
      %p258 = scmp.eq.s32.totalorder %s26, 1
      %p259 = por %p257, %p258
      %p261 = scmp.ne.s32.totalorder %s246, %s260
      %p262 = scmp.eq.s32.totalorder %s26, 0
      %p263 = por %p261, %p262
      %s264 = ssub.s32 %s20, %s27
      %p265 = scmp.eq.s32.totalorder %s264, 0
      %s267 = sadd.s32 %s266, 1
      %s268 = scalar_select %p265, %s266, %s267
      %p271 = pneg %p265
      %p272 = scmp.eq.s32.totalorder %s20, 1
      %p273 = por %p271, %p272
      %p274 = scmp.ne.s32.totalorder %s266, %s269
      %p275 = scmp.eq.s32.totalorder %s20, 0
      %p276 = por %p274, %p275
      %p277 = scmp.ne.s32.totalorder %s266, %s269
      %p278 = scmp.eq.s32.totalorder %s25, 1
      %p279 = por %p277, %p278
      %p280 = scmp.ne.s32.totalorder %s269, %s270
      %p281 = scmp.eq.s32.totalorder %s25, 0
      %p282 = por %p280, %p281
      %p283 = scmp.ne.s32.totalorder %s269, %s270
      %p284 = scmp.eq.s32.totalorder %s26, 1
      %p285 = por %p283, %p284
      %p287 = scmp.ne.s32.totalorder %s270, %s286
      %p288 = scmp.eq.s32.totalorder %s26, 0
      %p289 = por %p287, %p288
      %p290 = scmp.le.s32.totalorder 1, %s20
      %p291 = scmp.lt.s32.totalorder %s20, 3
      %p292 = pnand %p290, %p291
      %p293 = pneg %p292
      // Predicated region
      $region9: #{hand_classify_forward.1} parent=5 // pred_check
        _
      $region10: #{hand_classify_forward.1} parent=5 // pred_check_branch
        %295 = sbr.rel (%p292) target = $region12
      $region11: #{hand_classify_forward.1} parent=5 // pred_region
        %s296 = ssub.s32 %s20, 1
        // Predicated region
        $region13: #{hand_classify_forward.1} parent=11 // pred_check
          %p297 = pneg %p67
        $region14: #{hand_classify_forward.1} parent=11 // pred_check_branch
          %299 = sbr.rel (%p297) target = $region16
        $region15: #{hand_classify_forward.1} parent=11 // pred_region
          _
        $region16: #{hand_classify_forward.1} parent=11 // pred_fallthru
          _
        // Predicated region
        $region17: #{hand_classify_forward.1} parent=11 // pred_check
          %p300 = pneg %p88
        $region18: #{hand_classify_forward.1} parent=11 // pred_check_branch
          %302 = sbr.rel (%p300) target = $region20
        $region19: #{hand_classify_forward.1} parent=11 // pred_region
          _
        $region20: #{hand_classify_forward.1} parent=11 // pred_fallthru
          _
        // Predicated region
        $region21: #{hand_classify_forward.1} parent=11 // pred_check
          %p303 = pneg %p109
        $region22: #{hand_classify_forward.1} parent=11 // pred_check_branch
          %305 = sbr.rel (%p303) target = $region24
        $region23: #{hand_classify_forward.1} parent=11 // pred_region
          _
        $region24: #{hand_classify_forward.1} parent=11 // pred_fallthru
          _
        // Predicated region
        $region25: #{hand_classify_forward.1} parent=11 // pred_check
          %p306 = pneg %p130
        $region26: #{hand_classify_forward.1} parent=11 // pred_check_branch
          %308 = sbr.rel (%p306) target = $region28
        $region27: #{hand_classify_forward.1} parent=11 // pred_region
          _
        $region28: #{hand_classify_forward.1} parent=11 // pred_fallthru
          _
        // Predicated region
        $region29: #{hand_classify_forward.1} parent=11 // pred_check
          %p309 = pneg %p151
        $region30: #{hand_classify_forward.1} parent=11 // pred_check_branch
          %311 = sbr.rel (%p309) target = $region32
        $region31: #{hand_classify_forward.1} parent=11 // pred_region
          _
        $region32: #{hand_classify_forward.1} parent=11 // pred_fallthru
          _
        // Predicated region
        $region33: #{hand_classify_forward.1} parent=11 // pred_check
          %p312 = pneg %p172
        $region34: #{hand_classify_forward.1} parent=11 // pred_check_branch
          %314 = sbr.rel (%p312) target = $region36
        $region35: #{hand_classify_forward.1} parent=11 // pred_region
          _
        $region36: #{hand_classify_forward.1} parent=11 // pred_fallthru
          _
        // Predicated region
        $region37: #{hand_classify_forward.1} parent=11 // pred_check
          %p315 = pneg %p193
        $region38: #{hand_classify_forward.1} parent=11 // pred_check_branch
          %317 = sbr.rel (%p315) target = $region40
        $region39: #{hand_classify_forward.1} parent=11 // pred_region
          _
        $region40: #{hand_classify_forward.1} parent=11 // pred_fallthru
          _
        // Predicated region
        $region41: #{hand_classify_forward.1} parent=11 // pred_check
          %p318 = pneg %p214
        $region42: #{hand_classify_forward.1} parent=11 // pred_check_branch
          %320 = sbr.rel (%p318) target = $region44
        $region43: #{hand_classify_forward.1} parent=11 // pred_region
          _
        $region44: #{hand_classify_forward.1} parent=11 // pred_fallthru
          _
        // Predicated region
        $region45: #{hand_classify_forward.1} parent=11 // pred_check
          %p321 = pneg %p235
        $region46: #{hand_classify_forward.1} parent=11 // pred_check_branch
          %323 = sbr.rel (%p321) target = $region48
        $region47: #{hand_classify_forward.1} parent=11 // pred_region
          _
        $region48: #{hand_classify_forward.1} parent=11 // pred_fallthru
          _
        // Predicated region
        $region49: #{hand_classify_forward.1} parent=11 // pred_check
          %p324 = pneg %p256
        $region50: #{hand_classify_forward.1} parent=11 // pred_check_branch
          %326 = sbr.rel (%p324) target = $region52
        $region51: #{hand_classify_forward.1} parent=11 // pred_region
          _
        $region52: #{hand_classify_forward.1} parent=11 // pred_fallthru
          _
      $region12: #{hand_classify_forward.1} parent=5 // pred_fallthru
        _
      %p327 = scmp.lt.s32.totalorder %s20, 2
      // Predicated region
      $region53: #{hand_classify_forward.1} parent=5 // pred_check
        %p328 = pneg %p327
      $region54: #{hand_classify_forward.1} parent=5 // pred_check_branch
        %330 = sbr.rel (%p328) target = $region56
      $region55: #{hand_classify_forward.1} parent=5 // pred_region
        // Predicated region
        $region57: #{hand_classify_forward.1} parent=55 // pred_check
          %p331 = pneg %p40
        $region58: #{hand_classify_forward.1} parent=55 // pred_check_branch
          %333 = sbr.rel (%p331) target = $region60
        $region59: #{hand_classify_forward.1} parent=55 // pred_region
          %p334 = scmp.lt.s32.totalorder %s20, 1
          %s335 = scalar_select %p334, %s20, 1
          %s336 = smul.addr %s335, 7
          %s337 = scalar_lea.vmem %s0, %s336
        $region60: #{hand_classify_forward.1} parent=55 // pred_fallthru
          _
      $region56: #{hand_classify_forward.1} parent=5 // pred_fallthru
        _
      %p338 = scmp.le.s32.totalorder 1, %s20
      %p339 = scmp.lt.s32.totalorder %s20, 3
      %p340 = pnand %p338, %p339
      %p341 = pneg %p340
      // Predicated region
      $region61: #{hand_classify_forward.1} parent=5 // pred_check
        _
      $region62: #{hand_classify_forward.1} parent=5 // pred_check_branch
        %343 = sbr.rel (%p340) target = $region64
      $region63: #{hand_classify_forward.1} parent=5 // pred_region
        %s344 = ssub.s32 %s20, 1
        %p345 = scmp.lt.s32.totalorder %s25, 1
        %s346 = scalar_select %p345, %s25, 1
        %s347 = smul.addr %s346, 7
        %s348 = scalar_lea.vmem %s0, %s347
        %p349 = pneg %p46
        %p350 = pneg %p43
        %p351 = pneg %p67
        %p352 = pneg %p64
        %p353 = pneg %p88
        %p354 = pneg %p85
        %p355 = pneg %p109
        %p356 = pneg %p106
        %p357 = pneg %p130
        %p358 = pneg %p127
        %p359 = pneg %p151
        %p360 = pneg %p148
        %p361 = pneg %p172
        %p362 = pneg %p169
        %p363 = pneg %p193
        %p364 = pneg %p190
        %p365 = pneg %p214
        %p366 = pneg %p211
        %p367 = pneg %p235
        %p368 = pneg %p232
        %p369 = pneg %p256
        %p370 = pneg %p253
        %p371 = pneg %p282
        %p372 = pneg %p279
        %s373 = sand.u32 %s269, 1
        %s374 = scalar_lea.sflag [#allocation7], %s373
        %s375 = sand.u32 %s269, 1
        %s376 = scalar_lea.vmem [#allocation6], %s375
        %p377 = scmp.lt.s32.totalorder %s25, 1
        %s378 = scalar_select %p377, %s25, 1
        %s379 = smul.addr %s378, 7
        %s380 = scalar_lea.vmem %s0, %s379
        %v381 = vld [vmem:[%s380] sm:$0x3f]
        %v382 = vld [vmem:[%s1] sm:$0xff]
        %v383 = vld [vmem:[%s1 + $0x8] sm:$0x3]
        %385 = vset.pattern.permute.xlu0 0
        %386 = vperm.xlu0 %385, %v382
        %v387 = vpop.permute.xlu0 %386
        %390 = vset.pattern.permute.xlu0 0
        %391 = vperm.xlu0 %390, %v383
        %v392 = vpop.permute.xlu0 %391
        %v395 = vlaneseq
        %v396 = vshrl.u32 %v395, 7
        %v397 = vsub.s32 0, %v396
        %v398 = vrot.slane %v381, %v397
        %v399 = vlaneseq
        %v400 = vshrl.u32 %v399, 7
        %v401 = vsub.s32 1, %v400
        %v402 = vrot.slane %v381, %v401
        %v403 = vlaneseq
        %v404 = vshrl.u32 %v403, 7
        %v405 = vsub.s32 2, %v404
        %v406 = vrot.slane %v381, %v405
        %v407 = vlaneseq
        %v408 = vshrl.u32 %v407, 7
        %v409 = vsub.s32 3, %v408
        %v410 = vrot.slane %v381, %v409
        %v411 = vlaneseq
        %v412 = vshrl.u32 %v411, 7
        %v413 = vsub.s32 4, %v412
        %v414 = vrot.slane %v381, %v413
        %v415 = vlaneseq
        %v416 = vshrl.u32 %v415, 7
        %v417 = vsub.s32 5, %v416
        %v418 = vrot.slane %v381, %v417
        %v425 = vmul.f32 %v387, %v398
        %v426 = vmul.f32 %v387, %v402
        %v427 = vmul.f32 %v387, %v406
        %v428 = vmul.f32 %v387, %v410
        %v429 = vmul.f32 %v387, %v414
        %v430 = vmul.f32 %v387, %v418
        %v431 = vmul.f32 %v392, %v398
        %v432 = vmul.f32 %v392, %v402
        %v433 = vmul.f32 %v392, %v406
        %v434 = vmul.f32 %v392, %v410
        %v435 = vmul.f32 %v392, %v414
        %v436 = vmul.f32 %v392, %v418
        %v437 = vadd.f32 %v425, 0.0
        %v438 = vadd.f32 %v426, 0.0
        %v439 = vadd.f32 %v427, 0.0
        %v440 = vadd.f32 %v428, 0.0
        %v441 = vadd.f32 %v429, 0.0
        %v442 = vadd.f32 %v430, 0.0
        %v443 = vadd.f32 %v431, 0.0
        %v444 = vadd.f32 %v432, 0.0
        %v445 = vadd.f32 %v433, 0.0
        %v446 = vadd.f32 %v434, 0.0
        %v447 = vadd.f32 %v435, 0.0
        %v448 = vadd.f32 %v436, 0.0
        %s449 = scalar_lea.vmem %s1, 16
        %v450 = vld [vmem:[%s449] sm:$0xff]
        %v451 = vld [vmem:[%s449 + $0x8] sm:$0x3]
        %453 = vset.pattern.permute.xlu0 0
        %454 = vperm.xlu0 %453, %v450
        %v455 = vpop.permute.xlu0 %454
        %458 = vset.pattern.permute.xlu0 0
        %459 = vperm.xlu0 %458, %v451
        %v460 = vpop.permute.xlu0 %459
        %v462 = vmul.f32 %v455, %v398
        %v463 = vmul.f32 %v455, %v402
        %v464 = vmul.f32 %v455, %v406
        %v465 = vmul.f32 %v455, %v410
        %v466 = vmul.f32 %v455, %v414
        %v467 = vmul.f32 %v455, %v418
        %v468 = vmul.f32 %v460, %v398
        %v469 = vmul.f32 %v460, %v402
        %v470 = vmul.f32 %v460, %v406
        %v471 = vmul.f32 %v460, %v410
        %v472 = vmul.f32 %v460, %v414
        %v473 = vmul.f32 %v460, %v418
        %486 = vrot.lane.b32.xlu0 %v462, 127
        %v487 = vpop.permute.xlu0 %486
        %488 = vrot.lane.b32.xlu0 %v463, 127
        %v489 = vpop.permute.xlu0 %488
        %490 = vrot.lane.b32.xlu0 %v464, 127
        %v491 = vpop.permute.xlu0 %490
        %492 = vrot.lane.b32.xlu0 %v465, 127
        %v493 = vpop.permute.xlu0 %492
        %494 = vrot.lane.b32.xlu0 %v466, 127
        %v495 = vpop.permute.xlu0 %494
        %496 = vrot.lane.b32.xlu0 %v467, 127
        %v497 = vpop.permute.xlu0 %496
        %498 = vrot.lane.b32.xlu0 %v468, 127
        %v499 = vpop.permute.xlu0 %498
        %500 = vrot.lane.b32.xlu0 %v469, 127
        %v501 = vpop.permute.xlu0 %500
        %502 = vrot.lane.b32.xlu0 %v470, 127
        %v503 = vpop.permute.xlu0 %502
        %504 = vrot.lane.b32.xlu0 %v471, 127
        %v505 = vpop.permute.xlu0 %504
        %506 = vrot.lane.b32.xlu0 %v472, 127
        %v507 = vpop.permute.xlu0 %506
        %508 = vrot.lane.b32.xlu0 %v473, 127
        %v509 = vpop.permute.xlu0 %508
        %vm510 = vcmask 1039360
        %v511 = vsel %vm510, %v487, %v489
        %v512 = vsel %vm510, %v489, %v491
        %v513 = vsel %vm510, %v491, %v493
        %v514 = vsel %vm510, %v493, %v495
        %v515 = vsel %vm510, %v495, %v497
        %v516 = vsel %vm510, %v499, %v501
        %v517 = vsel %vm510, %v501, %v503
        %v518 = vsel %vm510, %v503, %v505
        %v519 = vsel %vm510, %v505, %v507
        %v520 = vsel %vm510, %v507, %v509
        %v533 = vadd.f32 %v437, %v511
        %v534 = vadd.f32 %v438, %v512
        %v535 = vadd.f32 %v439, %v513
        %v536 = vadd.f32 %v440, %v514
        %v537 = vadd.f32 %v441, %v515
        %v538 = vadd.f32 %v442, %v497
        %v539 = vadd.f32 %v443, %v516
        %v540 = vadd.f32 %v444, %v517
        %v541 = vadd.f32 %v445, %v518
        %v542 = vadd.f32 %v446, %v519
        %v543 = vadd.f32 %v447, %v520
        %v544 = vadd.f32 %v448, %v509
        %s545 = scalar_lea.vmem %s1, 32
        %v546 = vld [vmem:[%s545] sm:$0xff]
        %v547 = vld [vmem:[%s545 + $0x8] sm:$0x3]
        %549 = vset.pattern.permute.xlu0 0
        %550 = vperm.xlu0 %549, %v546
        %v551 = vpop.permute.xlu0 %550
        %554 = vset.pattern.permute.xlu0 0
        %555 = vperm.xlu0 %554, %v547
        %v556 = vpop.permute.xlu0 %555
        %v558 = vmul.f32 %v551, %v398
        %v559 = vmul.f32 %v551, %v402
        %v560 = vmul.f32 %v551, %v406
        %v561 = vmul.f32 %v551, %v410
        %v562 = vmul.f32 %v551, %v414
        %v563 = vmul.f32 %v551, %v418
        %v564 = vmul.f32 %v556, %v398
        %v565 = vmul.f32 %v556, %v402
        %v566 = vmul.f32 %v556, %v406
        %v567 = vmul.f32 %v556, %v410
        %v568 = vmul.f32 %v556, %v414
        %v569 = vmul.f32 %v556, %v418
        %582 = vrot.lane.b32.xlu0 %v558, 126
        %v583 = vpop.permute.xlu0 %582
        %584 = vrot.lane.b32.xlu0 %v559, 126
        %v585 = vpop.permute.xlu0 %584
        %586 = vrot.lane.b32.xlu0 %v560, 126
        %v587 = vpop.permute.xlu0 %586
        %588 = vrot.lane.b32.xlu0 %v561, 126
        %v589 = vpop.permute.xlu0 %588
        %590 = vrot.lane.b32.xlu0 %v562, 126
        %v591 = vpop.permute.xlu0 %590
        %592 = vrot.lane.b32.xlu0 %v563, 126
        %v593 = vpop.permute.xlu0 %592
        %594 = vrot.lane.b32.xlu0 %v564, 126
        %v595 = vpop.permute.xlu0 %594
        %596 = vrot.lane.b32.xlu0 %v565, 126
        %v597 = vpop.permute.xlu0 %596
        %598 = vrot.lane.b32.xlu0 %v566, 126
        %v599 = vpop.permute.xlu0 %598
        %600 = vrot.lane.b32.xlu0 %v567, 126
        %v601 = vpop.permute.xlu0 %600
        %602 = vrot.lane.b32.xlu0 %v568, 126
        %v603 = vpop.permute.xlu0 %602
        %604 = vrot.lane.b32.xlu0 %v569, 126
        %v605 = vpop.permute.xlu0 %604
        %vm606 = vcmask 1031168
        %v607 = vsel %vm606, %v583, %v585
        %v608 = vsel %vm606, %v585, %v587
        %v609 = vsel %vm606, %v587, %v589
        %v610 = vsel %vm606, %v589, %v591
        %v611 = vsel %vm606, %v591, %v593
        %v612 = vsel %vm606, %v595, %v597
        %v613 = vsel %vm606, %v597, %v599
        %v614 = vsel %vm606, %v599, %v601
        %v615 = vsel %vm606, %v601, %v603
        %v616 = vsel %vm606, %v603, %v605
        %v629 = vadd.f32 %v533, %v607
        %v630 = vadd.f32 %v534, %v608
        %v631 = vadd.f32 %v535, %v609
        %v632 = vadd.f32 %v536, %v610
        %v633 = vadd.f32 %v537, %v611
        %v634 = vadd.f32 %v538, %v593
        %v635 = vadd.f32 %v539, %v612
        %v636 = vadd.f32 %v540, %v613
        %v637 = vadd.f32 %v541, %v614
        %v638 = vadd.f32 %v542, %v615
        %v639 = vadd.f32 %v543, %v616
        %v640 = vadd.f32 %v544, %v605
        %s641 = scalar_lea.vmem %s1, 48
        %v642 = vld [vmem:[%s641] sm:$0xff]
        %v643 = vld [vmem:[%s641 + $0x8] sm:$0x3]
        %645 = vset.pattern.permute.xlu0 0
        %646 = vperm.xlu0 %645, %v642
        %v647 = vpop.permute.xlu0 %646
        %650 = vset.pattern.permute.xlu0 0
        %651 = vperm.xlu0 %650, %v643
        %v652 = vpop.permute.xlu0 %651
        %v654 = vmul.f32 %v647, %v398
        %v655 = vmul.f32 %v647, %v402
        %v656 = vmul.f32 %v647, %v406
        %v657 = vmul.f32 %v647, %v410
        %v658 = vmul.f32 %v647, %v414
        %v659 = vmul.f32 %v647, %v418
        %v660 = vmul.f32 %v652, %v398
        %v661 = vmul.f32 %v652, %v402
        %v662 = vmul.f32 %v652, %v406
        %v663 = vmul.f32 %v652, %v410
        %v664 = vmul.f32 %v652, %v414
        %v665 = vmul.f32 %v652, %v418
        %678 = vrot.lane.b32.xlu0 %v654, 100
        %v679 = vpop.permute.xlu0 %678
        %680 = vrot.lane.b32.xlu0 %v655, 100
        %v681 = vpop.permute.xlu0 %680
        %682 = vrot.lane.b32.xlu0 %v656, 100
        %v683 = vpop.permute.xlu0 %682
        %684 = vrot.lane.b32.xlu0 %v657, 100
        %v685 = vpop.permute.xlu0 %684
        %686 = vrot.lane.b32.xlu0 %v658, 100
        %v687 = vpop.permute.xlu0 %686
        %688 = vrot.lane.b32.xlu0 %v659, 100
        %v689 = vpop.permute.xlu0 %688
        %690 = vrot.lane.b32.xlu0 %v660, 100
        %v691 = vpop.permute.xlu0 %690
        %692 = vrot.lane.b32.xlu0 %v661, 100
        %v693 = vpop.permute.xlu0 %692
        %694 = vrot.lane.b32.xlu0 %v662, 100
        %v695 = vpop.permute.xlu0 %694
        %696 = vrot.lane.b32.xlu0 %v663, 100
        %v697 = vpop.permute.xlu0 %696
        %698 = vrot.lane.b32.xlu0 %v664, 100
        %v699 = vpop.permute.xlu0 %698
        %700 = vrot.lane.b32.xlu0 %v665, 100
        %v701 = vpop.permute.xlu0 %700
        %vm702 = vcmask 818176
        %v703 = vsel %vm702, %v679, %v681
        %v704 = vsel %vm702, %v681, %v683
        %v705 = vsel %vm702, %v683, %v685
        %v706 = vsel %vm702, %v685, %v687
        %v707 = vsel %vm702, %v687, %v689
        %v708 = vsel %vm702, %v691, %v693
        %v709 = vsel %vm702, %v693, %v695
        %v710 = vsel %vm702, %v695, %v697
        %v711 = vsel %vm702, %v697, %v699
        %v712 = vsel %vm702, %v699, %v701
        %v725 = vadd.f32 %v629, %v703
        %v726 = vadd.f32 %v630, %v704
        %v727 = vadd.f32 %v631, %v705
        %v728 = vadd.f32 %v632, %v706
        %v729 = vadd.f32 %v633, %v707
        %v730 = vadd.f32 %v634, %v689
        %v731 = vadd.f32 %v635, %v708
        %v732 = vadd.f32 %v636, %v709
        %v733 = vadd.f32 %v637, %v710
        %v734 = vadd.f32 %v638, %v711
        %v735 = vadd.f32 %v639, %v712
        %v736 = vadd.f32 %v640, %v701
        %s737 = scalar_lea.vmem %s1, 64
        %v738 = vld [vmem:[%s737] sm:$0xff]
        %v739 = vld [vmem:[%s737 + $0x8] sm:$0x3]
        %741 = vset.pattern.permute.xlu0 0
        %742 = vperm.xlu0 %741, %v738
        %v743 = vpop.permute.xlu0 %742
        %746 = vset.pattern.permute.xlu0 0
        %747 = vperm.xlu0 %746, %v739
        %v748 = vpop.permute.xlu0 %747
        %v750 = vmul.f32 %v743, %v398
        %v751 = vmul.f32 %v743, %v402
        %v752 = vmul.f32 %v743, %v406
        %v753 = vmul.f32 %v743, %v410
        %v754 = vmul.f32 %v743, %v414
        %v755 = vmul.f32 %v743, %v418
        %v756 = vmul.f32 %v748, %v398
        %v757 = vmul.f32 %v748, %v402
        %v758 = vmul.f32 %v748, %v406
        %v759 = vmul.f32 %v748, %v410
        %v760 = vmul.f32 %v748, %v414
        %v761 = vmul.f32 %v748, %v418
        %774 = vrot.lane.b32.xlu0 %v750, 99
        %v775 = vpop.permute.xlu0 %774
        %776 = vrot.lane.b32.xlu0 %v751, 99
        %v777 = vpop.permute.xlu0 %776
        %778 = vrot.lane.b32.xlu0 %v752, 99
        %v779 = vpop.permute.xlu0 %778
        %780 = vrot.lane.b32.xlu0 %v753, 99
        %v781 = vpop.permute.xlu0 %780
        %782 = vrot.lane.b32.xlu0 %v754, 99
        %v783 = vpop.permute.xlu0 %782
        %784 = vrot.lane.b32.xlu0 %v755, 99
        %v785 = vpop.permute.xlu0 %784
        %786 = vrot.lane.b32.xlu0 %v756, 99
        %v787 = vpop.permute.xlu0 %786
        %788 = vrot.lane.b32.xlu0 %v757, 99
        %v789 = vpop.permute.xlu0 %788
        %790 = vrot.lane.b32.xlu0 %v758, 99
        %v791 = vpop.permute.xlu0 %790
        %792 = vrot.lane.b32.xlu0 %v759, 99
        %v793 = vpop.permute.xlu0 %792
        %794 = vrot.lane.b32.xlu0 %v760, 99
        %v795 = vpop.permute.xlu0 %794
        %796 = vrot.lane.b32.xlu0 %v761, 99
        %v797 = vpop.permute.xlu0 %796
        %vm798 = vcmask 809984
        %v799 = vsel %vm798, %v775, %v777
        %v800 = vsel %vm798, %v777, %v779
        %v801 = vsel %vm798, %v779, %v781
        %v802 = vsel %vm798, %v781, %v783
        %v803 = vsel %vm798, %v783, %v785
        %v804 = vsel %vm798, %v787, %v789
        %v805 = vsel %vm798, %v789, %v791
        %v806 = vsel %vm798, %v791, %v793
        %v807 = vsel %vm798, %v793, %v795
        %v808 = vsel %vm798, %v795, %v797
        %v821 = vadd.f32 %v725, %v799
        %v822 = vadd.f32 %v726, %v800
        %v823 = vadd.f32 %v727, %v801
        %v824 = vadd.f32 %v728, %v802
        %v825 = vadd.f32 %v729, %v803
        %v826 = vadd.f32 %v730, %v785
        %v827 = vadd.f32 %v731, %v804
        %v828 = vadd.f32 %v732, %v805
        %v829 = vadd.f32 %v733, %v806
        %v830 = vadd.f32 %v734, %v807
        %v831 = vadd.f32 %v735, %v808
        %v832 = vadd.f32 %v736, %v797
        %s833 = scalar_lea.vmem %s1, 80
        %v834 = vld [vmem:[%s833] sm:$0xff]
        %v835 = vld [vmem:[%s833 + $0x8] sm:$0x3]
        %837 = vset.pattern.permute.xlu0 0
        %838 = vperm.xlu0 %837, %v834
        %v839 = vpop.permute.xlu0 %838
        %842 = vset.pattern.permute.xlu0 0
        %843 = vperm.xlu0 %842, %v835
        %v844 = vpop.permute.xlu0 %843
        %v846 = vmul.f32 %v839, %v398
        %v847 = vmul.f32 %v839, %v402
        %v848 = vmul.f32 %v839, %v406
        %v849 = vmul.f32 %v839, %v410
        %v850 = vmul.f32 %v839, %v414
        %v851 = vmul.f32 %v839, %v418
        %v852 = vmul.f32 %v844, %v398
        %v853 = vmul.f32 %v844, %v402
        %v854 = vmul.f32 %v844, %v406
        %v855 = vmul.f32 %v844, %v410
        %v856 = vmul.f32 %v844, %v414
        %v857 = vmul.f32 %v844, %v418
        %870 = vrot.lane.b32.xlu0 %v846, 98
        %v871 = vpop.permute.xlu0 %870
        %872 = vrot.lane.b32.xlu0 %v847, 98
        %v873 = vpop.permute.xlu0 %872
        %874 = vrot.lane.b32.xlu0 %v848, 98
        %v875 = vpop.permute.xlu0 %874
        %876 = vrot.lane.b32.xlu0 %v849, 98
        %v877 = vpop.permute.xlu0 %876
        %878 = vrot.lane.b32.xlu0 %v850, 98
        %v879 = vpop.permute.xlu0 %878
        %880 = vrot.lane.b32.xlu0 %v851, 98
        %v881 = vpop.permute.xlu0 %880
        %882 = vrot.lane.b32.xlu0 %v852, 98
        %v883 = vpop.permute.xlu0 %882
        %884 = vrot.lane.b32.xlu0 %v853, 98
        %v885 = vpop.permute.xlu0 %884
        %886 = vrot.lane.b32.xlu0 %v854, 98
        %v887 = vpop.permute.xlu0 %886
        %888 = vrot.lane.b32.xlu0 %v855, 98
        %v889 = vpop.permute.xlu0 %888
        %890 = vrot.lane.b32.xlu0 %v856, 98
        %v891 = vpop.permute.xlu0 %890
        %892 = vrot.lane.b32.xlu0 %v857, 98
        %v893 = vpop.permute.xlu0 %892
        %vm894 = vcmask 801792
        %v895 = vsel %vm894, %v871, %v873
        %v896 = vsel %vm894, %v873, %v875
        %v897 = vsel %vm894, %v875, %v877
        %v898 = vsel %vm894, %v877, %v879
        %v899 = vsel %vm894, %v879, %v881
        %v900 = vsel %vm894, %v883, %v885
        %v901 = vsel %vm894, %v885, %v887
        %v902 = vsel %vm894, %v887, %v889
        %v903 = vsel %vm894, %v889, %v891
        %v904 = vsel %vm894, %v891, %v893
        %v917 = vadd.f32 %v821, %v895
        %v918 = vadd.f32 %v822, %v896
        %v919 = vadd.f32 %v823, %v897
        %v920 = vadd.f32 %v824, %v898
        %v921 = vadd.f32 %v825, %v899
        %v922 = vadd.f32 %v826, %v881
        %v923 = vadd.f32 %v827, %v900
        %v924 = vadd.f32 %v828, %v901
        %v925 = vadd.f32 %v829, %v902
        %v926 = vadd.f32 %v830, %v903
        %v927 = vadd.f32 %v831, %v904
        %v928 = vadd.f32 %v832, %v893
        %v929 = vld [vmem:[%s380] sm:$0x7f]
        %s930 = scalar_lea.vmem %s1, 96
        %v931 = vld [vmem:[%s930] sm:$0xff]
        %v932 = vld [vmem:[%s930 + $0x8] sm:$0x3]
        %934 = vset.pattern.permute.xlu0 0
        %935 = vperm.xlu0 %934, %v931
        %v936 = vpop.permute.xlu0 %935
        %939 = vset.pattern.permute.xlu0 0
        %940 = vperm.xlu0 %939, %v932
        %v941 = vpop.permute.xlu0 %940
        %v944 = vlaneseq
        %v945 = vshrl.u32 %v944, 7
        %v946 = vsub.s32 0, %v945
        %v947 = vrot.slane %v929, %v946
        %v948 = vlaneseq
        %v949 = vshrl.u32 %v948, 7
        %v950 = vsub.s32 1, %v949
        %v951 = vrot.slane %v929, %v950
        %v952 = vlaneseq
        %v953 = vshrl.u32 %v952, 7
        %v954 = vsub.s32 2, %v953
        %v955 = vrot.slane %v929, %v954
        %v956 = vlaneseq
        %v957 = vshrl.u32 %v956, 7
        %v958 = vsub.s32 3, %v957
        %v959 = vrot.slane %v929, %v958
        %v960 = vlaneseq
        %v961 = vshrl.u32 %v960, 7
        %v962 = vsub.s32 4, %v961
        %v963 = vrot.slane %v929, %v962
        %v964 = vlaneseq
        %v965 = vshrl.u32 %v964, 7
        %v966 = vsub.s32 5, %v965
        %v967 = vrot.slane %v929, %v966
        %v968 = vlaneseq
        %v969 = vshrl.u32 %v968, 7
        %v970 = vsub.s32 6, %v969
        %v971 = vrot.slane %v929, %v970
        %v979 = vmul.f32 %v936, %v947
        %v980 = vmul.f32 %v936, %v951
        %v981 = vmul.f32 %v936, %v955
        %v982 = vmul.f32 %v936, %v959
        %v983 = vmul.f32 %v936, %v963
        %v984 = vmul.f32 %v936, %v967
        %v985 = vmul.f32 %v936, %v971
        %v986 = vmul.f32 %v941, %v947
        %v987 = vmul.f32 %v941, %v951
        %v988 = vmul.f32 %v941, %v955
        %v989 = vmul.f32 %v941, %v959
        %v990 = vmul.f32 %v941, %v963
        %v991 = vmul.f32 %v941, %v967
        %v992 = vmul.f32 %v941, %v971
        %1007 = vrot.lane.b32.xlu0 %v979, 72
        %v1008 = vpop.permute.xlu0 %1007
        %1009 = vrot.lane.b32.xlu0 %v980, 72
        %v1010 = vpop.permute.xlu0 %1009
        %1011 = vrot.lane.b32.xlu0 %v981, 72
        %v1012 = vpop.permute.xlu0 %1011
        %1013 = vrot.lane.b32.xlu0 %v982, 72
        %v1014 = vpop.permute.xlu0 %1013
        %1015 = vrot.lane.b32.xlu0 %v983, 72
        %v1016 = vpop.permute.xlu0 %1015
        %1017 = vrot.lane.b32.xlu0 %v984, 72
        %v1018 = vpop.permute.xlu0 %1017
        %1019 = vrot.lane.b32.xlu0 %v985, 72
        %v1020 = vpop.permute.xlu0 %1019
        %1021 = vrot.lane.b32.xlu0 %v986, 72
        %v1022 = vpop.permute.xlu0 %1021
        %1023 = vrot.lane.b32.xlu0 %v987, 72
        %v1024 = vpop.permute.xlu0 %1023
        %1025 = vrot.lane.b32.xlu0 %v988, 72
        %v1026 = vpop.permute.xlu0 %1025
        %1027 = vrot.lane.b32.xlu0 %v989, 72
        %v1028 = vpop.permute.xlu0 %1027
        %1029 = vrot.lane.b32.xlu0 %v990, 72
        %v1030 = vpop.permute.xlu0 %1029
        %1031 = vrot.lane.b32.xlu0 %v991, 72
        %v1032 = vpop.permute.xlu0 %1031
        %1033 = vrot.lane.b32.xlu0 %v992, 72
        %v1034 = vpop.permute.xlu0 %1033
        %vm1035 = vcmask 588800
        %v1036 = vsel %vm1035, %v1008, %v1010
        %v1037 = vsel %vm1035, %v1010, %v1012
        %v1038 = vsel %vm1035, %v1012, %v1014
        %v1039 = vsel %vm1035, %v1014, %v1016
        %v1040 = vsel %vm1035, %v1016, %v1018
        %v1041 = vsel %vm1035, %v1018, %v1020
        %v1042 = vsel %vm1035, %v1022, %v1024
        %v1043 = vsel %vm1035, %v1024, %v1026
        %v1044 = vsel %vm1035, %v1026, %v1028
        %v1045 = vsel %vm1035, %v1028, %v1030
        %v1046 = vsel %vm1035, %v1030, %v1032
        %v1047 = vsel %vm1035, %v1032, %v1034
        %v1060 = vadd.f32 %v917, %v1036
        %v1061 = vadd.f32 %v918, %v1037
        %v1062 = vadd.f32 %v919, %v1038
        %v1063 = vadd.f32 %v920, %v1039
        %v1064 = vadd.f32 %v921, %v1040
        %v1065 = vadd.f32 %v922, %v1041
        %v1066 = vadd.f32 %v923, %v1042
        %v1067 = vadd.f32 %v924, %v1043
        %v1068 = vadd.f32 %v925, %v1044
        %v1069 = vadd.f32 %v926, %v1045
        %v1070 = vadd.f32 %v927, %v1046
        %v1071 = vadd.f32 %v928, %v1047
        %s1072 = scalar_lea.vmem %s1, 112
        %v1073 = vld [vmem:[%s1072] sm:$0xff]
        %v1074 = vld [vmem:[%s1072 + $0x8] sm:$0x3]
        %1076 = vset.pattern.permute.xlu0 0
        %1077 = vperm.xlu0 %1076, %v1073
        %v1078 = vpop.permute.xlu0 %1077
        %1081 = vset.pattern.permute.xlu0 0
        %1082 = vperm.xlu0 %1081, %v1074
        %v1083 = vpop.permute.xlu0 %1082
        %v1085 = vmul.f32 %v1078, %v947
        %v1086 = vmul.f32 %v1078, %v951
        %v1087 = vmul.f32 %v1078, %v955
        %v1088 = vmul.f32 %v1078, %v959
        %v1089 = vmul.f32 %v1078, %v963
        %v1090 = vmul.f32 %v1078, %v967
        %v1091 = vmul.f32 %v1078, %v971
        %v1092 = vmul.f32 %v1083, %v947
        %v1093 = vmul.f32 %v1083, %v951
        %v1094 = vmul.f32 %v1083, %v955
        %v1095 = vmul.f32 %v1083, %v959
        %v1096 = vmul.f32 %v1083, %v963
        %v1097 = vmul.f32 %v1083, %v967
        %v1098 = vmul.f32 %v1083, %v971
        %1113 = vrot.lane.b32.xlu0 %v1085, 71
        %v1114 = vpop.permute.xlu0 %1113
        %1115 = vrot.lane.b32.xlu0 %v1086, 71
        %v1116 = vpop.permute.xlu0 %1115
        %1117 = vrot.lane.b32.xlu0 %v1087, 71
        %v1118 = vpop.permute.xlu0 %1117
        %1119 = vrot.lane.b32.xlu0 %v1088, 71
        %v1120 = vpop.permute.xlu0 %1119
        %1121 = vrot.lane.b32.xlu0 %v1089, 71
        %v1122 = vpop.permute.xlu0 %1121
        %1123 = vrot.lane.b32.xlu0 %v1090, 71
        %v1124 = vpop.permute.xlu0 %1123
        %1125 = vrot.lane.b32.xlu0 %v1091, 71
        %v1126 = vpop.permute.xlu0 %1125
        %1127 = vrot.lane.b32.xlu0 %v1092, 71
        %v1128 = vpop.permute.xlu0 %1127
        %1129 = vrot.lane.b32.xlu0 %v1093, 71
        %v1130 = vpop.permute.xlu0 %1129
        %1131 = vrot.lane.b32.xlu0 %v1094, 71
        %v1132 = vpop.permute.xlu0 %1131
        %1133 = vrot.lane.b32.xlu0 %v1095, 71
        %v1134 = vpop.permute.xlu0 %1133
        %1135 = vrot.lane.b32.xlu0 %v1096, 71
        %v1136 = vpop.permute.xlu0 %1135
        %1137 = vrot.lane.b32.xlu0 %v1097, 71
        %v1138 = vpop.permute.xlu0 %1137
        %1139 = vrot.lane.b32.xlu0 %v1098, 71
        %v1140 = vpop.permute.xlu0 %1139
        %vm1141 = vcmask 580608
        %v1142 = vsel %vm1141, %v1114, %v1116
        %v1143 = vsel %vm1141, %v1116, %v1118
        %v1144 = vsel %vm1141, %v1118, %v1120
        %v1145 = vsel %vm1141, %v1120, %v1122
        %v1146 = vsel %vm1141, %v1122, %v1124
        %v1147 = vsel %vm1141, %v1124, %v1126
        %v1148 = vsel %vm1141, %v1128, %v1130
        %v1149 = vsel %vm1141, %v1130, %v1132
        %v1150 = vsel %vm1141, %v1132, %v1134
        %v1151 = vsel %vm1141, %v1134, %v1136
        %v1152 = vsel %vm1141, %v1136, %v1138
        %v1153 = vsel %vm1141, %v1138, %v1140
        %v1166 = vadd.f32 %v1060, %v1142
        %v1167 = vadd.f32 %v1061, %v1143
        %v1168 = vadd.f32 %v1062, %v1144
        %v1169 = vadd.f32 %v1063, %v1145
        %v1170 = vadd.f32 %v1064, %v1146
        %v1171 = vadd.f32 %v1065, %v1147
        %v1172 = vadd.f32 %v1066, %v1148
        %v1173 = vadd.f32 %v1067, %v1149
        %v1174 = vadd.f32 %v1068, %v1150
        %v1175 = vadd.f32 %v1069, %v1151
        %v1176 = vadd.f32 %v1070, %v1152
        %v1177 = vadd.f32 %v1071, %v1153
        %s1178 = scalar_lea.vmem %s1, 128
        %v1179 = vld [vmem:[%s1178] sm:$0xff]
        %v1180 = vld [vmem:[%s1178 + $0x8] sm:$0x3]
        %1182 = vset.pattern.permute.xlu0 0
        %1183 = vperm.xlu0 %1182, %v1179
        %v1184 = vpop.permute.xlu0 %1183
        %1187 = vset.pattern.permute.xlu0 0
        %1188 = vperm.xlu0 %1187, %v1180
        %v1189 = vpop.permute.xlu0 %1188
        %v1191 = vmul.f32 %v1184, %v947
        %v1192 = vmul.f32 %v1184, %v951
        %v1193 = vmul.f32 %v1184, %v955
        %v1194 = vmul.f32 %v1184, %v959
        %v1195 = vmul.f32 %v1184, %v963
        %v1196 = vmul.f32 %v1184, %v967
        %v1197 = vmul.f32 %v1184, %v971
        %v1198 = vmul.f32 %v1189, %v947
        %v1199 = vmul.f32 %v1189, %v951
        %v1200 = vmul.f32 %v1189, %v955
        %v1201 = vmul.f32 %v1189, %v959
        %v1202 = vmul.f32 %v1189, %v963
        %v1203 = vmul.f32 %v1189, %v967
        %v1204 = vmul.f32 %v1189, %v971
        %1219 = vrot.lane.b32.xlu0 %v1191, 70
        %v1220 = vpop.permute.xlu0 %1219
        %1221 = vrot.lane.b32.xlu0 %v1192, 70
        %v1222 = vpop.permute.xlu0 %1221
        %1223 = vrot.lane.b32.xlu0 %v1193, 70
        %v1224 = vpop.permute.xlu0 %1223
        %1225 = vrot.lane.b32.xlu0 %v1194, 70
        %v1226 = vpop.permute.xlu0 %1225
        %1227 = vrot.lane.b32.xlu0 %v1195, 70
        %v1228 = vpop.permute.xlu0 %1227
        %1229 = vrot.lane.b32.xlu0 %v1196, 70
        %v1230 = vpop.permute.xlu0 %1229
        %1231 = vrot.lane.b32.xlu0 %v1197, 70
        %v1232 = vpop.permute.xlu0 %1231
        %1233 = vrot.lane.b32.xlu0 %v1198, 70
        %v1234 = vpop.permute.xlu0 %1233
        %1235 = vrot.lane.b32.xlu0 %v1199, 70
        %v1236 = vpop.permute.xlu0 %1235
        %1237 = vrot.lane.b32.xlu0 %v1200, 70
        %v1238 = vpop.permute.xlu0 %1237
        %1239 = vrot.lane.b32.xlu0 %v1201, 70
        %v1240 = vpop.permute.xlu0 %1239
        %1241 = vrot.lane.b32.xlu0 %v1202, 70
        %v1242 = vpop.permute.xlu0 %1241
        %1243 = vrot.lane.b32.xlu0 %v1203, 70
        %v1244 = vpop.permute.xlu0 %1243
        %1245 = vrot.lane.b32.xlu0 %v1204, 70
        %v1246 = vpop.permute.xlu0 %1245
        %vm1247 = vcmask 572416
        %v1248 = vsel %vm1247, %v1220, %v1222
        %v1249 = vsel %vm1247, %v1222, %v1224
        %v1250 = vsel %vm1247, %v1224, %v1226
        %v1251 = vsel %vm1247, %v1226, %v1228
        %v1252 = vsel %vm1247, %v1228, %v1230
        %v1253 = vsel %vm1247, %v1230, %v1232
        %v1254 = vsel %vm1247, %v1234, %v1236
        %v1255 = vsel %vm1247, %v1236, %v1238
        %v1256 = vsel %vm1247, %v1238, %v1240
        %v1257 = vsel %vm1247, %v1240, %v1242
        %v1258 = vsel %vm1247, %v1242, %v1244
        %v1259 = vsel %vm1247, %v1244, %v1246
        %v1272 = vadd.f32 %v1166, %v1248
        %v1273 = vadd.f32 %v1167, %v1249
        %v1274 = vadd.f32 %v1168, %v1250
        %v1275 = vadd.f32 %v1169, %v1251
        %v1276 = vadd.f32 %v1170, %v1252
        %v1277 = vadd.f32 %v1171, %v1253
        %v1278 = vadd.f32 %v1172, %v1254
        %v1279 = vadd.f32 %v1173, %v1255
        %v1280 = vadd.f32 %v1174, %v1256
        %v1281 = vadd.f32 %v1175, %v1257
        %v1282 = vadd.f32 %v1176, %v1258
        %v1283 = vadd.f32 %v1177, %v1259
        %v1284 = vld [vmem:[%s2] sm:$0xff]
        %v1285 = vld [vmem:[%s2 + $0x8] sm:$0x3]
        %1287 = vset.pattern.permute.xlu0 0
        %1288 = vperm.xlu0 %1287, %v1284
        %v1289 = vpop.permute.xlu0 %1288
        %1292 = vset.pattern.permute.xlu0 0
        %1293 = vperm.xlu0 %1292, %v1285
        %v1294 = vpop.permute.xlu0 %1293
        %v1296 = vadd.f32 %v1272, %v1289
        %v1297 = vadd.f32 %v1273, %v1289
        %v1298 = vadd.f32 %v1274, %v1289
        %v1299 = vadd.f32 %v1275, %v1289
        %v1300 = vadd.f32 %v1276, %v1289
        %v1301 = vadd.f32 %v1277, %v1289
        %v1302 = vadd.f32 %v1278, %v1294
        %v1303 = vadd.f32 %v1279, %v1294
        %v1304 = vadd.f32 %v1280, %v1294
        %v1305 = vadd.f32 %v1281, %v1294
        %v1306 = vadd.f32 %v1282, %v1294
        %v1307 = vadd.f32 %v1283, %v1294
        %v1308 = vmax.f32 %v1296, 0.0
        %v1309 = vmax.f32 %v1297, 0.0
        %v1310 = vmax.f32 %v1298, 0.0
        %v1311 = vmax.f32 %v1299, 0.0
        %v1312 = vmax.f32 %v1300, 0.0
        %v1313 = vmax.f32 %v1301, 0.0
        %v1314 = vmax.f32 %v1302, 0.0
        %v1315 = vmax.f32 %v1303, 0.0
        %v1316 = vmax.f32 %v1304, 0.0
        %v1317 = vmax.f32 %v1305, 0.0
        %v1318 = vmax.f32 %v1306, 0.0
        %v1319 = vmax.f32 %v1307, 0.0
        %1320 = vst [vmem:[#allocation2] sm:$0xff] %v1308
        %1321 = vst [vmem:[#allocation2 + $0x8] sm:$0xff] %v1309
        %1322 = vst [vmem:[#allocation2 + $0x10] sm:$0xff] %v1310
        %1323 = vst [vmem:[#allocation2 + $0x18] sm:$0xff] %v1311
        %1324 = vst [vmem:[#allocation2 + $0x20] sm:$0xff] %v1312
        %vm1325 = vcmask 703488
        %1326 = vst.msk [vmem:[#allocation2 + $0x28] sm:$0xff] %vm1325, %v1313
        %1327 = vst [vmem:[#allocation2 + $0x30] sm:$0x3] %v1314
        %1328 = vst [vmem:[#allocation2 + $0x38] sm:$0x3] %v1315
        %1329 = vst [vmem:[#allocation2 + $0x40] sm:$0x3] %v1316
        %1330 = vst [vmem:[#allocation2 + $0x48] sm:$0x3] %v1317
        %1331 = vst [vmem:[#allocation2 + $0x50] sm:$0x3] %v1318
        %vm1332 = vcmask 697344
        %1333 = vst.msk [vmem:[#allocation2 + $0x58] sm:$0x3] %vm1332, %v1319
        %v1334 = vld [vmem:[#allocation2] sm:$0xff]
        %v1335 = vld [vmem:[#allocation2 + $0x8] sm:$0xff]
        %v1336 = vld [vmem:[#allocation2 + $0x10] sm:$0xff]
        %v1337 = vld [vmem:[#allocation2 + $0x18] sm:$0xff]
        %v1338 = vld [vmem:[#allocation2 + $0x20] sm:$0xff]
        %v1339 = vld [vmem:[#allocation2 + $0x28] sm:$0xff]
        %v1340 = vld [vmem:[#allocation2 + $0x30] sm:$0x3]
        %v1341 = vld [vmem:[#allocation2 + $0x38] sm:$0x3]
        %v1342 = vld [vmem:[#allocation2 + $0x40] sm:$0x3]
        %v1343 = vld [vmem:[#allocation2 + $0x48] sm:$0x3]
        %v1344 = vld [vmem:[#allocation2 + $0x50] sm:$0x3]
        %v1345 = vld [vmem:[#allocation2 + $0x58] sm:$0x3]
        %1358 = vrot.lane.b32.xlu0 %v1334, 127
        %v1359 = vpop.permute.xlu0 %1358
        %1360 = vrot.lane.b32.xlu0 %v1335, 127
        %v1361 = vpop.permute.xlu0 %1360
        %1362 = vrot.lane.b32.xlu0 %v1336, 127
        %v1363 = vpop.permute.xlu0 %1362
        %1364 = vrot.lane.b32.xlu0 %v1337, 127
        %v1365 = vpop.permute.xlu0 %1364
        %1366 = vrot.lane.b32.xlu0 %v1338, 127
        %v1367 = vpop.permute.xlu0 %1366
        %1368 = vrot.lane.b32.xlu0 %v1339, 127
        %v1369 = vpop.permute.xlu0 %1368
        %1370 = vrot.lane.b32.xlu0 %v1340, 127
        %v1371 = vpop.permute.xlu0 %1370
        %1372 = vrot.lane.b32.xlu0 %v1341, 127
        %v1373 = vpop.permute.xlu0 %1372
        %1374 = vrot.lane.b32.xlu0 %v1342, 127
        %v1375 = vpop.permute.xlu0 %1374
        %1376 = vrot.lane.b32.xlu0 %v1343, 127
        %v1377 = vpop.permute.xlu0 %1376
        %1378 = vrot.lane.b32.xlu0 %v1344, 127
        %v1379 = vpop.permute.xlu0 %1378
        %1380 = vrot.lane.b32.xlu0 %v1345, 127
        %v1381 = vpop.permute.xlu0 %1380
        %v1382 = vsel %vm510, %v1359, %v1361
        %v1383 = vsel %vm510, %v1361, %v1363
        %v1384 = vsel %vm510, %v1363, %v1365
        %v1385 = vsel %vm510, %v1365, %v1367
        %v1386 = vsel %vm510, %v1367, %v1369
        %v1387 = vsel %vm510, %v1371, %v1373
        %v1388 = vsel %vm510, %v1373, %v1375
        %v1389 = vsel %vm510, %v1375, %v1377
        %v1390 = vsel %vm510, %v1377, %v1379
        %v1391 = vsel %vm510, %v1379, %v1381
        %v1404 = vmax.f32 %v1334, %v1382
        %v1405 = vmax.f32 %v1335, %v1383
        %v1406 = vmax.f32 %v1336, %v1384
        %v1407 = vmax.f32 %v1337, %v1385
        %v1408 = vmax.f32 %v1338, %v1386
        %v1409 = vmax.f32 %v1339, %v1369
        %v1410 = vmax.f32 %v1340, %v1387
        %v1411 = vmax.f32 %v1341, %v1388
        %v1412 = vmax.f32 %v1342, %v1389
        %v1413 = vmax.f32 %v1343, %v1390
        %v1414 = vmax.f32 %v1344, %v1391
        %v1415 = vmax.f32 %v1345, %v1381
        %1428 = vrot.lane.b32.xlu0 %v1404, 100
        %v1429 = vpop.permute.xlu0 %1428
        %1430 = vrot.lane.b32.xlu0 %v1405, 100
        %v1431 = vpop.permute.xlu0 %1430
        %1432 = vrot.lane.b32.xlu0 %v1406, 100
        %v1433 = vpop.permute.xlu0 %1432
        %1434 = vrot.lane.b32.xlu0 %v1407, 100
        %v1435 = vpop.permute.xlu0 %1434
        %1436 = vrot.lane.b32.xlu0 %v1408, 100
        %v1437 = vpop.permute.xlu0 %1436
        %1438 = vrot.lane.b32.xlu0 %v1409, 100
        %v1439 = vpop.permute.xlu0 %1438
        %1440 = vrot.lane.b32.xlu0 %v1410, 100
        %v1441 = vpop.permute.xlu0 %1440
        %1442 = vrot.lane.b32.xlu0 %v1411, 100
        %v1443 = vpop.permute.xlu0 %1442
        %1444 = vrot.lane.b32.xlu0 %v1412, 100
        %v1445 = vpop.permute.xlu0 %1444
        %1446 = vrot.lane.b32.xlu0 %v1413, 100
        %v1447 = vpop.permute.xlu0 %1446
        %1448 = vrot.lane.b32.xlu0 %v1414, 100
        %v1449 = vpop.permute.xlu0 %1448
        %1450 = vrot.lane.b32.xlu0 %v1415, 100
        %v1451 = vpop.permute.xlu0 %1450
        %v1452 = vsel %vm702, %v1429, %v1431
        %v1453 = vsel %vm702, %v1431, %v1433
        %v1454 = vsel %vm702, %v1433, %v1435
        %v1455 = vsel %vm702, %v1435, %v1437
        %v1456 = vsel %vm702, %v1437, %v1439
        %v1457 = vsel %vm702, %v1441, %v1443
        %v1458 = vsel %vm702, %v1443, %v1445
        %v1459 = vsel %vm702, %v1445, %v1447
        %v1460 = vsel %vm702, %v1447, %v1449
        %v1461 = vsel %vm702, %v1449, %v1451
        %v1474 = vmax.f32 %v1404, %v1452
        %v1475 = vmax.f32 %v1405, %v1453
        %v1476 = vmax.f32 %v1406, %v1454
        %v1477 = vmax.f32 %v1407, %v1455
        %v1478 = vmax.f32 %v1408, %v1456
        %v1479 = vmax.f32 %v1409, %v1439
        %v1480 = vmax.f32 %v1410, %v1457
        %v1481 = vmax.f32 %v1411, %v1458
        %v1482 = vmax.f32 %v1412, %v1459
        %v1483 = vmax.f32 %v1413, %v1460
        %v1484 = vmax.f32 %v1414, %v1461
        %v1485 = vmax.f32 %v1415, %v1451
        %v1486 = vld [vmem:[%s5] sm:$0xff]
        %v1487 = vld [vmem:[%s5 + $0x8] sm:$0xff]
        %v1488 = vld [vmem:[%s5 + $0x10] sm:$0xff]
        %v1489 = vld [vmem:[%s5 + $0x18] sm:$0xff]
        %v1490 = vld [vmem:[%s5 + $0x20] sm:$0xff]
        %v1491 = vld [vmem:[%s5 + $0x28] sm:$0xff]
        %v1492 = vld [vmem:[%s5 + $0x30] sm:$0xff]
        %v1493 = vld [vmem:[%s5 + $0x38] sm:$0xff]
        %v1494 = vld [vmem:[%s5 + $0x40] sm:$0xff]
        %v1495 = vld [vmem:[%s5 + $0x48] sm:$0xff]
        %v1496 = vld [vmem:[%s5 + $0x50] sm:$0xff]
        %v1497 = vld [vmem:[%s5 + $0x58] sm:$0xff]
        %v1498 = vld [vmem:[%s5 + $0x60] sm:$0xff]
        %v1499 = vld [vmem:[%s5 + $0x68] sm:$0xff]
        %v1500 = vld [vmem:[%s5 + $0x70] sm:$0xff]
        %v1501 = vld [vmem:[%s5 + $0x78] sm:$0xff]
        %v1502 = vld [vmem:[%s5 + $0x80] sm:$0xff]
        %v1503 = vld [vmem:[%s5 + $0x88] sm:$0xff]
        %v1504 = vld [vmem:[%s5 + $0x90] sm:$0xff]
        %v1505 = vld [vmem:[%s5 + $0x98] sm:$0xff]
        %v1506 = vld [vmem:[%s5 + $0xa0] sm:$0xff]
        %v1507 = vld [vmem:[%s5 + $0xa8] sm:$0xff]
        %v1508 = vld [vmem:[%s5 + $0xb0] sm:$0xff]
        %v1509 = vld [vmem:[%s5 + $0xb8] sm:$0xff]
        %v1510 = vld [vmem:[%s5 + $0xc0] sm:$0xff]
        %v1511 = vld [vmem:[%s5 + $0xc8] sm:$0xff]
        %v1512 = vld [vmem:[%s5 + $0xd0] sm:$0xff]
        %v1513 = vld [vmem:[%s5 + $0xd8] sm:$0xff]
        %v1514 = vld [vmem:[%s5 + $0xe0] sm:$0xff]
        %v1515 = vld [vmem:[%s5 + $0xe8] sm:$0xff]
        %v1516 = vld [vmem:[%s5 + $0xf0] sm:$0xff]
        %v1517 = vld [vmem:[%s5 + $0xf8] sm:$0xff]
        %v1518 = vld [vmem:[%s5 + $0x100] sm:$0xff]
        %v1519 = vld [vmem:[%s5 + $0x108] sm:$0xff]
        %v1520 = vld [vmem:[%s5 + $0x110] sm:$0xff]
        %v1521 = vld [vmem:[%s5 + $0x118] sm:$0xff]
        %v1522 = vld [vmem:[%s5 + $0x120] sm:$0xff]
        %v1523 = vld [vmem:[%s5 + $0x128] sm:$0xff]
        %v1524 = vld [vmem:[%s5 + $0x130] sm:$0xff]
        %v1525 = vld [vmem:[%s5 + $0x138] sm:$0xff]
        %v1526 = vld [vmem:[%s5 + $0x140] sm:$0xff]
        %v1527 = vld [vmem:[%s5 + $0x148] sm:$0xff]
        %v1528 = vld [vmem:[%s5 + $0x150] sm:$0xff]
        %v1529 = vld [vmem:[%s5 + $0x158] sm:$0xff]
        %v1530 = vld [vmem:[%s5 + $0x160] sm:$0xff]
        %v1531 = vld [vmem:[%s5 + $0x168] sm:$0xff]
        %v1532 = vld [vmem:[%s5 + $0x170] sm:$0xff]
        %v1533 = vld [vmem:[%s5 + $0x178] sm:$0xff]
        %v1534 = vld [vmem:[%s5 + $0x180] sm:$0xff]
        %v1535 = vld [vmem:[%s5 + $0x188] sm:$0xff]
        %v1536 = vld [vmem:[%s5 + $0x190] sm:$0xff]
        %v1537 = vld [vmem:[%s5 + $0x198] sm:$0xff]
        %v1538 = vld [vmem:[%s5 + $0x1a0] sm:$0xff]
        %v1539 = vld [vmem:[%s5 + $0x1a8] sm:$0xff]
        %v1540 = vld [vmem:[%s5 + $0x1b0] sm:$0xff]
        %v1541 = vld [vmem:[%s5 + $0x1b8] sm:$0xff]
        %v1542 = vld [vmem:[%s5 + $0x1c0] sm:$0xff]
        %v1543 = vld [vmem:[%s5 + $0x1c8] sm:$0xff]
        %v1544 = vld [vmem:[%s5 + $0x1d0] sm:$0xff]
        %v1545 = vld [vmem:[%s5 + $0x1d8] sm:$0xff]
        %v1546 = vld [vmem:[%s5 + $0x1e0] sm:$0xff]
        %v1547 = vld [vmem:[%s5 + $0x1e8] sm:$0xff]
        %v1548 = vld [vmem:[%s5 + $0x1f0] sm:$0xff]
        %v1549 = vld [vmem:[%s5 + $0x1f8] sm:$0xff]
        %v1550 = vld [vmem:[%s5 + $0x200] sm:$0xff]
        %v1551 = vld [vmem:[%s5 + $0x208] sm:$0xff]
        %v1552 = vld [vmem:[%s5 + $0x210] sm:$0xff]
        %v1553 = vld [vmem:[%s5 + $0x218] sm:$0xff]
        %v1554 = vld [vmem:[%s5 + $0x220] sm:$0xff]
        %v1555 = vld [vmem:[%s5 + $0x228] sm:$0xff]
        %v1556 = vld [vmem:[%s5 + $0x230] sm:$0xff]
        %v1557 = vld [vmem:[%s5 + $0x238] sm:$0xff]
        %v1558 = vld [vmem:[%s5 + $0x240] sm:$0xff]
        %v1559 = vld [vmem:[%s5 + $0x248] sm:$0xff]
        %v1560 = vld [vmem:[%s5 + $0x250] sm:$0xff]
        %v1561 = vld [vmem:[%s5 + $0x258] sm:$0xff]
        %v1562 = vld [vmem:[%s5 + $0x260] sm:$0xff]
        %v1563 = vld [vmem:[%s5 + $0x268] sm:$0xff]
        %v1564 = vld [vmem:[%s5 + $0x270] sm:$0xff]
        %v1565 = vld [vmem:[%s5 + $0x278] sm:$0xff]
        %v1566 = vld [vmem:[%s5 + $0x280] sm:$0xff]
        %v1567 = vld [vmem:[%s5 + $0x288] sm:$0xff]
        %v1568 = vld [vmem:[%s5 + $0x290] sm:$0xff]
        %v1569 = vld [vmem:[%s5 + $0x298] sm:$0xff]
        %v1570 = vld [vmem:[%s5 + $0x2a0] sm:$0xff]
        %v1571 = vld [vmem:[%s5 + $0x2a8] sm:$0xff]
        %v1572 = vld [vmem:[%s5 + $0x2b0] sm:$0xff]
        %v1573 = vld [vmem:[%s5 + $0x2b8] sm:$0xff]
        %v1574 = vld [vmem:[%s5 + $0x2c0] sm:$0xff]
        %v1575 = vld [vmem:[%s5 + $0x2c8] sm:$0xff]
        %v1576 = vld [vmem:[%s5 + $0x2d0] sm:$0xff]
        %v1577 = vld [vmem:[%s5 + $0x2d8] sm:$0xff]
        %v1578 = vld [vmem:[%s5 + $0x2e0] sm:$0xff]
        %v1579 = vld [vmem:[%s5 + $0x2e8] sm:$0xff]
        %v1580 = vld [vmem:[%s5 + $0x2f0] sm:$0xff]
        %v1581 = vld [vmem:[%s5 + $0x2f8] sm:$0xff]
        %v1582 = vld [vmem:[%s5 + $0x300] sm:$0xff]
        %v1583 = vld [vmem:[%s5 + $0x308] sm:$0xff]
        %v1584 = vld [vmem:[%s5 + $0x310] sm:$0xff]
        %v1585 = vld [vmem:[%s5 + $0x318] sm:$0xff]
        %v1586 = vld [vmem:[%s5 + $0x320] sm:$0xff]
        %v1587 = vld [vmem:[%s5 + $0x328] sm:$0xff]
        %v1588 = vld [vmem:[%s5 + $0x330] sm:$0xff]
        %v1589 = vld [vmem:[%s5 + $0x338] sm:$0xff]
        %v1590 = vld [vmem:[%s5 + $0x340] sm:$0xff]
        %v1591 = vld [vmem:[%s5 + $0x348] sm:$0xff]
        %v1592 = vld [vmem:[%s5 + $0x350] sm:$0xff]
        %v1593 = vld [vmem:[%s5 + $0x358] sm:$0xff]
        %v1594 = vld [vmem:[%s5 + $0x360] sm:$0xff]
        %v1595 = vld [vmem:[%s5 + $0x368] sm:$0xff]
        %v1596 = vld [vmem:[%s5 + $0x370] sm:$0xff]
        %v1597 = vld [vmem:[%s5 + $0x378] sm:$0xff]
        %v1598 = vld [vmem:[%s5 + $0x380] sm:$0xff]
        %v1599 = vld [vmem:[%s5 + $0x388] sm:$0xff]
        %v1600 = vld [vmem:[%s5 + $0x390] sm:$0xff]
        %v1601 = vld [vmem:[%s5 + $0x398] sm:$0xff]
        %v1602 = vld [vmem:[%s5 + $0x3a0] sm:$0xff]
        %v1603 = vld [vmem:[%s5 + $0x3a8] sm:$0xff]
        %v1604 = vld [vmem:[%s5 + $0x3b0] sm:$0xff]
        %v1605 = vld [vmem:[%s5 + $0x3b8] sm:$0xff]
        %v1606 = vld [vmem:[%s5 + $0x3c0] sm:$0xff]
        %v1607 = vld [vmem:[%s5 + $0x3c8] sm:$0xff]
        %v1608 = vld [vmem:[%s5 + $0x3d0] sm:$0xff]
        %v1609 = vld [vmem:[%s5 + $0x3d8] sm:$0xff]
        %v1610 = vld [vmem:[%s5 + $0x3e0] sm:$0xff]
        %v1611 = vld [vmem:[%s5 + $0x3e8] sm:$0xff]
        %v1612 = vld [vmem:[%s5 + $0x3f0] sm:$0xff]
        %v1613 = vld [vmem:[%s5 + $0x3f8] sm:$0xff]
        %v1614 = vld [vmem:[%s5 + $0x400] sm:$0xff]
        %v1615 = vld [vmem:[%s5 + $0x408] sm:$0xff]
        %v1616 = vld [vmem:[%s5 + $0x410] sm:$0xff]
        %v1617 = vld [vmem:[%s5 + $0x418] sm:$0xff]
        %v1618 = vld [vmem:[%s5 + $0x420] sm:$0xff]
        %v1619 = vld [vmem:[%s5 + $0x428] sm:$0xff]
        %v1620 = vld [vmem:[%s5 + $0x430] sm:$0xff]
        %v1621 = vld [vmem:[%s5 + $0x438] sm:$0xff]
        %v1622 = vld [vmem:[%s5 + $0x440] sm:$0xff]
        %v1623 = vld [vmem:[%s5 + $0x448] sm:$0xff]
        %v1624 = vld [vmem:[%s5 + $0x450] sm:$0xff]
        %v1625 = vld [vmem:[%s5 + $0x458] sm:$0xff]
        %v1626 = vld [vmem:[%s5 + $0x460] sm:$0xff]
        %v1627 = vld [vmem:[%s5 + $0x468] sm:$0xff]
        %v1628 = vld [vmem:[%s5 + $0x470] sm:$0xff]
        %v1629 = vld [vmem:[%s5 + $0x478] sm:$0xff]
        %v1630 = vld [vmem:[%s5 + $0x480] sm:$0xff]
        %v1631 = vld [vmem:[%s5 + $0x488] sm:$0xff]
        %v1632 = vld [vmem:[%s5 + $0x490] sm:$0xff]
        %v1633 = vld [vmem:[%s5 + $0x498] sm:$0xff]
        %v1634 = vld [vmem:[%s5 + $0x4a0] sm:$0xff]
        %v1635 = vld [vmem:[%s5 + $0x4a8] sm:$0xff]
        %v1636 = vld [vmem:[%s5 + $0x4b0] sm:$0xff]
        %v1637 = vld [vmem:[%s5 + $0x4b8] sm:$0xff]
        %v1638 = vld [vmem:[%s5 + $0x4c0] sm:$0xff]
        %v1639 = vld [vmem:[%s5 + $0x4c8] sm:$0xff]
        %v1640 = vld [vmem:[%s5 + $0x4d0] sm:$0xff]
        %v1641 = vld [vmem:[%s5 + $0x4d8] sm:$0xff]
        %v1642 = vld [vmem:[%s5 + $0x4e0] sm:$0xff]
        %v1643 = vld [vmem:[%s5 + $0x4e8] sm:$0xff]
        %v1644 = vld [vmem:[%s5 + $0x4f0] sm:$0xff]
        %v1645 = vld [vmem:[%s5 + $0x4f8] sm:$0xff]
        %v1646 = vld [vmem:[%s5 + $0x500] sm:$0xff]
        %v1647 = vld [vmem:[%s5 + $0x508] sm:$0xff]
        %v1648 = vld [vmem:[%s5 + $0x510] sm:$0xff]
        %v1649 = vld [vmem:[%s5 + $0x518] sm:$0xff]
        %v1650 = vld [vmem:[%s5 + $0x520] sm:$0xff]
        %v1651 = vld [vmem:[%s5 + $0x528] sm:$0xff]
        %v1652 = vld [vmem:[%s5 + $0x530] sm:$0xff]
        %v1653 = vld [vmem:[%s5 + $0x538] sm:$0xff]
        %v1654 = vld [vmem:[%s5 + $0x540] sm:$0xff]
        %v1655 = vld [vmem:[%s5 + $0x548] sm:$0xff]
        %v1656 = vld [vmem:[%s5 + $0x550] sm:$0xff]
        %v1657 = vld [vmem:[%s5 + $0x558] sm:$0xff]
        %v1658 = vld [vmem:[%s5 + $0x560] sm:$0xff]
        %v1659 = vld [vmem:[%s5 + $0x568] sm:$0xff]
        %v1660 = vld [vmem:[%s5 + $0x570] sm:$0x1]
        %v1661 = vld [vmem:[%s5 + $0x578] sm:$0x1]
        %vm1662 = vcmask 465920
        %v1664 = vsel %vm1662, %v1479, 0
        %v1667 = vsel %vm1662, %v1485, 0
        %vm1669 = vcmask 1040384
        %v1671 = vsel %vm1669, %v1660, 0
        %v1674 = vsel %vm1669, %v1661, 0
        %1676 = vmatprep.subr.mxu0 %v1487
        %1677 = vmatpush1.msra.mxu0 %v1486
        %1678 = vmatprep.subr.mxu0 %v1489
        %1679 = vmatpush1.msra.mxu0 %v1488
        %1680 = vmatprep.subr.mxu0 %v1491
        %1681 = vmatpush1.msra.mxu0 %v1490
        %1682 = vmatprep.subr.mxu0 %v1493
        %1683 = vmatpush1.msra.mxu0 %v1492
        %1684 = vmatprep.subr.mxu0 %v1495
        %1685 = vmatpush1.msra.mxu0 %v1494
        %1686 = vmatprep.subr.mxu0 %v1497
        %1687 = vmatpush1.msra.mxu0 %v1496
        %1688 = vmatprep.subr.mxu0 %v1499
        %1689 = vmatpush1.msra.mxu0 %v1498
        %1690 = vmatprep.subr.mxu0 %v1501
        %1691 = vmatpush1.msra.mxu0 %v1500
        %1692 = vmatprep.subr.mxu0 %v1503
        %1693 = vmatpush1.msra.mxu0 %v1502
        %1694 = vmatprep.subr.mxu0 %v1505
        %1695 = vmatpush1.msra.mxu0 %v1504
        %1696 = vmatprep.subr.mxu0 %v1507
        %1697 = vmatpush1.msra.mxu0 %v1506
        %1698 = vmatprep.subr.mxu0 %v1509
        %1699 = vmatpush1.msra.mxu0 %v1508
        %1700 = vmatprep.subr.mxu0 %v1511
        %1701 = vmatpush1.msra.mxu0 %v1510
        %1702 = vmatprep.subr.mxu0 %v1513
        %1703 = vmatpush1.msra.mxu0 %v1512
        %1704 = vmatprep.subr.mxu0 %v1515
        %1705 = vmatpush1.msra.mxu0 %v1514
        %1706 = vmatprep.subr.mxu0 %v1517
        %1707 = vmatpush1.msra.mxu0 %v1516
        %1708 = vmatprep.subr.mxu0 %v1519
        %1709 = vmatpush1.msra.mxu0 %v1518
        %1710 = vmatprep.subr.mxu0 %v1521
        %1711 = vmatpush1.msra.mxu0 %v1520
        %1712 = vmatprep.subr.mxu0 %v1523
        %1713 = vmatpush1.msra.mxu0 %v1522
        %1714 = vmatprep.subr.mxu0 %v1525
        %1715 = vmatpush1.msra.mxu0 %v1524
        %1716 = vmatprep.subr.mxu0 %v1527
        %1717 = vmatpush1.msra.mxu0 %v1526
        %1718 = vmatprep.subr.mxu0 %v1529
        %1719 = vmatpush1.msra.mxu0 %v1528
        %1720 = vmatprep.subr.mxu0 %v1531
        %1721 = vmatpush1.msra.mxu0 %v1530
        %1722 = vmatprep.subr.mxu0 %v1533
        %1723 = vmatpush1.msra.mxu0 %v1532
        %1724 = vmatprep.subr.mxu0 %v1535
        %1725 = vmatpush1.msra.mxu0 %v1534
        %1726 = vmatprep.subr.mxu0 %v1537
        %1727 = vmatpush1.msra.mxu0 %v1536
        %1728 = vmatprep.subr.mxu0 %v1539
        %1729 = vmatpush1.msra.mxu0 %v1538
        %1730 = vmatprep.subr.mxu0 %v1541
        %1731 = vmatpush1.msra.mxu0 %v1540
        %1732 = vmatprep.subr.mxu0 %v1543
        %1733 = vmatpush1.msra.mxu0 %v1542
        %1734 = vmatprep.subr.mxu0 %v1545
        %1735 = vmatpush1.msra.mxu0 %v1544
        %1736 = vmatprep.subr.mxu0 %v1547
        %1737 = vmatpush1.msra.mxu0 %v1546
        %1738 = vmatprep.subr.mxu0 %v1549
        %1739 = vmatpush1.msra.mxu0 %v1548
        %1740 = vmatprep.mubr.f32.mxu0 %v1475
        %1741 = vmatmul.mubr.f32.gmra.mrb[0].mxu0 %v1474
        %v1742 = vpop.f32.mrb[0].mxu0
        %v1743 = vadd.f32 0.0, %v1742
        %v1744 = vpop.f32.mrb[0].mxu0
        %v1745 = vadd.f32 0.0, %v1744
        %1746 = vmatprep.mubr.f32.mxu0 %v1481
        %1747 = vmatmul.mubr.f32.gmra.mrb[0].mxu0 %v1480
        %v1748 = vpop.f32.mrb[0].mxu0
        %v1749 = vadd.f32 0.0, %v1748
        %v1750 = vpop.f32.mrb[0].mxu0
        %v1751 = vadd.f32 0.0, %v1750
        %1752 = vdwg.mxu0
        %1753 = vmatprep.subr.mxu0 %v1551
        %1754 = vmatpush1.msra.mxu0 %v1550
        %1755 = vmatprep.subr.mxu0 %v1553
        %1756 = vmatpush1.msra.mxu0 %v1552
        %1757 = vmatprep.subr.mxu0 %v1555
        %1758 = vmatpush1.msra.mxu0 %v1554
        %1759 = vmatprep.subr.mxu0 %v1557
        %1760 = vmatpush1.msra.mxu0 %v1556
        %1761 = vmatprep.subr.mxu0 %v1559
        %1762 = vmatpush1.msra.mxu0 %v1558
        %1763 = vmatprep.subr.mxu0 %v1561
        %1764 = vmatpush1.msra.mxu0 %v1560
        %1765 = vmatprep.subr.mxu0 %v1563
        %1766 = vmatpush1.msra.mxu0 %v1562
        %1767 = vmatprep.subr.mxu0 %v1565
        %1768 = vmatpush1.msra.mxu0 %v1564
        %1769 = vmatprep.subr.mxu0 %v1567
        %1770 = vmatpush1.msra.mxu0 %v1566
        %1771 = vmatprep.subr.mxu0 %v1569
        %1772 = vmatpush1.msra.mxu0 %v1568
        %1773 = vmatprep.subr.mxu0 %v1571
        %1774 = vmatpush1.msra.mxu0 %v1570
        %1775 = vmatprep.subr.mxu0 %v1573
        %1776 = vmatpush1.msra.mxu0 %v1572
        %1777 = vmatprep.subr.mxu0 %v1575
        %1778 = vmatpush1.msra.mxu0 %v1574
        %1779 = vmatprep.subr.mxu0 %v1577
        %1780 = vmatpush1.msra.mxu0 %v1576
        %1781 = vmatprep.subr.mxu0 %v1579
        %1782 = vmatpush1.msra.mxu0 %v1578
        %1783 = vmatprep.subr.mxu0 %v1581
        %1784 = vmatpush1.msra.mxu0 %v1580
        %1785 = vmatprep.subr.mxu0 %v1583
        %1786 = vmatpush1.msra.mxu0 %v1582
        %1787 = vmatprep.subr.mxu0 %v1585
        %1788 = vmatpush1.msra.mxu0 %v1584
        %1789 = vmatprep.subr.mxu0 %v1587
        %1790 = vmatpush1.msra.mxu0 %v1586
        %1791 = vmatprep.subr.mxu0 %v1589
        %1792 = vmatpush1.msra.mxu0 %v1588
        %1793 = vmatprep.subr.mxu0 %v1591
        %1794 = vmatpush1.msra.mxu0 %v1590
        %1795 = vmatprep.subr.mxu0 %v1593
        %1796 = vmatpush1.msra.mxu0 %v1592
        %1797 = vmatprep.subr.mxu0 %v1595
        %1798 = vmatpush1.msra.mxu0 %v1594
        %1799 = vmatprep.subr.mxu0 %v1597
        %1800 = vmatpush1.msra.mxu0 %v1596
        %1801 = vmatprep.subr.mxu0 %v1599
        %1802 = vmatpush1.msra.mxu0 %v1598
        %1803 = vmatprep.subr.mxu0 %v1601
        %1804 = vmatpush1.msra.mxu0 %v1600
        %1805 = vmatprep.subr.mxu0 %v1603
        %1806 = vmatpush1.msra.mxu0 %v1602
        %1807 = vmatprep.subr.mxu0 %v1605
        %1808 = vmatpush1.msra.mxu0 %v1604
        %1809 = vmatprep.subr.mxu0 %v1607
        %1810 = vmatpush1.msra.mxu0 %v1606
        %1811 = vmatprep.subr.mxu0 %v1609
        %1812 = vmatpush1.msra.mxu0 %v1608
        %1813 = vmatprep.subr.mxu0 %v1611
        %1814 = vmatpush1.msra.mxu0 %v1610
        %1815 = vmatprep.subr.mxu0 %v1613
        %1816 = vmatpush1.msra.mxu0 %v1612
        %1817 = vmatprep.mubr.f32.mxu0 %v1477
        %1818 = vmatmul.mubr.f32.gmra.mrb[0].mxu0 %v1476
        %v1819 = vpop.f32.mrb[0].mxu0
        %v1820 = vadd.f32 %v1743, %v1819
        %v1821 = vpop.f32.mrb[0].mxu0
        %v1822 = vadd.f32 %v1745, %v1821
        %1823 = vmatprep.mubr.f32.mxu0 %v1483
        %1824 = vmatmul.mubr.f32.gmra.mrb[0].mxu0 %v1482
        %v1825 = vpop.f32.mrb[0].mxu0
        %v1826 = vadd.f32 %v1749, %v1825
        %v1827 = vpop.f32.mrb[0].mxu0
        %v1828 = vadd.f32 %v1751, %v1827
        %1829 = vdwg.mxu0
        %1830 = vmatprep.subr.mxu0 %v1615
        %1831 = vmatpush1.msra.mxu0 %v1614
        %1832 = vmatprep.subr.mxu0 %v1617
        %1833 = vmatpush1.msra.mxu0 %v1616
        %1834 = vmatprep.subr.mxu0 %v1619
        %1835 = vmatpush1.msra.mxu0 %v1618
        %1836 = vmatprep.subr.mxu0 %v1621
        %1837 = vmatpush1.msra.mxu0 %v1620
        %1838 = vmatprep.subr.mxu0 %v1623
        %1839 = vmatpush1.msra.mxu0 %v1622
        %1840 = vmatprep.subr.mxu0 %v1625
        %1841 = vmatpush1.msra.mxu0 %v1624
        %1842 = vmatprep.subr.mxu0 %v1627
        %1843 = vmatpush1.msra.mxu0 %v1626
        %1844 = vmatprep.subr.mxu0 %v1629
        %1845 = vmatpush1.msra.mxu0 %v1628
        %1846 = vmatprep.subr.mxu0 %v1631
        %1847 = vmatpush1.msra.mxu0 %v1630
        %1848 = vmatprep.subr.mxu0 %v1633
        %1849 = vmatpush1.msra.mxu0 %v1632
        %1850 = vmatprep.subr.mxu0 %v1635
        %1851 = vmatpush1.msra.mxu0 %v1634
        %1852 = vmatprep.subr.mxu0 %v1637
        %1853 = vmatpush1.msra.mxu0 %v1636
        %1854 = vmatprep.subr.mxu0 %v1639
        %1855 = vmatpush1.msra.mxu0 %v1638
        %1856 = vmatprep.subr.mxu0 %v1641
        %1857 = vmatpush1.msra.mxu0 %v1640
        %1858 = vmatprep.subr.mxu0 %v1643
        %1859 = vmatpush1.msra.mxu0 %v1642
        %1860 = vmatprep.subr.mxu0 %v1645
        %1861 = vmatpush1.msra.mxu0 %v1644
        %1862 = vmatprep.subr.mxu0 %v1647
        %1863 = vmatpush1.msra.mxu0 %v1646
        %1864 = vmatprep.subr.mxu0 %v1649
        %1865 = vmatpush1.msra.mxu0 %v1648
        %1866 = vmatprep.subr.mxu0 %v1651
        %1867 = vmatpush1.msra.mxu0 %v1650
        %1868 = vmatprep.subr.mxu0 %v1653
        %1869 = vmatpush1.msra.mxu0 %v1652
        %1870 = vmatprep.subr.mxu0 %v1655
        %1871 = vmatpush1.msra.mxu0 %v1654
        %1872 = vmatprep.subr.mxu0 %v1657
        %1873 = vmatpush1.msra.mxu0 %v1656
        %1874 = vmatprep.subr.mxu0 %v1659
        %1875 = vmatpush1.msra.mxu0 %v1658
        %1876 = vmatprep.subr.mxu0 %v1674
        %1877 = vmatpush1.msra.mxu0 %v1671
        %1878 = vmatprep.subr.mxu0 0.0
        %1879 = vmatpush1.msra.mxu0 0.0
        %1880 = vmatprep.subr.mxu0 0.0
        %1881 = vmatpush1.msra.mxu0 0.0
        %1882 = vmatprep.subr.mxu0 0.0
        %1883 = vmatpush1.msra.mxu0 0.0
        %1884 = vmatprep.subr.mxu0 0.0
        %1885 = vmatpush1.msra.mxu0 0.0
        %1886 = vmatprep.subr.mxu0 0.0
        %1887 = vmatpush1.msra.mxu0 0.0
        %1888 = vmatprep.subr.mxu0 0.0
        %1889 = vmatpush1.msra.mxu0 0.0
        %1890 = vmatprep.subr.mxu0 0.0
        %1891 = vmatpush1.msra.mxu0 0.0
        %1892 = vmatprep.subr.mxu0 0.0
        %1893 = vmatpush1.msra.mxu0 0.0
        %1894 = vmatprep.mubr.f32.mxu0 %v1664
        %1895 = vmatmul.mubr.f32.gmra.mrb[0].mxu0 %v1478
        %v1896 = vpop.f32.mrb[0].mxu0
        %v1897 = vadd.f32 %v1820, %v1896
        %v1898 = vpop.f32.mrb[0].mxu0
        %v1899 = vadd.f32 %v1822, %v1898
        %1900 = vmatprep.mubr.f32.mxu0 %v1667
        %1901 = vmatmul.mubr.f32.gmra.mrb[0].mxu0 %v1484
        %v1902 = vpop.f32.mrb[0].mxu0
        %v1903 = vadd.f32 %v1826, %v1902
        %v1904 = vpop.f32.mrb[0].mxu0
        %v1905 = vadd.f32 %v1828, %v1904
        %1906 = vdwg.mxu0
        %1907 = vst [vmem:[#allocation3] sm:$0xff] %v1897
        %vm1908 = vcmask 334848
        %1909 = vst.msk [vmem:[#allocation3 + $0x8] sm:$0xff] %vm1908, %v1899
        %1910 = vst [vmem:[#allocation3 + $0x10] sm:$0x3] %v1903
        %vm1911 = vcmask 328704
        %1912 = vst.msk [vmem:[#allocation3 + $0x18] sm:$0x3] %vm1911, %v1905
        %v1913 = vld [vmem:[%s3] sm:$0xff]
        %v1914 = vld [vmem:[%s3 + $0x8] sm:$0x3]
        %v1915 = vld [vmem:[#allocation3] sm:$0xff]
        %v1916 = vld [vmem:[#allocation3 + $0x10] sm:$0x3]
        %s1917 = scalar_lea.vmem %s3, 16
        %v1918 = vld [vmem:[%s1917] sm:$0xff]
        %v1919 = vld [vmem:[%s1917 + $0x8] sm:$0x3]
        %1922 = vrot.lane.b32.xlu0 %v1915, 127
        %v1923 = vpop.permute.xlu0 %1922
        %1924 = vrot.lane.b32.xlu0 %v1916, 127
        %v1925 = vpop.permute.xlu0 %1924
        %vm1927 = vcmask 80896
        %v1929 = vsel %vm1927, %v1918, 0
        %v1932 = vsel %vm1927, %v1919, 0
        %vm1934 = vcmask 1041408
        %v1935 = vsel %vm1934, %v1925, 0
        %1937 = vmatprep.subr.mxu0 0.0
        %1938 = vmatpush1.msra.mxu0 %v1923
        %1939 = vmatprep.subr.mxu0 0.0
        %1940 = vmatpush1.msra.mxu0 %v1935
        %1941 = vmatprep.subr.mxu0 0.0
        %1942 = vmatpush1.msra.mxu0 0.0
        %1943 = vmatprep.subr.mxu0 0.0
        %1944 = vmatpush1.msra.mxu0 0.0
        %1945 = vmatprep.subr.mxu0 0.0
        %1946 = vmatpush1.msra.mxu0 0.0
        %1947 = vmatprep.subr.mxu0 0.0
        %1948 = vmatpush1.msra.mxu0 0.0
        %1949 = vmatprep.subr.mxu0 0.0
        %1950 = vmatpush1.msra.mxu0 0.0
        %1951 = vmatprep.subr.mxu0 0.0
        %1952 = vmatpush1.msra.mxu0 0.0
        %1953 = vmatprep.subr.mxu0 0.0
        %1954 = vmatpush1.msra.mxu0 0.0
        %1955 = vmatprep.subr.mxu0 0.0
        %1956 = vmatpush1.msra.mxu0 0.0
        %1957 = vmatprep.subr.mxu0 0.0
        %1958 = vmatpush1.msra.mxu0 0.0
        %1959 = vmatprep.subr.mxu0 0.0
        %1960 = vmatpush1.msra.mxu0 0.0
        %1961 = vmatprep.subr.mxu0 0.0
        %1962 = vmatpush1.msra.mxu0 0.0
        %1963 = vmatprep.subr.mxu0 0.0
        %1964 = vmatpush1.msra.mxu0 0.0
        %1965 = vmatprep.subr.mxu0 0.0
        %1966 = vmatpush1.msra.mxu0 0.0
        %1967 = vmatprep.subr.mxu0 0.0
        %1968 = vmatpush1.msra.mxu0 0.0
        %1969 = vmatprep.subr.mxu0 0.0
        %1970 = vmatpush1.msra.mxu0 0.0
        %1971 = vmatprep.subr.mxu0 0.0
        %1972 = vmatpush1.msra.mxu0 0.0
        %1973 = vmatprep.subr.mxu0 0.0
        %1974 = vmatpush1.msra.mxu0 0.0
        %1975 = vmatprep.subr.mxu0 0.0
        %1976 = vmatpush1.msra.mxu0 0.0
        %1977 = vmatprep.subr.mxu0 0.0
        %1978 = vmatpush1.msra.mxu0 0.0
        %1979 = vmatprep.subr.mxu0 0.0
        %1980 = vmatpush1.msra.mxu0 0.0
        %1981 = vmatprep.subr.mxu0 0.0
        %1982 = vmatpush1.msra.mxu0 0.0
        %1983 = vmatprep.subr.mxu0 0.0
        %1984 = vmatpush1.msra.mxu0 0.0
        %1985 = vmatprep.subr.mxu0 0.0
        %1986 = vmatpush1.msra.mxu0 0.0
        %1987 = vmatprep.subr.mxu0 0.0
        %1988 = vmatpush1.msra.mxu0 0.0
        %1989 = vmatprep.subr.mxu0 0.0
        %1990 = vmatpush1.msra.mxu0 0.0
        %1991 = vmatprep.subr.mxu0 0.0
        %1992 = vmatpush1.msra.mxu0 0.0
        %1993 = vmatprep.subr.mxu0 0.0
        %1994 = vmatpush1.msra.mxu0 0.0
        %1995 = vmatprep.subr.mxu0 0.0
        %1996 = vmatpush1.msra.mxu0 0.0
        %1997 = vmatprep.subr.mxu0 0.0
        %1998 = vmatpush1.msra.mxu0 0.0
        %1999 = vmatprep.subr.mxu0 0.0
        %2000 = vmatpush1.msra.mxu0 0.0
        %2001 = vmatprep.mubr.f32.mxu0 0.0
        %2002 = vmatmul.mubr.f32.gmra.mrb[0].mxu0 %v1929
        %v2003 = vpop.f32.mrb[0].mxu0
        %v2004 = vadd.f32 0.0, %v2003
        %v2005 = vpop.f32.mrb[0].mxu0
        %2006 = vmatprep.mubr.f32.mxu0 0.0
        %2007 = vmatmul.mubr.f32.gmra.mrb[0].mxu0 %v1932
        %v2008 = vpop.f32.mrb[0].mxu0
        %v2009 = vadd.f32 0.0, %v2008
        %v2010 = vpop.f32.mrb[0].mxu0
        %2011 = vdwg.mxu0
        %v2013 = vsel %vm1927, %v1913, 0
        %v2016 = vsel %vm1927, %v1914, 0
        %v2018 = vsel %vm1934, %v1916, 0
        %2020 = vmatprep.subr.mxu0 0.0
        %2021 = vmatpush1.msra.mxu0 %v1915
        %2022 = vmatprep.subr.mxu0 0.0
        %2023 = vmatpush1.msra.mxu0 %v2018
        %2024 = vmatprep.subr.mxu0 0.0
        %2025 = vmatpush1.msra.mxu0 0.0
        %2026 = vmatprep.subr.mxu0 0.0
        %2027 = vmatpush1.msra.mxu0 0.0
        %2028 = vmatprep.subr.mxu0 0.0
        %2029 = vmatpush1.msra.mxu0 0.0
        %2030 = vmatprep.subr.mxu0 0.0
        %2031 = vmatpush1.msra.mxu0 0.0
        %2032 = vmatprep.subr.mxu0 0.0
        %2033 = vmatpush1.msra.mxu0 0.0
        %2034 = vmatprep.subr.mxu0 0.0
        %2035 = vmatpush1.msra.mxu0 0.0
        %2036 = vmatprep.subr.mxu0 0.0
        %2037 = vmatpush1.msra.mxu0 0.0
        %2038 = vmatprep.subr.mxu0 0.0
        %2039 = vmatpush1.msra.mxu0 0.0
        %2040 = vmatprep.subr.mxu0 0.0
        %2041 = vmatpush1.msra.mxu0 0.0
        %2042 = vmatprep.subr.mxu0 0.0
        %2043 = vmatpush1.msra.mxu0 0.0
        %2044 = vmatprep.subr.mxu0 0.0
        %2045 = vmatpush1.msra.mxu0 0.0
        %2046 = vmatprep.subr.mxu0 0.0
        %2047 = vmatpush1.msra.mxu0 0.0
        %2048 = vmatprep.subr.mxu0 0.0
        %2049 = vmatpush1.msra.mxu0 0.0
        %2050 = vmatprep.subr.mxu0 0.0
        %2051 = vmatpush1.msra.mxu0 0.0
        %2052 = vmatprep.subr.mxu0 0.0
        %2053 = vmatpush1.msra.mxu0 0.0
        %2054 = vmatprep.subr.mxu0 0.0
        %2055 = vmatpush1.msra.mxu0 0.0
        %2056 = vmatprep.subr.mxu0 0.0
        %2057 = vmatpush1.msra.mxu0 0.0
        %2058 = vmatprep.subr.mxu0 0.0
        %2059 = vmatpush1.msra.mxu0 0.0
        %2060 = vmatprep.subr.mxu0 0.0
        %2061 = vmatpush1.msra.mxu0 0.0
        %2062 = vmatprep.subr.mxu0 0.0
        %2063 = vmatpush1.msra.mxu0 0.0
        %2064 = vmatprep.subr.mxu0 0.0
        %2065 = vmatpush1.msra.mxu0 0.0
        %2066 = vmatprep.subr.mxu0 0.0
        %2067 = vmatpush1.msra.mxu0 0.0
        %2068 = vmatprep.subr.mxu0 0.0
        %2069 = vmatpush1.msra.mxu0 0.0
        %2070 = vmatprep.subr.mxu0 0.0
        %2071 = vmatpush1.msra.mxu0 0.0
        %2072 = vmatprep.subr.mxu0 0.0
        %2073 = vmatpush1.msra.mxu0 0.0
        %2074 = vmatprep.subr.mxu0 0.0
        %2075 = vmatpush1.msra.mxu0 0.0
        %2076 = vmatprep.subr.mxu0 0.0
        %2077 = vmatpush1.msra.mxu0 0.0
        %2078 = vmatprep.subr.mxu0 0.0
        %2079 = vmatpush1.msra.mxu0 0.0
        %2080 = vmatprep.subr.mxu0 0.0
        %2081 = vmatpush1.msra.mxu0 0.0
        %2082 = vmatprep.subr.mxu0 0.0
        %2083 = vmatpush1.msra.mxu0 0.0
        %2084 = vmatprep.mubr.f32.mxu0 0.0
        %2085 = vmatmul.mubr.f32.gmra.mrb[0].mxu0 %v2013
        %v2086 = vpop.f32.mrb[0].mxu0
        %v2087 = vadd.f32 %v2004, %v2086
        %v2088 = vpop.f32.mrb[0].mxu0
        %2089 = vmatprep.mubr.f32.mxu0 0.0
        %2090 = vmatmul.mubr.f32.gmra.mrb[0].mxu0 %v2016
        %v2091 = vpop.f32.mrb[0].mxu0
        %v2092 = vadd.f32 %v2009, %v2091
        %v2093 = vpop.f32.mrb[0].mxu0
        %2094 = vdwg.mxu0
        %s2095 = scalar_lea.vmem %s3, 32
        %v2096 = vld [vmem:[%s2095] sm:$0xff]
        %v2097 = vld [vmem:[%s2095 + $0x8] sm:$0x3]
        %v2098 = vld [vmem:[#allocation3] sm:$0xff]
        %v2099 = vld [vmem:[#allocation3 + $0x8] sm:$0xff]
        %v2100 = vld [vmem:[#allocation3 + $0x10] sm:$0x3]
        %v2101 = vld [vmem:[#allocation3 + $0x18] sm:$0x3]
        %2106 = vrot.lane.b32.xlu0 %v2098, 126
        %v2107 = vpop.permute.xlu0 %2106
        %2108 = vrot.lane.b32.xlu0 %v2099, 126
        %v2109 = vpop.permute.xlu0 %2108
        %2110 = vrot.lane.b32.xlu0 %v2100, 126
        %v2111 = vpop.permute.xlu0 %2110
        %2112 = vrot.lane.b32.xlu0 %v2101, 126
        %v2113 = vpop.permute.xlu0 %2112
        %v2114 = vsel %vm606, %v2107, %v2109
        %v2115 = vsel %vm606, %v2111, %v2113
        %v2118 = vsel %vm1927, %v2096, 0
        %v2121 = vsel %vm1927, %v2097, 0
        %v2123 = vsel %vm1934, %v2115, 0
        %2125 = vmatprep.subr.mxu0 0.0
        %2126 = vmatpush1.msra.mxu0 %v2114
        %2127 = vmatprep.subr.mxu0 0.0
        %2128 = vmatpush1.msra.mxu0 %v2123
        %2129 = vmatprep.subr.mxu0 0.0
        %2130 = vmatpush1.msra.mxu0 0.0
        %2131 = vmatprep.subr.mxu0 0.0
        %2132 = vmatpush1.msra.mxu0 0.0
        %2133 = vmatprep.subr.mxu0 0.0
        %2134 = vmatpush1.msra.mxu0 0.0
        %2135 = vmatprep.subr.mxu0 0.0
        %2136 = vmatpush1.msra.mxu0 0.0
        %2137 = vmatprep.subr.mxu0 0.0
        %2138 = vmatpush1.msra.mxu0 0.0
        %2139 = vmatprep.subr.mxu0 0.0
        %2140 = vmatpush1.msra.mxu0 0.0
        %2141 = vmatprep.subr.mxu0 0.0
        %2142 = vmatpush1.msra.mxu0 0.0
        %2143 = vmatprep.subr.mxu0 0.0
        %2144 = vmatpush1.msra.mxu0 0.0
        %2145 = vmatprep.subr.mxu0 0.0
        %2146 = vmatpush1.msra.mxu0 0.0
        %2147 = vmatprep.subr.mxu0 0.0
        %2148 = vmatpush1.msra.mxu0 0.0
        %2149 = vmatprep.subr.mxu0 0.0
        %2150 = vmatpush1.msra.mxu0 0.0
        %2151 = vmatprep.subr.mxu0 0.0
        %2152 = vmatpush1.msra.mxu0 0.0
        %2153 = vmatprep.subr.mxu0 0.0
        %2154 = vmatpush1.msra.mxu0 0.0
        %2155 = vmatprep.subr.mxu0 0.0
        %2156 = vmatpush1.msra.mxu0 0.0
        %2157 = vmatprep.subr.mxu0 0.0
        %2158 = vmatpush1.msra.mxu0 0.0
        %2159 = vmatprep.subr.mxu0 0.0
        %2160 = vmatpush1.msra.mxu0 0.0
        %2161 = vmatprep.subr.mxu0 0.0
        %2162 = vmatpush1.msra.mxu0 0.0
        %2163 = vmatprep.subr.mxu0 0.0
        %2164 = vmatpush1.msra.mxu0 0.0
        %2165 = vmatprep.subr.mxu0 0.0
        %2166 = vmatpush1.msra.mxu0 0.0
        %2167 = vmatprep.subr.mxu0 0.0
        %2168 = vmatpush1.msra.mxu0 0.0
        %2169 = vmatprep.subr.mxu0 0.0
        %2170 = vmatpush1.msra.mxu0 0.0
        %2171 = vmatprep.subr.mxu0 0.0
        %2172 = vmatpush1.msra.mxu0 0.0
        %2173 = vmatprep.subr.mxu0 0.0
        %2174 = vmatpush1.msra.mxu0 0.0
        %2175 = vmatprep.subr.mxu0 0.0
        %2176 = vmatpush1.msra.mxu0 0.0
        %2177 = vmatprep.subr.mxu0 0.0
        %2178 = vmatpush1.msra.mxu0 0.0
        %2179 = vmatprep.subr.mxu0 0.0
        %2180 = vmatpush1.msra.mxu0 0.0
        %2181 = vmatprep.subr.mxu0 0.0
        %2182 = vmatpush1.msra.mxu0 0.0
        %2183 = vmatprep.subr.mxu0 0.0
        %2184 = vmatpush1.msra.mxu0 0.0
        %2185 = vmatprep.subr.mxu0 0.0
        %2186 = vmatpush1.msra.mxu0 0.0
        %2187 = vmatprep.subr.mxu0 0.0
        %2188 = vmatpush1.msra.mxu0 0.0
        %2189 = vmatprep.mubr.f32.mxu0 0.0
        %2190 = vmatmul.mubr.f32.gmra.mrb[0].mxu0 %v2118
        %v2191 = vpop.f32.mrb[0].mxu0
        %v2192 = vadd.f32 0.0, %v2191
        %v2193 = vpop.f32.mrb[0].mxu0
        %2194 = vmatprep.mubr.f32.mxu0 0.0
        %2195 = vmatmul.mubr.f32.gmra.mrb[0].mxu0 %v2121
        %v2196 = vpop.f32.mrb[0].mxu0
        %v2197 = vadd.f32 0.0, %v2196
        %v2198 = vpop.f32.mrb[0].mxu0
        %2199 = vdwg.mxu0
        %v2200 = vadd.f32 %v2087, %v2192
        %v2201 = vadd.f32 %v2092, %v2197
        %s2202 = scalar_lea.vmem %s3, 48
        %v2203 = vld [vmem:[%s2202] sm:$0xff]
        %v2204 = vld [vmem:[%s2202 + $0x8] sm:$0x3]
        %2205 = vrot.lane.b32.xlu0 %v2098, 125
        %v2206 = vpop.permute.xlu0 %2205
        %2207 = vrot.lane.b32.xlu0 %v2099, 125
        %v2208 = vpop.permute.xlu0 %2207
        %2209 = vrot.lane.b32.xlu0 %v2100, 125
        %v2210 = vpop.permute.xlu0 %2209
        %2211 = vrot.lane.b32.xlu0 %v2101, 125
        %v2212 = vpop.permute.xlu0 %2211
        %vm2213 = vcmask 1022976
        %v2214 = vsel %vm2213, %v2206, %v2208
        %v2215 = vsel %vm2213, %v2210, %v2212
        %v2218 = vsel %vm1927, %v2203, 0
        %v2221 = vsel %vm1927, %v2204, 0
        %v2223 = vsel %vm1934, %v2215, 0
        %2225 = vmatprep.subr.mxu0 0.0
        %2226 = vmatpush1.msra.mxu0 %v2214
        %2227 = vmatprep.subr.mxu0 0.0
        %2228 = vmatpush1.msra.mxu0 %v2223
        %2229 = vmatprep.subr.mxu0 0.0
        %2230 = vmatpush1.msra.mxu0 0.0
        %2231 = vmatprep.subr.mxu0 0.0
        %2232 = vmatpush1.msra.mxu0 0.0
        %2233 = vmatprep.subr.mxu0 0.0
        %2234 = vmatpush1.msra.mxu0 0.0
        %2235 = vmatprep.subr.mxu0 0.0
        %2236 = vmatpush1.msra.mxu0 0.0
        %2237 = vmatprep.subr.mxu0 0.0
        %2238 = vmatpush1.msra.mxu0 0.0
        %2239 = vmatprep.subr.mxu0 0.0
        %2240 = vmatpush1.msra.mxu0 0.0
        %2241 = vmatprep.subr.mxu0 0.0
        %2242 = vmatpush1.msra.mxu0 0.0
        %2243 = vmatprep.subr.mxu0 0.0
        %2244 = vmatpush1.msra.mxu0 0.0
        %2245 = vmatprep.subr.mxu0 0.0
        %2246 = vmatpush1.msra.mxu0 0.0
        %2247 = vmatprep.subr.mxu0 0.0
        %2248 = vmatpush1.msra.mxu0 0.0
        %2249 = vmatprep.subr.mxu0 0.0
        %2250 = vmatpush1.msra.mxu0 0.0
        %2251 = vmatprep.subr.mxu0 0.0
        %2252 = vmatpush1.msra.mxu0 0.0
        %2253 = vmatprep.subr.mxu0 0.0
        %2254 = vmatpush1.msra.mxu0 0.0
        %2255 = vmatprep.subr.mxu0 0.0
        %2256 = vmatpush1.msra.mxu0 0.0
        %2257 = vmatprep.subr.mxu0 0.0
        %2258 = vmatpush1.msra.mxu0 0.0
        %2259 = vmatprep.subr.mxu0 0.0
        %2260 = vmatpush1.msra.mxu0 0.0
        %2261 = vmatprep.subr.mxu0 0.0
        %2262 = vmatpush1.msra.mxu0 0.0
        %2263 = vmatprep.subr.mxu0 0.0
        %2264 = vmatpush1.msra.mxu0 0.0
        %2265 = vmatprep.subr.mxu0 0.0
        %2266 = vmatpush1.msra.mxu0 0.0
        %2267 = vmatprep.subr.mxu0 0.0
        %2268 = vmatpush1.msra.mxu0 0.0
        %2269 = vmatprep.subr.mxu0 0.0
        %2270 = vmatpush1.msra.mxu0 0.0
        %2271 = vmatprep.subr.mxu0 0.0
        %2272 = vmatpush1.msra.mxu0 0.0
        %2273 = vmatprep.subr.mxu0 0.0
        %2274 = vmatpush1.msra.mxu0 0.0
        %2275 = vmatprep.subr.mxu0 0.0
        %2276 = vmatpush1.msra.mxu0 0.0
        %2277 = vmatprep.subr.mxu0 0.0
        %2278 = vmatpush1.msra.mxu0 0.0
        %2279 = vmatprep.subr.mxu0 0.0
        %2280 = vmatpush1.msra.mxu0 0.0
        %2281 = vmatprep.subr.mxu0 0.0
        %2282 = vmatpush1.msra.mxu0 0.0
        %2283 = vmatprep.subr.mxu0 0.0
        %2284 = vmatpush1.msra.mxu0 0.0
        %2285 = vmatprep.subr.mxu0 0.0
        %2286 = vmatpush1.msra.mxu0 0.0
        %2287 = vmatprep.subr.mxu0 0.0
        %2288 = vmatpush1.msra.mxu0 0.0
        %2289 = vmatprep.mubr.f32.mxu0 0.0
        %2290 = vmatmul.mubr.f32.gmra.mrb[0].mxu0 %v2218
        %v2291 = vpop.f32.mrb[0].mxu0
        %v2292 = vadd.f32 0.0, %v2291
        %v2293 = vpop.f32.mrb[0].mxu0
        %2294 = vmatprep.mubr.f32.mxu0 0.0
        %2295 = vmatmul.mubr.f32.gmra.mrb[0].mxu0 %v2221
        %v2296 = vpop.f32.mrb[0].mxu0
        %v2297 = vadd.f32 0.0, %v2296
        %v2298 = vpop.f32.mrb[0].mxu0
        %2299 = vdwg.mxu0
        %v2300 = vadd.f32 %v2200, %v2292
        %v2301 = vadd.f32 %v2201, %v2297
        %s2302 = scalar_lea.vmem %s3, 64
        %v2303 = vld [vmem:[%s2302] sm:$0xff]
        %v2304 = vld [vmem:[%s2302 + $0x8] sm:$0x3]
        %2305 = vrot.lane.b32.xlu0 %v2098, 115
        %v2306 = vpop.permute.xlu0 %2305
        %2307 = vrot.lane.b32.xlu0 %v2099, 115
        %v2308 = vpop.permute.xlu0 %2307
        %2309 = vrot.lane.b32.xlu0 %v2100, 115
        %v2310 = vpop.permute.xlu0 %2309
        %2311 = vrot.lane.b32.xlu0 %v2101, 115
        %v2312 = vpop.permute.xlu0 %2311
        %vm2313 = vcmask 941056
        %v2314 = vsel %vm2313, %v2306, %v2308
        %v2315 = vsel %vm2313, %v2310, %v2312
        %v2318 = vsel %vm1927, %v2303, 0
        %v2321 = vsel %vm1927, %v2304, 0
        %v2323 = vsel %vm1934, %v2315, 0
        %2325 = vmatprep.subr.mxu0 0.0
        %2326 = vmatpush1.msra.mxu0 %v2314
        %2327 = vmatprep.subr.mxu0 0.0
        %2328 = vmatpush1.msra.mxu0 %v2323
        %2329 = vmatprep.subr.mxu0 0.0
        %2330 = vmatpush1.msra.mxu0 0.0
        %2331 = vmatprep.subr.mxu0 0.0
        %2332 = vmatpush1.msra.mxu0 0.0
        %2333 = vmatprep.subr.mxu0 0.0
        %2334 = vmatpush1.msra.mxu0 0.0
        %2335 = vmatprep.subr.mxu0 0.0
        %2336 = vmatpush1.msra.mxu0 0.0
        %2337 = vmatprep.subr.mxu0 0.0
        %2338 = vmatpush1.msra.mxu0 0.0
        %2339 = vmatprep.subr.mxu0 0.0
        %2340 = vmatpush1.msra.mxu0 0.0
        %2341 = vmatprep.subr.mxu0 0.0
        %2342 = vmatpush1.msra.mxu0 0.0
        %2343 = vmatprep.subr.mxu0 0.0
        %2344 = vmatpush1.msra.mxu0 0.0
        %2345 = vmatprep.subr.mxu0 0.0
        %2346 = vmatpush1.msra.mxu0 0.0
        %2347 = vmatprep.subr.mxu0 0.0
        %2348 = vmatpush1.msra.mxu0 0.0
        %2349 = vmatprep.subr.mxu0 0.0
        %2350 = vmatpush1.msra.mxu0 0.0
        %2351 = vmatprep.subr.mxu0 0.0
        %2352 = vmatpush1.msra.mxu0 0.0
        %2353 = vmatprep.subr.mxu0 0.0
        %2354 = vmatpush1.msra.mxu0 0.0
        %2355 = vmatprep.subr.mxu0 0.0
        %2356 = vmatpush1.msra.mxu0 0.0
        %2357 = vmatprep.subr.mxu0 0.0
        %2358 = vmatpush1.msra.mxu0 0.0
        %2359 = vmatprep.subr.mxu0 0.0
        %2360 = vmatpush1.msra.mxu0 0.0
        %2361 = vmatprep.subr.mxu0 0.0
        %2362 = vmatpush1.msra.mxu0 0.0
        %2363 = vmatprep.subr.mxu0 0.0
        %2364 = vmatpush1.msra.mxu0 0.0
        %2365 = vmatprep.subr.mxu0 0.0
        %2366 = vmatpush1.msra.mxu0 0.0
        %2367 = vmatprep.subr.mxu0 0.0
        %2368 = vmatpush1.msra.mxu0 0.0
        %2369 = vmatprep.subr.mxu0 0.0
        %2370 = vmatpush1.msra.mxu0 0.0
        %2371 = vmatprep.subr.mxu0 0.0
        %2372 = vmatpush1.msra.mxu0 0.0
        %2373 = vmatprep.subr.mxu0 0.0
        %2374 = vmatpush1.msra.mxu0 0.0
        %2375 = vmatprep.subr.mxu0 0.0
        %2376 = vmatpush1.msra.mxu0 0.0
        %2377 = vmatprep.subr.mxu0 0.0
        %2378 = vmatpush1.msra.mxu0 0.0
        %2379 = vmatprep.subr.mxu0 0.0
        %2380 = vmatpush1.msra.mxu0 0.0
        %2381 = vmatprep.subr.mxu0 0.0
        %2382 = vmatpush1.msra.mxu0 0.0
        %2383 = vmatprep.subr.mxu0 0.0
        %2384 = vmatpush1.msra.mxu0 0.0
        %2385 = vmatprep.subr.mxu0 0.0
        %2386 = vmatpush1.msra.mxu0 0.0
        %2387 = vmatprep.subr.mxu0 0.0
        %2388 = vmatpush1.msra.mxu0 0.0
        %2389 = vmatprep.mubr.f32.mxu0 0.0
        %2390 = vmatmul.mubr.f32.gmra.mrb[0].mxu0 %v2318
        %v2391 = vpop.f32.mrb[0].mxu0
        %v2392 = vadd.f32 0.0, %v2391
        %v2393 = vpop.f32.mrb[0].mxu0
        %2394 = vmatprep.mubr.f32.mxu0 0.0
        %2395 = vmatmul.mubr.f32.gmra.mrb[0].mxu0 %v2321
        %v2396 = vpop.f32.mrb[0].mxu0
        %v2397 = vadd.f32 0.0, %v2396
        %v2398 = vpop.f32.mrb[0].mxu0
        %2399 = vdwg.mxu0
        %v2400 = vadd.f32 %v2300, %v2392
        %v2401 = vadd.f32 %v2301, %v2397
        %s2402 = scalar_lea.vmem %s3, 80
        %v2403 = vld [vmem:[%s2402] sm:$0xff]
        %v2404 = vld [vmem:[%s2402 + $0x8] sm:$0x3]
        %2405 = vrot.lane.b32.xlu0 %v2098, 114
        %v2406 = vpop.permute.xlu0 %2405
        %2407 = vrot.lane.b32.xlu0 %v2099, 114
        %v2408 = vpop.permute.xlu0 %2407
        %2409 = vrot.lane.b32.xlu0 %v2100, 114
        %v2410 = vpop.permute.xlu0 %2409
        %2411 = vrot.lane.b32.xlu0 %v2101, 114
        %v2412 = vpop.permute.xlu0 %2411
        %vm2413 = vcmask 932864
        %v2414 = vsel %vm2413, %v2406, %v2408
        %v2415 = vsel %vm2413, %v2410, %v2412
        %v2418 = vsel %vm1927, %v2403, 0
        %v2421 = vsel %vm1927, %v2404, 0
        %v2423 = vsel %vm1934, %v2415, 0
        %2425 = vmatprep.subr.mxu0 0.0
        %2426 = vmatpush1.msra.mxu0 %v2414
        %2427 = vmatprep.subr.mxu0 0.0
        %2428 = vmatpush1.msra.mxu0 %v2423
        %2429 = vmatprep.subr.mxu0 0.0
        %2430 = vmatpush1.msra.mxu0 0.0
        %2431 = vmatprep.subr.mxu0 0.0
        %2432 = vmatpush1.msra.mxu0 0.0
        %2433 = vmatprep.subr.mxu0 0.0
        %2434 = vmatpush1.msra.mxu0 0.0
        %2435 = vmatprep.subr.mxu0 0.0
        %2436 = vmatpush1.msra.mxu0 0.0
        %2437 = vmatprep.subr.mxu0 0.0
        %2438 = vmatpush1.msra.mxu0 0.0
        %2439 = vmatprep.subr.mxu0 0.0
        %2440 = vmatpush1.msra.mxu0 0.0
        %2441 = vmatprep.subr.mxu0 0.0
        %2442 = vmatpush1.msra.mxu0 0.0
        %2443 = vmatprep.subr.mxu0 0.0
        %2444 = vmatpush1.msra.mxu0 0.0
        %2445 = vmatprep.subr.mxu0 0.0
        %2446 = vmatpush1.msra.mxu0 0.0
        %2447 = vmatprep.subr.mxu0 0.0
        %2448 = vmatpush1.msra.mxu0 0.0
        %2449 = vmatprep.subr.mxu0 0.0
        %2450 = vmatpush1.msra.mxu0 0.0
        %2451 = vmatprep.subr.mxu0 0.0
        %2452 = vmatpush1.msra.mxu0 0.0
        %2453 = vmatprep.subr.mxu0 0.0
        %2454 = vmatpush1.msra.mxu0 0.0
        %2455 = vmatprep.subr.mxu0 0.0
        %2456 = vmatpush1.msra.mxu0 0.0
        %2457 = vmatprep.subr.mxu0 0.0
        %2458 = vmatpush1.msra.mxu0 0.0
        %2459 = vmatprep.subr.mxu0 0.0
        %2460 = vmatpush1.msra.mxu0 0.0
        %2461 = vmatprep.subr.mxu0 0.0
        %2462 = vmatpush1.msra.mxu0 0.0
        %2463 = vmatprep.subr.mxu0 0.0
        %2464 = vmatpush1.msra.mxu0 0.0
        %2465 = vmatprep.subr.mxu0 0.0
        %2466 = vmatpush1.msra.mxu0 0.0
        %2467 = vmatprep.subr.mxu0 0.0
        %2468 = vmatpush1.msra.mxu0 0.0
        %2469 = vmatprep.subr.mxu0 0.0
        %2470 = vmatpush1.msra.mxu0 0.0
        %2471 = vmatprep.subr.mxu0 0.0
        %2472 = vmatpush1.msra.mxu0 0.0
        %2473 = vmatprep.subr.mxu0 0.0
        %2474 = vmatpush1.msra.mxu0 0.0
        %2475 = vmatprep.subr.mxu0 0.0
        %2476 = vmatpush1.msra.mxu0 0.0
        %2477 = vmatprep.subr.mxu0 0.0
        %2478 = vmatpush1.msra.mxu0 0.0
        %2479 = vmatprep.subr.mxu0 0.0
        %2480 = vmatpush1.msra.mxu0 0.0
        %2481 = vmatprep.subr.mxu0 0.0
        %2482 = vmatpush1.msra.mxu0 0.0
        %2483 = vmatprep.subr.mxu0 0.0
        %2484 = vmatpush1.msra.mxu0 0.0
        %2485 = vmatprep.subr.mxu0 0.0
        %2486 = vmatpush1.msra.mxu0 0.0
        %2487 = vmatprep.subr.mxu0 0.0
        %2488 = vmatpush1.msra.mxu0 0.0
        %2489 = vmatprep.mubr.f32.mxu0 0.0
        %2490 = vmatmul.mubr.f32.gmra.mrb[0].mxu0 %v2418
        %v2491 = vpop.f32.mrb[0].mxu0
        %v2492 = vadd.f32 0.0, %v2491
        %v2493 = vpop.f32.mrb[0].mxu0
        %2494 = vmatprep.mubr.f32.mxu0 0.0
        %2495 = vmatmul.mubr.f32.gmra.mrb[0].mxu0 %v2421
        %v2496 = vpop.f32.mrb[0].mxu0
        %v2497 = vadd.f32 0.0, %v2496
        %v2498 = vpop.f32.mrb[0].mxu0
        %2499 = vdwg.mxu0
        %v2500 = vadd.f32 %v2400, %v2492
        %v2501 = vadd.f32 %v2401, %v2497
        %s2502 = scalar_lea.vmem %s3, 96
        %v2503 = vld [vmem:[%s2502] sm:$0xff]
        %v2504 = vld [vmem:[%s2502 + $0x8] sm:$0x3]
        %2505 = vrot.lane.b32.xlu0 %v2098, 113
        %v2506 = vpop.permute.xlu0 %2505
        %2507 = vrot.lane.b32.xlu0 %v2099, 113
        %v2508 = vpop.permute.xlu0 %2507
        %2509 = vrot.lane.b32.xlu0 %v2100, 113
        %v2510 = vpop.permute.xlu0 %2509
        %2511 = vrot.lane.b32.xlu0 %v2101, 113
        %v2512 = vpop.permute.xlu0 %2511
        %vm2513 = vcmask 924672
        %v2514 = vsel %vm2513, %v2506, %v2508
        %v2515 = vsel %vm2513, %v2510, %v2512
        %v2518 = vsel %vm1927, %v2503, 0
        %v2521 = vsel %vm1927, %v2504, 0
        %v2523 = vsel %vm1934, %v2515, 0
        %2525 = vmatprep.subr.mxu0 0.0
        %2526 = vmatpush1.msra.mxu0 %v2514
        %2527 = vmatprep.subr.mxu0 0.0
        %2528 = vmatpush1.msra.mxu0 %v2523
        %2529 = vmatprep.subr.mxu0 0.0
        %2530 = vmatpush1.msra.mxu0 0.0
        %2531 = vmatprep.subr.mxu0 0.0
        %2532 = vmatpush1.msra.mxu0 0.0
        %2533 = vmatprep.subr.mxu0 0.0
        %2534 = vmatpush1.msra.mxu0 0.0
        %2535 = vmatprep.subr.mxu0 0.0
        %2536 = vmatpush1.msra.mxu0 0.0
        %2537 = vmatprep.subr.mxu0 0.0
        %2538 = vmatpush1.msra.mxu0 0.0
        %2539 = vmatprep.subr.mxu0 0.0
        %2540 = vmatpush1.msra.mxu0 0.0
        %2541 = vmatprep.subr.mxu0 0.0
        %2542 = vmatpush1.msra.mxu0 0.0
        %2543 = vmatprep.subr.mxu0 0.0
        %2544 = vmatpush1.msra.mxu0 0.0
        %2545 = vmatprep.subr.mxu0 0.0
        %2546 = vmatpush1.msra.mxu0 0.0
        %2547 = vmatprep.subr.mxu0 0.0
        %2548 = vmatpush1.msra.mxu0 0.0
        %2549 = vmatprep.subr.mxu0 0.0
        %2550 = vmatpush1.msra.mxu0 0.0
        %2551 = vmatprep.subr.mxu0 0.0
        %2552 = vmatpush1.msra.mxu0 0.0
        %2553 = vmatprep.subr.mxu0 0.0
        %2554 = vmatpush1.msra.mxu0 0.0
        %2555 = vmatprep.subr.mxu0 0.0
        %2556 = vmatpush1.msra.mxu0 0.0
        %2557 = vmatprep.subr.mxu0 0.0
        %2558 = vmatpush1.msra.mxu0 0.0
        %2559 = vmatprep.subr.mxu0 0.0
        %2560 = vmatpush1.msra.mxu0 0.0
        %2561 = vmatprep.subr.mxu0 0.0
        %2562 = vmatpush1.msra.mxu0 0.0
        %2563 = vmatprep.subr.mxu0 0.0
        %2564 = vmatpush1.msra.mxu0 0.0
        %2565 = vmatprep.subr.mxu0 0.0
        %2566 = vmatpush1.msra.mxu0 0.0
        %2567 = vmatprep.subr.mxu0 0.0
        %2568 = vmatpush1.msra.mxu0 0.0
        %2569 = vmatprep.subr.mxu0 0.0
        %2570 = vmatpush1.msra.mxu0 0.0
        %2571 = vmatprep.subr.mxu0 0.0
        %2572 = vmatpush1.msra.mxu0 0.0
        %2573 = vmatprep.subr.mxu0 0.0
        %2574 = vmatpush1.msra.mxu0 0.0
        %2575 = vmatprep.subr.mxu0 0.0
        %2576 = vmatpush1.msra.mxu0 0.0
        %2577 = vmatprep.subr.mxu0 0.0
        %2578 = vmatpush1.msra.mxu0 0.0
        %2579 = vmatprep.subr.mxu0 0.0
        %2580 = vmatpush1.msra.mxu0 0.0
        %2581 = vmatprep.subr.mxu0 0.0
        %2582 = vmatpush1.msra.mxu0 0.0
        %2583 = vmatprep.subr.mxu0 0.0
        %2584 = vmatpush1.msra.mxu0 0.0
        %2585 = vmatprep.subr.mxu0 0.0
        %2586 = vmatpush1.msra.mxu0 0.0
        %2587 = vmatprep.subr.mxu0 0.0
        %2588 = vmatpush1.msra.mxu0 0.0
        %2589 = vmatprep.mubr.f32.mxu0 0.0
        %2590 = vmatmul.mubr.f32.gmra.mrb[0].mxu0 %v2518
        %v2591 = vpop.f32.mrb[0].mxu0
        %v2592 = vadd.f32 0.0, %v2591
        %v2593 = vpop.f32.mrb[0].mxu0
        %2594 = vmatprep.mubr.f32.mxu0 0.0
        %2595 = vmatmul.mubr.f32.gmra.mrb[0].mxu0 %v2521
        %v2596 = vpop.f32.mrb[0].mxu0
        %v2597 = vadd.f32 0.0, %v2596
        %v2598 = vpop.f32.mrb[0].mxu0
        %2599 = vdwg.mxu0
        %v2600 = vadd.f32 %v2500, %v2592
        %v2601 = vadd.f32 %v2501, %v2597
        %s2602 = scalar_lea.vmem %s3, 112
        %v2603 = vld [vmem:[%s2602] sm:$0xff]
        %v2604 = vld [vmem:[%s2602 + $0x8] sm:$0x3]
        %2605 = vrot.lane.b32.xlu0 %v2098, 112
        %v2606 = vpop.permute.xlu0 %2605
        %2607 = vrot.lane.b32.xlu0 %v2099, 112
        %v2608 = vpop.permute.xlu0 %2607
        %2609 = vrot.lane.b32.xlu0 %v2100, 112
        %v2610 = vpop.permute.xlu0 %2609
        %2611 = vrot.lane.b32.xlu0 %v2101, 112
        %v2612 = vpop.permute.xlu0 %2611
        %vm2613 = vcmask 916480
        %v2614 = vsel %vm2613, %v2606, %v2608
        %v2615 = vsel %vm2613, %v2610, %v2612
        %v2618 = vsel %vm1927, %v2603, 0
        %v2621 = vsel %vm1927, %v2604, 0
        %v2623 = vsel %vm1934, %v2615, 0
        %2625 = vmatprep.subr.mxu0 0.0
        %2626 = vmatpush1.msra.mxu0 %v2614
        %2627 = vmatprep.subr.mxu0 0.0
        %2628 = vmatpush1.msra.mxu0 %v2623
        %2629 = vmatprep.subr.mxu0 0.0
        %2630 = vmatpush1.msra.mxu0 0.0
        %2631 = vmatprep.subr.mxu0 0.0
        %2632 = vmatpush1.msra.mxu0 0.0
        %2633 = vmatprep.subr.mxu0 0.0
        %2634 = vmatpush1.msra.mxu0 0.0
        %2635 = vmatprep.subr.mxu0 0.0
        %2636 = vmatpush1.msra.mxu0 0.0
        %2637 = vmatprep.subr.mxu0 0.0
        %2638 = vmatpush1.msra.mxu0 0.0
        %2639 = vmatprep.subr.mxu0 0.0
        %2640 = vmatpush1.msra.mxu0 0.0
        %2641 = vmatprep.subr.mxu0 0.0
        %2642 = vmatpush1.msra.mxu0 0.0
        %2643 = vmatprep.subr.mxu0 0.0
        %2644 = vmatpush1.msra.mxu0 0.0
        %2645 = vmatprep.subr.mxu0 0.0
        %2646 = vmatpush1.msra.mxu0 0.0
        %2647 = vmatprep.subr.mxu0 0.0
        %2648 = vmatpush1.msra.mxu0 0.0
        %2649 = vmatprep.subr.mxu0 0.0
        %2650 = vmatpush1.msra.mxu0 0.0
        %2651 = vmatprep.subr.mxu0 0.0
        %2652 = vmatpush1.msra.mxu0 0.0
        %2653 = vmatprep.subr.mxu0 0.0
        %2654 = vmatpush1.msra.mxu0 0.0
        %2655 = vmatprep.subr.mxu0 0.0
        %2656 = vmatpush1.msra.mxu0 0.0
        %2657 = vmatprep.subr.mxu0 0.0
        %2658 = vmatpush1.msra.mxu0 0.0
        %2659 = vmatprep.subr.mxu0 0.0
        %2660 = vmatpush1.msra.mxu0 0.0
        %2661 = vmatprep.subr.mxu0 0.0
        %2662 = vmatpush1.msra.mxu0 0.0
        %2663 = vmatprep.subr.mxu0 0.0
        %2664 = vmatpush1.msra.mxu0 0.0
        %2665 = vmatprep.subr.mxu0 0.0
        %2666 = vmatpush1.msra.mxu0 0.0
        %2667 = vmatprep.subr.mxu0 0.0
        %2668 = vmatpush1.msra.mxu0 0.0
        %2669 = vmatprep.subr.mxu0 0.0
        %2670 = vmatpush1.msra.mxu0 0.0
        %2671 = vmatprep.subr.mxu0 0.0
        %2672 = vmatpush1.msra.mxu0 0.0
        %2673 = vmatprep.subr.mxu0 0.0
        %2674 = vmatpush1.msra.mxu0 0.0
        %2675 = vmatprep.subr.mxu0 0.0
        %2676 = vmatpush1.msra.mxu0 0.0
        %2677 = vmatprep.subr.mxu0 0.0
        %2678 = vmatpush1.msra.mxu0 0.0
        %2679 = vmatprep.subr.mxu0 0.0
        %2680 = vmatpush1.msra.mxu0 0.0
        %2681 = vmatprep.subr.mxu0 0.0
        %2682 = vmatpush1.msra.mxu0 0.0
        %2683 = vmatprep.subr.mxu0 0.0
        %2684 = vmatpush1.msra.mxu0 0.0
        %2685 = vmatprep.subr.mxu0 0.0
        %2686 = vmatpush1.msra.mxu0 0.0
        %2687 = vmatprep.subr.mxu0 0.0
        %2688 = vmatpush1.msra.mxu0 0.0
        %2689 = vmatprep.mubr.f32.mxu0 0.0
        %2690 = vmatmul.mubr.f32.gmra.mrb[0].mxu0 %v2618
        %v2691 = vpop.f32.mrb[0].mxu0
        %v2692 = vadd.f32 0.0, %v2691
        %v2693 = vpop.f32.mrb[0].mxu0
        %2694 = vmatprep.mubr.f32.mxu0 0.0
        %2695 = vmatmul.mubr.f32.gmra.mrb[0].mxu0 %v2621
        %v2696 = vpop.f32.mrb[0].mxu0
        %v2697 = vadd.f32 0.0, %v2696
        %v2698 = vpop.f32.mrb[0].mxu0
        %2699 = vdwg.mxu0
        %v2700 = vadd.f32 %v2600, %v2692
        %v2701 = vadd.f32 %v2601, %v2697
        %s2702 = scalar_lea.vmem %s3, 128
        %v2703 = vld [vmem:[%s2702] sm:$0xff]
        %v2704 = vld [vmem:[%s2702 + $0x8] sm:$0x3]
        %2705 = vrot.lane.b32.xlu0 %v2098, 102
        %v2706 = vpop.permute.xlu0 %2705
        %2707 = vrot.lane.b32.xlu0 %v2099, 102
        %v2708 = vpop.permute.xlu0 %2707
        %2709 = vrot.lane.b32.xlu0 %v2100, 102
        %v2710 = vpop.permute.xlu0 %2709
        %2711 = vrot.lane.b32.xlu0 %v2101, 102
        %v2712 = vpop.permute.xlu0 %2711
        %vm2713 = vcmask 834560
        %v2714 = vsel %vm2713, %v2706, %v2708
        %v2715 = vsel %vm2713, %v2710, %v2712
        %v2718 = vsel %vm1927, %v2703, 0
        %v2721 = vsel %vm1927, %v2704, 0
        %v2723 = vsel %vm1934, %v2715, 0
        %2725 = vmatprep.subr.mxu0 0.0
        %2726 = vmatpush1.msra.mxu0 %v2714
        %2727 = vmatprep.subr.mxu0 0.0
        %2728 = vmatpush1.msra.mxu0 %v2723
        %2729 = vmatprep.subr.mxu0 0.0
        %2730 = vmatpush1.msra.mxu0 0.0
        %2731 = vmatprep.subr.mxu0 0.0
        %2732 = vmatpush1.msra.mxu0 0.0
        %2733 = vmatprep.subr.mxu0 0.0
        %2734 = vmatpush1.msra.mxu0 0.0
        %2735 = vmatprep.subr.mxu0 0.0
        %2736 = vmatpush1.msra.mxu0 0.0
        %2737 = vmatprep.subr.mxu0 0.0
        %2738 = vmatpush1.msra.mxu0 0.0
        %2739 = vmatprep.subr.mxu0 0.0
        %2740 = vmatpush1.msra.mxu0 0.0
        %2741 = vmatprep.subr.mxu0 0.0
        %2742 = vmatpush1.msra.mxu0 0.0
        %2743 = vmatprep.subr.mxu0 0.0
        %2744 = vmatpush1.msra.mxu0 0.0
        %2745 = vmatprep.subr.mxu0 0.0
        %2746 = vmatpush1.msra.mxu0 0.0
        %2747 = vmatprep.subr.mxu0 0.0
        %2748 = vmatpush1.msra.mxu0 0.0
        %2749 = vmatprep.subr.mxu0 0.0
        %2750 = vmatpush1.msra.mxu0 0.0
        %2751 = vmatprep.subr.mxu0 0.0
        %2752 = vmatpush1.msra.mxu0 0.0
        %2753 = vmatprep.subr.mxu0 0.0
        %2754 = vmatpush1.msra.mxu0 0.0
        %2755 = vmatprep.subr.mxu0 0.0
        %2756 = vmatpush1.msra.mxu0 0.0
        %2757 = vmatprep.subr.mxu0 0.0
        %2758 = vmatpush1.msra.mxu0 0.0
        %2759 = vmatprep.subr.mxu0 0.0
        %2760 = vmatpush1.msra.mxu0 0.0
        %2761 = vmatprep.subr.mxu0 0.0
        %2762 = vmatpush1.msra.mxu0 0.0
        %2763 = vmatprep.subr.mxu0 0.0
        %2764 = vmatpush1.msra.mxu0 0.0
        %2765 = vmatprep.subr.mxu0 0.0
        %2766 = vmatpush1.msra.mxu0 0.0
        %2767 = vmatprep.subr.mxu0 0.0
        %2768 = vmatpush1.msra.mxu0 0.0
        %2769 = vmatprep.subr.mxu0 0.0
        %2770 = vmatpush1.msra.mxu0 0.0
        %2771 = vmatprep.subr.mxu0 0.0
        %2772 = vmatpush1.msra.mxu0 0.0
        %2773 = vmatprep.subr.mxu0 0.0
        %2774 = vmatpush1.msra.mxu0 0.0
        %2775 = vmatprep.subr.mxu0 0.0
        %2776 = vmatpush1.msra.mxu0 0.0
        %2777 = vmatprep.subr.mxu0 0.0
        %2778 = vmatpush1.msra.mxu0 0.0
        %2779 = vmatprep.subr.mxu0 0.0
        %2780 = vmatpush1.msra.mxu0 0.0
        %2781 = vmatprep.subr.mxu0 0.0
        %2782 = vmatpush1.msra.mxu0 0.0
        %2783 = vmatprep.subr.mxu0 0.0
        %2784 = vmatpush1.msra.mxu0 0.0
        %2785 = vmatprep.subr.mxu0 0.0
        %2786 = vmatpush1.msra.mxu0 0.0
        %2787 = vmatprep.subr.mxu0 0.0
        %2788 = vmatpush1.msra.mxu0 0.0
        %2789 = vmatprep.mubr.f32.mxu0 0.0
        %2790 = vmatmul.mubr.f32.gmra.mrb[0].mxu0 %v2718
        %v2791 = vpop.f32.mrb[0].mxu0
        %v2792 = vadd.f32 0.0, %v2791
        %v2793 = vpop.f32.mrb[0].mxu0
        %2794 = vmatprep.mubr.f32.mxu0 0.0
        %2795 = vmatmul.mubr.f32.gmra.mrb[0].mxu0 %v2721
        %v2796 = vpop.f32.mrb[0].mxu0
        %v2797 = vadd.f32 0.0, %v2796
        %v2798 = vpop.f32.mrb[0].mxu0
        %2799 = vdwg.mxu0
        %v2800 = vadd.f32 %v2700, %v2792
        %v2801 = vadd.f32 %v2701, %v2797
        %s2802 = scalar_lea.vmem %s3, 144
        %v2803 = vld [vmem:[%s2802] sm:$0xff]
        %v2804 = vld [vmem:[%s2802 + $0x8] sm:$0x3]
        %2805 = vrot.lane.b32.xlu0 %v2098, 101
        %v2806 = vpop.permute.xlu0 %2805
        %2807 = vrot.lane.b32.xlu0 %v2099, 101
        %v2808 = vpop.permute.xlu0 %2807
        %2809 = vrot.lane.b32.xlu0 %v2100, 101
        %v2810 = vpop.permute.xlu0 %2809
        %2811 = vrot.lane.b32.xlu0 %v2101, 101
        %v2812 = vpop.permute.xlu0 %2811
        %vm2813 = vcmask 826368
        %v2814 = vsel %vm2813, %v2806, %v2808
        %v2815 = vsel %vm2813, %v2810, %v2812
        %v2818 = vsel %vm1927, %v2803, 0
        %v2821 = vsel %vm1927, %v2804, 0
        %v2823 = vsel %vm1934, %v2815, 0
        %2825 = vmatprep.subr.mxu0 0.0
        %2826 = vmatpush1.msra.mxu0 %v2814
        %2827 = vmatprep.subr.mxu0 0.0
        %2828 = vmatpush1.msra.mxu0 %v2823
        %2829 = vmatprep.subr.mxu0 0.0
        %2830 = vmatpush1.msra.mxu0 0.0
        %2831 = vmatprep.subr.mxu0 0.0
        %2832 = vmatpush1.msra.mxu0 0.0
        %2833 = vmatprep.subr.mxu0 0.0
        %2834 = vmatpush1.msra.mxu0 0.0
        %2835 = vmatprep.subr.mxu0 0.0
        %2836 = vmatpush1.msra.mxu0 0.0
        %2837 = vmatprep.subr.mxu0 0.0
        %2838 = vmatpush1.msra.mxu0 0.0
        %2839 = vmatprep.subr.mxu0 0.0
        %2840 = vmatpush1.msra.mxu0 0.0
        %2841 = vmatprep.subr.mxu0 0.0
        %2842 = vmatpush1.msra.mxu0 0.0
        %2843 = vmatprep.subr.mxu0 0.0
        %2844 = vmatpush1.msra.mxu0 0.0
        %2845 = vmatprep.subr.mxu0 0.0
        %2846 = vmatpush1.msra.mxu0 0.0
        %2847 = vmatprep.subr.mxu0 0.0
        %2848 = vmatpush1.msra.mxu0 0.0
        %2849 = vmatprep.subr.mxu0 0.0
        %2850 = vmatpush1.msra.mxu0 0.0
        %2851 = vmatprep.subr.mxu0 0.0
        %2852 = vmatpush1.msra.mxu0 0.0
        %2853 = vmatprep.subr.mxu0 0.0
        %2854 = vmatpush1.msra.mxu0 0.0
        %2855 = vmatprep.subr.mxu0 0.0
        %2856 = vmatpush1.msra.mxu0 0.0
        %2857 = vmatprep.subr.mxu0 0.0
        %2858 = vmatpush1.msra.mxu0 0.0
        %2859 = vmatprep.subr.mxu0 0.0
        %2860 = vmatpush1.msra.mxu0 0.0
        %2861 = vmatprep.subr.mxu0 0.0
        %2862 = vmatpush1.msra.mxu0 0.0
        %2863 = vmatprep.subr.mxu0 0.0
        %2864 = vmatpush1.msra.mxu0 0.0
        %2865 = vmatprep.subr.mxu0 0.0
        %2866 = vmatpush1.msra.mxu0 0.0
        %2867 = vmatprep.subr.mxu0 0.0
        %2868 = vmatpush1.msra.mxu0 0.0
        %2869 = vmatprep.subr.mxu0 0.0
        %2870 = vmatpush1.msra.mxu0 0.0
        %2871 = vmatprep.subr.mxu0 0.0
        %2872 = vmatpush1.msra.mxu0 0.0
        %2873 = vmatprep.subr.mxu0 0.0
        %2874 = vmatpush1.msra.mxu0 0.0
        %2875 = vmatprep.subr.mxu0 0.0
        %2876 = vmatpush1.msra.mxu0 0.0
        %2877 = vmatprep.subr.mxu0 0.0
        %2878 = vmatpush1.msra.mxu0 0.0
        %2879 = vmatprep.subr.mxu0 0.0
        %2880 = vmatpush1.msra.mxu0 0.0
        %2881 = vmatprep.subr.mxu0 0.0
        %2882 = vmatpush1.msra.mxu0 0.0
        %2883 = vmatprep.subr.mxu0 0.0
        %2884 = vmatpush1.msra.mxu0 0.0
        %2885 = vmatprep.subr.mxu0 0.0
        %2886 = vmatpush1.msra.mxu0 0.0
        %2887 = vmatprep.subr.mxu0 0.0
        %2888 = vmatpush1.msra.mxu0 0.0
        %2889 = vmatprep.mubr.f32.mxu0 0.0
        %2890 = vmatmul.mubr.f32.gmra.mrb[0].mxu0 %v2818
        %v2891 = vpop.f32.mrb[0].mxu0
        %v2892 = vadd.f32 0.0, %v2891
        %v2893 = vpop.f32.mrb[0].mxu0
        %2894 = vmatprep.mubr.f32.mxu0 0.0
        %2895 = vmatmul.mubr.f32.gmra.mrb[0].mxu0 %v2821
        %v2896 = vpop.f32.mrb[0].mxu0
        %v2897 = vadd.f32 0.0, %v2896
        %v2898 = vpop.f32.mrb[0].mxu0
        %2899 = vdwg.mxu0
        %v2900 = vadd.f32 %v2800, %v2892
        %v2901 = vadd.f32 %v2801, %v2897
        %s2902 = scalar_lea.vmem %s3, 160
        %v2903 = vld [vmem:[%s2902] sm:$0xff]
        %v2904 = vld [vmem:[%s2902 + $0x8] sm:$0x3]
        %2905 = vrot.lane.b32.xlu0 %v2098, 100
        %v2906 = vpop.permute.xlu0 %2905
        %2907 = vrot.lane.b32.xlu0 %v2099, 100
        %v2908 = vpop.permute.xlu0 %2907
        %2909 = vrot.lane.b32.xlu0 %v2100, 100
        %v2910 = vpop.permute.xlu0 %2909
        %2911 = vrot.lane.b32.xlu0 %v2101, 100
        %v2912 = vpop.permute.xlu0 %2911
        %v2913 = vsel %vm702, %v2906, %v2908
        %v2914 = vsel %vm702, %v2910, %v2912
        %v2917 = vsel %vm1927, %v2903, 0
        %v2920 = vsel %vm1927, %v2904, 0
        %v2922 = vsel %vm1934, %v2914, 0
        %2924 = vmatprep.subr.mxu0 0.0
        %2925 = vmatpush1.msra.mxu0 %v2913
        %2926 = vmatprep.subr.mxu0 0.0
        %2927 = vmatpush1.msra.mxu0 %v2922
        %2928 = vmatprep.subr.mxu0 0.0
        %2929 = vmatpush1.msra.mxu0 0.0
        %2930 = vmatprep.subr.mxu0 0.0
        %2931 = vmatpush1.msra.mxu0 0.0
        %2932 = vmatprep.subr.mxu0 0.0
        %2933 = vmatpush1.msra.mxu0 0.0
        %2934 = vmatprep.subr.mxu0 0.0
        %2935 = vmatpush1.msra.mxu0 0.0
        %2936 = vmatprep.subr.mxu0 0.0
        %2937 = vmatpush1.msra.mxu0 0.0
        %2938 = vmatprep.subr.mxu0 0.0
        %2939 = vmatpush1.msra.mxu0 0.0
        %2940 = vmatprep.subr.mxu0 0.0
        %2941 = vmatpush1.msra.mxu0 0.0
        %2942 = vmatprep.subr.mxu0 0.0
        %2943 = vmatpush1.msra.mxu0 0.0
        %2944 = vmatprep.subr.mxu0 0.0
        %2945 = vmatpush1.msra.mxu0 0.0
        %2946 = vmatprep.subr.mxu0 0.0
        %2947 = vmatpush1.msra.mxu0 0.0
        %2948 = vmatprep.subr.mxu0 0.0
        %2949 = vmatpush1.msra.mxu0 0.0
        %2950 = vmatprep.subr.mxu0 0.0
        %2951 = vmatpush1.msra.mxu0 0.0
        %2952 = vmatprep.subr.mxu0 0.0
        %2953 = vmatpush1.msra.mxu0 0.0
        %2954 = vmatprep.subr.mxu0 0.0
        %2955 = vmatpush1.msra.mxu0 0.0
        %2956 = vmatprep.subr.mxu0 0.0
        %2957 = vmatpush1.msra.mxu0 0.0
        %2958 = vmatprep.subr.mxu0 0.0
        %2959 = vmatpush1.msra.mxu0 0.0
        %2960 = vmatprep.subr.mxu0 0.0
        %2961 = vmatpush1.msra.mxu0 0.0
        %2962 = vmatprep.subr.mxu0 0.0
        %2963 = vmatpush1.msra.mxu0 0.0
        %2964 = vmatprep.subr.mxu0 0.0
        %2965 = vmatpush1.msra.mxu0 0.0
        %2966 = vmatprep.subr.mxu0 0.0
        %2967 = vmatpush1.msra.mxu0 0.0
        %2968 = vmatprep.subr.mxu0 0.0
        %2969 = vmatpush1.msra.mxu0 0.0
        %2970 = vmatprep.subr.mxu0 0.0
        %2971 = vmatpush1.msra.mxu0 0.0
        %2972 = vmatprep.subr.mxu0 0.0
        %2973 = vmatpush1.msra.mxu0 0.0
        %2974 = vmatprep.subr.mxu0 0.0
        %2975 = vmatpush1.msra.mxu0 0.0
        %2976 = vmatprep.subr.mxu0 0.0
        %2977 = vmatpush1.msra.mxu0 0.0
        %2978 = vmatprep.subr.mxu0 0.0
        %2979 = vmatpush1.msra.mxu0 0.0
        %2980 = vmatprep.subr.mxu0 0.0
        %2981 = vmatpush1.msra.mxu0 0.0
        %2982 = vmatprep.subr.mxu0 0.0
        %2983 = vmatpush1.msra.mxu0 0.0
        %2984 = vmatprep.subr.mxu0 0.0
        %2985 = vmatpush1.msra.mxu0 0.0
        %2986 = vmatprep.subr.mxu0 0.0
        %2987 = vmatpush1.msra.mxu0 0.0
        %2988 = vmatprep.mubr.f32.mxu0 0.0
        %2989 = vmatmul.mubr.f32.gmra.mrb[0].mxu0 %v2917
        %v2990 = vpop.f32.mrb[0].mxu0
        %v2991 = vadd.f32 0.0, %v2990
        %v2992 = vpop.f32.mrb[0].mxu0
        %2993 = vmatprep.mubr.f32.mxu0 0.0
        %2994 = vmatmul.mubr.f32.gmra.mrb[0].mxu0 %v2920
        %v2995 = vpop.f32.mrb[0].mxu0
        %v2996 = vadd.f32 0.0, %v2995
        %v2997 = vpop.f32.mrb[0].mxu0
        %2998 = vdwg.mxu0
        %v2999 = vadd.f32 %v2900, %v2991
        %v3000 = vadd.f32 %v2901, %v2996
        %s3001 = scalar_lea.vmem %s3, 176
        %v3002 = vld [vmem:[%s3001] sm:$0xff]
        %v3003 = vld [vmem:[%s3001 + $0x8] sm:$0x3]
        %3004 = vrot.lane.b32.xlu0 %v2098, 99
        %v3005 = vpop.permute.xlu0 %3004
        %3006 = vrot.lane.b32.xlu0 %v2099, 99
        %v3007 = vpop.permute.xlu0 %3006
        %3008 = vrot.lane.b32.xlu0 %v2100, 99
        %v3009 = vpop.permute.xlu0 %3008
        %3010 = vrot.lane.b32.xlu0 %v2101, 99
        %v3011 = vpop.permute.xlu0 %3010
        %v3012 = vsel %vm798, %v3005, %v3007
        %v3013 = vsel %vm798, %v3009, %v3011
        %v3016 = vsel %vm1927, %v3002, 0
        %v3019 = vsel %vm1927, %v3003, 0
        %v3021 = vsel %vm1934, %v3013, 0
        %3023 = vmatprep.subr.mxu0 0.0
        %3024 = vmatpush1.msra.mxu0 %v3012
        %3025 = vmatprep.subr.mxu0 0.0
        %3026 = vmatpush1.msra.mxu0 %v3021
        %3027 = vmatprep.subr.mxu0 0.0
        %3028 = vmatpush1.msra.mxu0 0.0
        %3029 = vmatprep.subr.mxu0 0.0
        %3030 = vmatpush1.msra.mxu0 0.0
        %3031 = vmatprep.subr.mxu0 0.0
        %3032 = vmatpush1.msra.mxu0 0.0
        %3033 = vmatprep.subr.mxu0 0.0
        %3034 = vmatpush1.msra.mxu0 0.0
        %3035 = vmatprep.subr.mxu0 0.0
        %3036 = vmatpush1.msra.mxu0 0.0
        %3037 = vmatprep.subr.mxu0 0.0
        %3038 = vmatpush1.msra.mxu0 0.0
        %3039 = vmatprep.subr.mxu0 0.0
        %3040 = vmatpush1.msra.mxu0 0.0
        %3041 = vmatprep.subr.mxu0 0.0
        %3042 = vmatpush1.msra.mxu0 0.0
        %3043 = vmatprep.subr.mxu0 0.0
        %3044 = vmatpush1.msra.mxu0 0.0
        %3045 = vmatprep.subr.mxu0 0.0
        %3046 = vmatpush1.msra.mxu0 0.0
        %3047 = vmatprep.subr.mxu0 0.0
        %3048 = vmatpush1.msra.mxu0 0.0
        %3049 = vmatprep.subr.mxu0 0.0
        %3050 = vmatpush1.msra.mxu0 0.0
        %3051 = vmatprep.subr.mxu0 0.0
        %3052 = vmatpush1.msra.mxu0 0.0
        %3053 = vmatprep.subr.mxu0 0.0
        %3054 = vmatpush1.msra.mxu0 0.0
        %3055 = vmatprep.subr.mxu0 0.0
        %3056 = vmatpush1.msra.mxu0 0.0
        %3057 = vmatprep.subr.mxu0 0.0
        %3058 = vmatpush1.msra.mxu0 0.0
        %3059 = vmatprep.subr.mxu0 0.0
        %3060 = vmatpush1.msra.mxu0 0.0
        %3061 = vmatprep.subr.mxu0 0.0
        %3062 = vmatpush1.msra.mxu0 0.0
        %3063 = vmatprep.subr.mxu0 0.0
        %3064 = vmatpush1.msra.mxu0 0.0
        %3065 = vmatprep.subr.mxu0 0.0
        %3066 = vmatpush1.msra.mxu0 0.0
        %3067 = vmatprep.subr.mxu0 0.0
        %3068 = vmatpush1.msra.mxu0 0.0
        %3069 = vmatprep.subr.mxu0 0.0
        %3070 = vmatpush1.msra.mxu0 0.0
        %3071 = vmatprep.subr.mxu0 0.0
        %3072 = vmatpush1.msra.mxu0 0.0
        %3073 = vmatprep.subr.mxu0 0.0
        %3074 = vmatpush1.msra.mxu0 0.0
        %3075 = vmatprep.subr.mxu0 0.0
        %3076 = vmatpush1.msra.mxu0 0.0
        %3077 = vmatprep.subr.mxu0 0.0
        %3078 = vmatpush1.msra.mxu0 0.0
        %3079 = vmatprep.subr.mxu0 0.0
        %3080 = vmatpush1.msra.mxu0 0.0
        %3081 = vmatprep.subr.mxu0 0.0
        %3082 = vmatpush1.msra.mxu0 0.0
        %3083 = vmatprep.subr.mxu0 0.0
        %3084 = vmatpush1.msra.mxu0 0.0
        %3085 = vmatprep.subr.mxu0 0.0
        %3086 = vmatpush1.msra.mxu0 0.0
        %3087 = vmatprep.mubr.f32.mxu0 0.0
        %3088 = vmatmul.mubr.f32.gmra.mrb[0].mxu0 %v3016
        %v3089 = vpop.f32.mrb[0].mxu0
        %v3090 = vadd.f32 0.0, %v3089
        %v3091 = vpop.f32.mrb[0].mxu0
        %3092 = vmatprep.mubr.f32.mxu0 0.0
        %3093 = vmatmul.mubr.f32.gmra.mrb[0].mxu0 %v3019
        %v3094 = vpop.f32.mrb[0].mxu0
        %v3095 = vadd.f32 0.0, %v3094
        %v3096 = vpop.f32.mrb[0].mxu0
        %3097 = vdwg.mxu0
        %v3098 = vadd.f32 %v2999, %v3090
        %v3099 = vadd.f32 %v3000, %v3095
        %s3100 = scalar_lea.vmem %s3, 192
        %v3101 = vld [vmem:[%s3100] sm:$0xff]
        %v3102 = vld [vmem:[%s3100 + $0x8] sm:$0x3]
        %3103 = vrot.lane.b32.xlu0 %v2098, 89
        %v3104 = vpop.permute.xlu0 %3103
        %3105 = vrot.lane.b32.xlu0 %v2099, 89
        %v3106 = vpop.permute.xlu0 %3105
        %3107 = vrot.lane.b32.xlu0 %v2100, 89
        %v3108 = vpop.permute.xlu0 %3107
        %3109 = vrot.lane.b32.xlu0 %v2101, 89
        %v3110 = vpop.permute.xlu0 %3109
        %vm3111 = vcmask 728064
        %v3112 = vsel %vm3111, %v3104, %v3106
        %v3113 = vsel %vm3111, %v3108, %v3110
        %v3116 = vsel %vm1927, %v3101, 0
        %v3119 = vsel %vm1927, %v3102, 0
        %v3121 = vsel %vm1934, %v3113, 0
        %3123 = vmatprep.subr.mxu0 0.0
        %3124 = vmatpush1.msra.mxu0 %v3112
        %3125 = vmatprep.subr.mxu0 0.0
        %3126 = vmatpush1.msra.mxu0 %v3121
        %3127 = vmatprep.subr.mxu0 0.0
        %3128 = vmatpush1.msra.mxu0 0.0
        %3129 = vmatprep.subr.mxu0 0.0
        %3130 = vmatpush1.msra.mxu0 0.0
        %3131 = vmatprep.subr.mxu0 0.0
        %3132 = vmatpush1.msra.mxu0 0.0
        %3133 = vmatprep.subr.mxu0 0.0
        %3134 = vmatpush1.msra.mxu0 0.0
        %3135 = vmatprep.subr.mxu0 0.0
        %3136 = vmatpush1.msra.mxu0 0.0
        %3137 = vmatprep.subr.mxu0 0.0
        %3138 = vmatpush1.msra.mxu0 0.0
        %3139 = vmatprep.subr.mxu0 0.0
        %3140 = vmatpush1.msra.mxu0 0.0
        %3141 = vmatprep.subr.mxu0 0.0
        %3142 = vmatpush1.msra.mxu0 0.0
        %3143 = vmatprep.subr.mxu0 0.0
        %3144 = vmatpush1.msra.mxu0 0.0
        %3145 = vmatprep.subr.mxu0 0.0
        %3146 = vmatpush1.msra.mxu0 0.0
        %3147 = vmatprep.subr.mxu0 0.0
        %3148 = vmatpush1.msra.mxu0 0.0
        %3149 = vmatprep.subr.mxu0 0.0
        %3150 = vmatpush1.msra.mxu0 0.0
        %3151 = vmatprep.subr.mxu0 0.0
        %3152 = vmatpush1.msra.mxu0 0.0
        %3153 = vmatprep.subr.mxu0 0.0
        %3154 = vmatpush1.msra.mxu0 0.0
        %3155 = vmatprep.subr.mxu0 0.0
        %3156 = vmatpush1.msra.mxu0 0.0
        %3157 = vmatprep.subr.mxu0 0.0
        %3158 = vmatpush1.msra.mxu0 0.0
        %3159 = vmatprep.subr.mxu0 0.0
        %3160 = vmatpush1.msra.mxu0 0.0
        %3161 = vmatprep.subr.mxu0 0.0
        %3162 = vmatpush1.msra.mxu0 0.0
        %3163 = vmatprep.subr.mxu0 0.0
        %3164 = vmatpush1.msra.mxu0 0.0
        %3165 = vmatprep.subr.mxu0 0.0
        %3166 = vmatpush1.msra.mxu0 0.0
        %3167 = vmatprep.subr.mxu0 0.0
        %3168 = vmatpush1.msra.mxu0 0.0
        %3169 = vmatprep.subr.mxu0 0.0
        %3170 = vmatpush1.msra.mxu0 0.0
        %3171 = vmatprep.subr.mxu0 0.0
        %3172 = vmatpush1.msra.mxu0 0.0
        %3173 = vmatprep.subr.mxu0 0.0
        %3174 = vmatpush1.msra.mxu0 0.0
        %3175 = vmatprep.subr.mxu0 0.0
        %3176 = vmatpush1.msra.mxu0 0.0
        %3177 = vmatprep.subr.mxu0 0.0
        %3178 = vmatpush1.msra.mxu0 0.0
        %3179 = vmatprep.subr.mxu0 0.0
        %3180 = vmatpush1.msra.mxu0 0.0
        %3181 = vmatprep.subr.mxu0 0.0
        %3182 = vmatpush1.msra.mxu0 0.0
        %3183 = vmatprep.subr.mxu0 0.0
        %3184 = vmatpush1.msra.mxu0 0.0
        %3185 = vmatprep.subr.mxu0 0.0
        %3186 = vmatpush1.msra.mxu0 0.0
        %3187 = vmatprep.mubr.f32.mxu0 0.0
        %3188 = vmatmul.mubr.f32.gmra.mrb[0].mxu0 %v3116
        %v3189 = vpop.f32.mrb[0].mxu0
        %v3190 = vadd.f32 0.0, %v3189
        %v3191 = vpop.f32.mrb[0].mxu0
        %3192 = vmatprep.mubr.f32.mxu0 0.0
        %3193 = vmatmul.mubr.f32.gmra.mrb[0].mxu0 %v3119
        %v3194 = vpop.f32.mrb[0].mxu0
        %v3195 = vadd.f32 0.0, %v3194
        %v3196 = vpop.f32.mrb[0].mxu0
        %3197 = vdwg.mxu0
        %v3198 = vadd.f32 %v3098, %v3190
        %v3199 = vadd.f32 %v3099, %v3195
        %s3200 = scalar_lea.vmem %s3, 208
        %v3201 = vld [vmem:[%s3200] sm:$0xff]
        %v3202 = vld [vmem:[%s3200 + $0x8] sm:$0x3]
        %3203 = vrot.lane.b32.xlu0 %v2098, 88
        %v3204 = vpop.permute.xlu0 %3203
        %3205 = vrot.lane.b32.xlu0 %v2099, 88
        %v3206 = vpop.permute.xlu0 %3205
        %3207 = vrot.lane.b32.xlu0 %v2100, 88
        %v3208 = vpop.permute.xlu0 %3207
        %3209 = vrot.lane.b32.xlu0 %v2101, 88
        %v3210 = vpop.permute.xlu0 %3209
        %vm3211 = vcmask 719872
        %v3212 = vsel %vm3211, %v3204, %v3206
        %v3213 = vsel %vm3211, %v3208, %v3210
        %v3216 = vsel %vm1927, %v3201, 0
        %v3219 = vsel %vm1927, %v3202, 0
        %v3221 = vsel %vm1934, %v3213, 0
        %3223 = vmatprep.subr.mxu0 0.0
        %3224 = vmatpush1.msra.mxu0 %v3212
        %3225 = vmatprep.subr.mxu0 0.0
        %3226 = vmatpush1.msra.mxu0 %v3221
        %3227 = vmatprep.subr.mxu0 0.0
        %3228 = vmatpush1.msra.mxu0 0.0
        %3229 = vmatprep.subr.mxu0 0.0
        %3230 = vmatpush1.msra.mxu0 0.0
        %3231 = vmatprep.subr.mxu0 0.0
        %3232 = vmatpush1.msra.mxu0 0.0
        %3233 = vmatprep.subr.mxu0 0.0
        %3234 = vmatpush1.msra.mxu0 0.0
        %3235 = vmatprep.subr.mxu0 0.0
        %3236 = vmatpush1.msra.mxu0 0.0
        %3237 = vmatprep.subr.mxu0 0.0
        %3238 = vmatpush1.msra.mxu0 0.0
        %3239 = vmatprep.subr.mxu0 0.0
        %3240 = vmatpush1.msra.mxu0 0.0
        %3241 = vmatprep.subr.mxu0 0.0
        %3242 = vmatpush1.msra.mxu0 0.0
        %3243 = vmatprep.subr.mxu0 0.0
        %3244 = vmatpush1.msra.mxu0 0.0
        %3245 = vmatprep.subr.mxu0 0.0
        %3246 = vmatpush1.msra.mxu0 0.0
        %3247 = vmatprep.subr.mxu0 0.0
        %3248 = vmatpush1.msra.mxu0 0.0
        %3249 = vmatprep.subr.mxu0 0.0
        %3250 = vmatpush1.msra.mxu0 0.0
        %3251 = vmatprep.subr.mxu0 0.0
        %3252 = vmatpush1.msra.mxu0 0.0
        %3253 = vmatprep.subr.mxu0 0.0
        %3254 = vmatpush1.msra.mxu0 0.0
        %3255 = vmatprep.subr.mxu0 0.0
        %3256 = vmatpush1.msra.mxu0 0.0
        %3257 = vmatprep.subr.mxu0 0.0
        %3258 = vmatpush1.msra.mxu0 0.0
        %3259 = vmatprep.subr.mxu0 0.0
        %3260 = vmatpush1.msra.mxu0 0.0
        %3261 = vmatprep.subr.mxu0 0.0
        %3262 = vmatpush1.msra.mxu0 0.0
        %3263 = vmatprep.subr.mxu0 0.0
        %3264 = vmatpush1.msra.mxu0 0.0
        %3265 = vmatprep.subr.mxu0 0.0
        %3266 = vmatpush1.msra.mxu0 0.0
        %3267 = vmatprep.subr.mxu0 0.0
        %3268 = vmatpush1.msra.mxu0 0.0
        %3269 = vmatprep.subr.mxu0 0.0
        %3270 = vmatpush1.msra.mxu0 0.0
        %3271 = vmatprep.subr.mxu0 0.0
        %3272 = vmatpush1.msra.mxu0 0.0
        %3273 = vmatprep.subr.mxu0 0.0
        %3274 = vmatpush1.msra.mxu0 0.0
        %3275 = vmatprep.subr.mxu0 0.0
        %3276 = vmatpush1.msra.mxu0 0.0
        %3277 = vmatprep.subr.mxu0 0.0
        %3278 = vmatpush1.msra.mxu0 0.0
        %3279 = vmatprep.subr.mxu0 0.0
        %3280 = vmatpush1.msra.mxu0 0.0
        %3281 = vmatprep.subr.mxu0 0.0
        %3282 = vmatpush1.msra.mxu0 0.0
        %3283 = vmatprep.subr.mxu0 0.0
        %3284 = vmatpush1.msra.mxu0 0.0
        %3285 = vmatprep.subr.mxu0 0.0
        %3286 = vmatpush1.msra.mxu0 0.0
        %3287 = vmatprep.mubr.f32.mxu0 0.0
        %3288 = vmatmul.mubr.f32.gmra.mrb[0].mxu0 %v3216
        %v3289 = vpop.f32.mrb[0].mxu0
        %v3290 = vadd.f32 0.0, %v3289
        %v3291 = vpop.f32.mrb[0].mxu0
        %3292 = vmatprep.mubr.f32.mxu0 0.0
        %3293 = vmatmul.mubr.f32.gmra.mrb[0].mxu0 %v3219
        %v3294 = vpop.f32.mrb[0].mxu0
        %v3295 = vadd.f32 0.0, %v3294
        %v3296 = vpop.f32.mrb[0].mxu0
        %3297 = vdwg.mxu0
        %v3298 = vadd.f32 %v3198, %v3290
        %v3299 = vadd.f32 %v3199, %v3295
        %s3300 = scalar_lea.vmem %s3, 224
        %v3301 = vld [vmem:[%s3300] sm:$0xff]
        %v3302 = vld [vmem:[%s3300 + $0x8] sm:$0x3]
        %3303 = vrot.lane.b32.xlu0 %v2098, 87
        %v3304 = vpop.permute.xlu0 %3303
        %3305 = vrot.lane.b32.xlu0 %v2099, 87
        %v3306 = vpop.permute.xlu0 %3305
        %3307 = vrot.lane.b32.xlu0 %v2100, 87
        %v3308 = vpop.permute.xlu0 %3307
        %3309 = vrot.lane.b32.xlu0 %v2101, 87
        %v3310 = vpop.permute.xlu0 %3309
        %vm3311 = vcmask 711680
        %v3312 = vsel %vm3311, %v3304, %v3306
        %v3313 = vsel %vm3311, %v3308, %v3310
        %v3316 = vsel %vm1927, %v3301, 0
        %v3319 = vsel %vm1927, %v3302, 0
        %v3321 = vsel %vm1934, %v3313, 0
        %3323 = vmatprep.subr.mxu0 0.0
        %3324 = vmatpush1.msra.mxu0 %v3312
        %3325 = vmatprep.subr.mxu0 0.0
        %3326 = vmatpush1.msra.mxu0 %v3321
        %3327 = vmatprep.subr.mxu0 0.0
        %3328 = vmatpush1.msra.mxu0 0.0
        %3329 = vmatprep.subr.mxu0 0.0
        %3330 = vmatpush1.msra.mxu0 0.0
        %3331 = vmatprep.subr.mxu0 0.0
        %3332 = vmatpush1.msra.mxu0 0.0
        %3333 = vmatprep.subr.mxu0 0.0
        %3334 = vmatpush1.msra.mxu0 0.0
        %3335 = vmatprep.subr.mxu0 0.0
        %3336 = vmatpush1.msra.mxu0 0.0
        %3337 = vmatprep.subr.mxu0 0.0
        %3338 = vmatpush1.msra.mxu0 0.0
        %3339 = vmatprep.subr.mxu0 0.0
        %3340 = vmatpush1.msra.mxu0 0.0
        %3341 = vmatprep.subr.mxu0 0.0
        %3342 = vmatpush1.msra.mxu0 0.0
        %3343 = vmatprep.subr.mxu0 0.0
        %3344 = vmatpush1.msra.mxu0 0.0
        %3345 = vmatprep.subr.mxu0 0.0
        %3346 = vmatpush1.msra.mxu0 0.0
        %3347 = vmatprep.subr.mxu0 0.0
        %3348 = vmatpush1.msra.mxu0 0.0
        %3349 = vmatprep.subr.mxu0 0.0
        %3350 = vmatpush1.msra.mxu0 0.0
        %3351 = vmatprep.subr.mxu0 0.0
        %3352 = vmatpush1.msra.mxu0 0.0
        %3353 = vmatprep.subr.mxu0 0.0
        %3354 = vmatpush1.msra.mxu0 0.0
        %3355 = vmatprep.subr.mxu0 0.0
        %3356 = vmatpush1.msra.mxu0 0.0
        %3357 = vmatprep.subr.mxu0 0.0
        %3358 = vmatpush1.msra.mxu0 0.0
        %3359 = vmatprep.subr.mxu0 0.0
        %3360 = vmatpush1.msra.mxu0 0.0
        %3361 = vmatprep.subr.mxu0 0.0
        %3362 = vmatpush1.msra.mxu0 0.0
        %3363 = vmatprep.subr.mxu0 0.0
        %3364 = vmatpush1.msra.mxu0 0.0
        %3365 = vmatprep.subr.mxu0 0.0
        %3366 = vmatpush1.msra.mxu0 0.0
        %3367 = vmatprep.subr.mxu0 0.0
        %3368 = vmatpush1.msra.mxu0 0.0
        %3369 = vmatprep.subr.mxu0 0.0
        %3370 = vmatpush1.msra.mxu0 0.0
        %3371 = vmatprep.subr.mxu0 0.0
        %3372 = vmatpush1.msra.mxu0 0.0
        %3373 = vmatprep.subr.mxu0 0.0
        %3374 = vmatpush1.msra.mxu0 0.0
        %3375 = vmatprep.subr.mxu0 0.0
        %3376 = vmatpush1.msra.mxu0 0.0
        %3377 = vmatprep.subr.mxu0 0.0
        %3378 = vmatpush1.msra.mxu0 0.0
        %3379 = vmatprep.subr.mxu0 0.0
        %3380 = vmatpush1.msra.mxu0 0.0
        %3381 = vmatprep.subr.mxu0 0.0
        %3382 = vmatpush1.msra.mxu0 0.0
        %3383 = vmatprep.subr.mxu0 0.0
        %3384 = vmatpush1.msra.mxu0 0.0
        %3385 = vmatprep.subr.mxu0 0.0
        %3386 = vmatpush1.msra.mxu0 0.0
        %3387 = vmatprep.mubr.f32.mxu0 0.0
        %3388 = vmatmul.mubr.f32.gmra.mrb[0].mxu0 %v3316
        %v3389 = vpop.f32.mrb[0].mxu0
        %v3390 = vadd.f32 0.0, %v3389
        %v3391 = vpop.f32.mrb[0].mxu0
        %3392 = vmatprep.mubr.f32.mxu0 0.0
        %3393 = vmatmul.mubr.f32.gmra.mrb[0].mxu0 %v3319
        %v3394 = vpop.f32.mrb[0].mxu0
        %v3395 = vadd.f32 0.0, %v3394
        %v3396 = vpop.f32.mrb[0].mxu0
        %3397 = vdwg.mxu0
        %v3398 = vadd.f32 %v3298, %v3390
        %v3399 = vadd.f32 %v3299, %v3395
        %s3400 = scalar_lea.vmem %s3, 240
        %v3401 = vld [vmem:[%s3400] sm:$0xff]
        %v3402 = vld [vmem:[%s3400 + $0x8] sm:$0x3]
        %3403 = vrot.lane.b32.xlu0 %v2098, 86
        %v3404 = vpop.permute.xlu0 %3403
        %3405 = vrot.lane.b32.xlu0 %v2099, 86
        %v3406 = vpop.permute.xlu0 %3405
        %3407 = vrot.lane.b32.xlu0 %v2100, 86
        %v3408 = vpop.permute.xlu0 %3407
        %3409 = vrot.lane.b32.xlu0 %v2101, 86
        %v3410 = vpop.permute.xlu0 %3409
        %v3411 = vsel %vm1325, %v3404, %v3406
        %v3412 = vsel %vm1325, %v3408, %v3410
        %v3415 = vsel %vm1927, %v3401, 0
        %v3418 = vsel %vm1927, %v3402, 0
        %v3420 = vsel %vm1934, %v3412, 0
        %3422 = vmatprep.subr.mxu0 0.0
        %3423 = vmatpush1.msra.mxu0 %v3411
        %3424 = vmatprep.subr.mxu0 0.0
        %3425 = vmatpush1.msra.mxu0 %v3420
        %3426 = vmatprep.subr.mxu0 0.0
        %3427 = vmatpush1.msra.mxu0 0.0
        %3428 = vmatprep.subr.mxu0 0.0
        %3429 = vmatpush1.msra.mxu0 0.0
        %3430 = vmatprep.subr.mxu0 0.0
        %3431 = vmatpush1.msra.mxu0 0.0
        %3432 = vmatprep.subr.mxu0 0.0
        %3433 = vmatpush1.msra.mxu0 0.0
        %3434 = vmatprep.subr.mxu0 0.0
        %3435 = vmatpush1.msra.mxu0 0.0
        %3436 = vmatprep.subr.mxu0 0.0
        %3437 = vmatpush1.msra.mxu0 0.0
        %3438 = vmatprep.subr.mxu0 0.0
        %3439 = vmatpush1.msra.mxu0 0.0
        %3440 = vmatprep.subr.mxu0 0.0
        %3441 = vmatpush1.msra.mxu0 0.0
        %3442 = vmatprep.subr.mxu0 0.0
        %3443 = vmatpush1.msra.mxu0 0.0
        %3444 = vmatprep.subr.mxu0 0.0
        %3445 = vmatpush1.msra.mxu0 0.0
        %3446 = vmatprep.subr.mxu0 0.0
        %3447 = vmatpush1.msra.mxu0 0.0
        %3448 = vmatprep.subr.mxu0 0.0
        %3449 = vmatpush1.msra.mxu0 0.0
        %3450 = vmatprep.subr.mxu0 0.0
        %3451 = vmatpush1.msra.mxu0 0.0
        %3452 = vmatprep.subr.mxu0 0.0
        %3453 = vmatpush1.msra.mxu0 0.0
        %3454 = vmatprep.subr.mxu0 0.0
        %3455 = vmatpush1.msra.mxu0 0.0
        %3456 = vmatprep.subr.mxu0 0.0
        %3457 = vmatpush1.msra.mxu0 0.0
        %3458 = vmatprep.subr.mxu0 0.0
        %3459 = vmatpush1.msra.mxu0 0.0
        %3460 = vmatprep.subr.mxu0 0.0
        %3461 = vmatpush1.msra.mxu0 0.0
        %3462 = vmatprep.subr.mxu0 0.0
        %3463 = vmatpush1.msra.mxu0 0.0
        %3464 = vmatprep.subr.mxu0 0.0
        %3465 = vmatpush1.msra.mxu0 0.0
        %3466 = vmatprep.subr.mxu0 0.0
        %3467 = vmatpush1.msra.mxu0 0.0
        %3468 = vmatprep.subr.mxu0 0.0
        %3469 = vmatpush1.msra.mxu0 0.0
        %3470 = vmatprep.subr.mxu0 0.0
        %3471 = vmatpush1.msra.mxu0 0.0
        %3472 = vmatprep.subr.mxu0 0.0
        %3473 = vmatpush1.msra.mxu0 0.0
        %3474 = vmatprep.subr.mxu0 0.0
        %3475 = vmatpush1.msra.mxu0 0.0
        %3476 = vmatprep.subr.mxu0 0.0
        %3477 = vmatpush1.msra.mxu0 0.0
        %3478 = vmatprep.subr.mxu0 0.0
        %3479 = vmatpush1.msra.mxu0 0.0
        %3480 = vmatprep.subr.mxu0 0.0
        %3481 = vmatpush1.msra.mxu0 0.0
        %3482 = vmatprep.subr.mxu0 0.0
        %3483 = vmatpush1.msra.mxu0 0.0
        %3484 = vmatprep.subr.mxu0 0.0
        %3485 = vmatpush1.msra.mxu0 0.0
        %3486 = vmatprep.mubr.f32.mxu0 0.0
        %3487 = vmatmul.mubr.f32.gmra.mrb[0].mxu0 %v3415
        %v3488 = vpop.f32.mrb[0].mxu0
        %v3489 = vadd.f32 0.0, %v3488
        %v3490 = vpop.f32.mrb[0].mxu0
        %3491 = vmatprep.mubr.f32.mxu0 0.0
        %3492 = vmatmul.mubr.f32.gmra.mrb[0].mxu0 %v3418
        %v3493 = vpop.f32.mrb[0].mxu0
        %v3494 = vadd.f32 0.0, %v3493
        %v3495 = vpop.f32.mrb[0].mxu0
        %3496 = vdwg.mxu0
        %v3497 = vadd.f32 %v3398, %v3489
        %v3498 = vadd.f32 %v3399, %v3494
        %v3499 = vld [vmem:[%s4] sm:$0xff]
        %v3500 = vld [vmem:[%s4 + $0x8] sm:$0x3]
        %3502 = vset.pattern.permute.xlu0 0
        %3503 = vperm.xlu0 %3502, %v3499
        %v3504 = vpop.permute.xlu0 %3503
        %3507 = vset.pattern.permute.xlu0 0
        %3508 = vperm.xlu0 %3507, %v3500
        %v3509 = vpop.permute.xlu0 %3508
        %v3511 = vadd.f32 %v3497, %v3504
        %v3512 = vadd.f32 %v3498, %v3509
        %v3513 = vmax.f32 %v3511, 0.0
        %v3514 = vmax.f32 %v3512, 0.0
        %3515 = vst.msk [vmem:[#allocation4] sm:$0xff] %vm510, %v3513
        %vm3516 = vcmask 1033216
        %3517 = vst.msk [vmem:[#allocation4 + $0x8] sm:$0x3] %vm3516, %v3514
        %v3518 = vld [vmem:[#allocation4] sm:$0xff]
        %v3519 = vld [vmem:[#allocation4 + $0x8] sm:$0x3]
        %3522 = vrot.lane.b32.xlu0 %v3518, 127
        %v3523 = vpop.permute.xlu0 %3522
        %3524 = vrot.lane.b32.xlu0 %v3519, 127
        %v3525 = vpop.permute.xlu0 %3524
        %v3528 = vmax.f32 %v3518, %v3523
        %v3529 = vmax.f32 %v3519, %v3525
        %3532 = vrot.lane.b32.xlu0 %v3528, 115
        %v3533 = vpop.permute.xlu0 %3532
        %3534 = vrot.lane.b32.xlu0 %v3529, 115
        %v3535 = vpop.permute.xlu0 %3534
        %v3538 = vmax.f32 %v3528, %v3533
        %v3539 = vmax.f32 %v3529, %v3535
        %v3540 = vld [vmem:[%s6] sm:$0xff]
        %v3541 = vld [vmem:[%s6 + $0x8] sm:$0xff]
        %v3542 = vld [vmem:[%s6 + $0x10] sm:$0xff]
        %v3543 = vld [vmem:[%s6 + $0x18] sm:$0xff]
        %v3544 = vld [vmem:[%s6 + $0x20] sm:$0xff]
        %v3545 = vld [vmem:[%s6 + $0x28] sm:$0xff]
        %v3546 = vld [vmem:[%s6 + $0x30] sm:$0xff]
        %v3547 = vld [vmem:[%s6 + $0x38] sm:$0xff]
        %v3548 = vld [vmem:[%s6 + $0x40] sm:$0xff]
        %v3549 = vld [vmem:[%s6 + $0x48] sm:$0xff]
        %v3550 = vld [vmem:[%s6 + $0x50] sm:$0xff]
        %v3551 = vld [vmem:[%s6 + $0x58] sm:$0xff]
        %v3552 = vld [vmem:[%s6 + $0x60] sm:$0xff]
        %v3553 = vld [vmem:[%s6 + $0x68] sm:$0xff]
        %v3554 = vld [vmem:[%s6 + $0x70] sm:$0x1]
        %v3556 = vsel %vm2513, %v3538, 0
        %v3559 = vsel %vm2513, %v3539, 0
        %v3562 = vsel %vm1669, %v3554, 0
        %3564 = vmatprep.subr.mxu0 0.0
        %3565 = vmatpush1.msra.mxu0 %v3540
        %3566 = vmatprep.subr.mxu0 0.0
        %3567 = vmatpush1.msra.mxu0 %v3541
        %3568 = vmatprep.subr.mxu0 0.0
        %3569 = vmatpush1.msra.mxu0 %v3542
        %3570 = vmatprep.subr.mxu0 0.0
        %3571 = vmatpush1.msra.mxu0 %v3543
        %3572 = vmatprep.subr.mxu0 0.0
        %3573 = vmatpush1.msra.mxu0 %v3544
        %3574 = vmatprep.subr.mxu0 0.0
        %3575 = vmatpush1.msra.mxu0 %v3545
        %3576 = vmatprep.subr.mxu0 0.0
        %3577 = vmatpush1.msra.mxu0 %v3546
        %3578 = vmatprep.subr.mxu0 0.0
        %3579 = vmatpush1.msra.mxu0 %v3547
        %3580 = vmatprep.subr.mxu0 0.0
        %3581 = vmatpush1.msra.mxu0 %v3548
        %3582 = vmatprep.subr.mxu0 0.0
        %3583 = vmatpush1.msra.mxu0 %v3549
        %3584 = vmatprep.subr.mxu0 0.0
        %3585 = vmatpush1.msra.mxu0 %v3550
        %3586 = vmatprep.subr.mxu0 0.0
        %3587 = vmatpush1.msra.mxu0 %v3551
        %3588 = vmatprep.subr.mxu0 0.0
        %3589 = vmatpush1.msra.mxu0 %v3552
        %3590 = vmatprep.subr.mxu0 0.0
        %3591 = vmatpush1.msra.mxu0 %v3553
        %3592 = vmatprep.subr.mxu0 0.0
        %3593 = vmatpush1.msra.mxu0 %v3562
        %3594 = vmatprep.subr.mxu0 0.0
        %3595 = vmatpush1.msra.mxu0 0.0
        %3596 = vmatprep.subr.mxu0 0.0
        %3597 = vmatpush1.msra.mxu0 0.0
        %3598 = vmatprep.subr.mxu0 0.0
        %3599 = vmatpush1.msra.mxu0 0.0
        %3600 = vmatprep.subr.mxu0 0.0
        %3601 = vmatpush1.msra.mxu0 0.0
        %3602 = vmatprep.subr.mxu0 0.0
        %3603 = vmatpush1.msra.mxu0 0.0
        %3604 = vmatprep.subr.mxu0 0.0
        %3605 = vmatpush1.msra.mxu0 0.0
        %3606 = vmatprep.subr.mxu0 0.0
        %3607 = vmatpush1.msra.mxu0 0.0
        %3608 = vmatprep.subr.mxu0 0.0
        %3609 = vmatpush1.msra.mxu0 0.0
        %3610 = vmatprep.subr.mxu0 0.0
        %3611 = vmatpush1.msra.mxu0 0.0
        %3612 = vmatprep.subr.mxu0 0.0
        %3613 = vmatpush1.msra.mxu0 0.0
        %3614 = vmatprep.subr.mxu0 0.0
        %3615 = vmatpush1.msra.mxu0 0.0
        %3616 = vmatprep.subr.mxu0 0.0
        %3617 = vmatpush1.msra.mxu0 0.0
        %3618 = vmatprep.subr.mxu0 0.0
        %3619 = vmatpush1.msra.mxu0 0.0
        %3620 = vmatprep.subr.mxu0 0.0
        %3621 = vmatpush1.msra.mxu0 0.0
        %3622 = vmatprep.subr.mxu0 0.0
        %3623 = vmatpush1.msra.mxu0 0.0
        %3624 = vmatprep.subr.mxu0 0.0
        %3625 = vmatpush1.msra.mxu0 0.0
        %3626 = vmatprep.subr.mxu0 0.0
        %3627 = vmatpush1.msra.mxu0 0.0
        %3628 = vmatprep.mubr.f32.mxu0 0.0
        %3629 = vmatmul.mubr.f32.gmra.mrb[0].mxu0 %v3556
        %v3630 = vpop.f32.mrb[0].mxu0
        %v3631 = vadd.f32 0.0, %v3630
        %v3632 = vpop.f32.mrb[0].mxu0
        %3633 = vmatprep.mubr.f32.mxu0 0.0
        %3634 = vmatmul.mubr.f32.gmra.mrb[0].mxu0 %v3559
        %v3635 = vpop.f32.mrb[0].mxu0
        %v3636 = vadd.f32 0.0, %v3635
        %v3637 = vpop.f32.mrb[0].mxu0
        %3638 = vdwg.mxu0
        %vm3639 = vcmask 203776
        %3640 = vst.msk [vmem:[#allocation5] sm:$0xff] %vm3639, %v3631
        %vm3641 = vcmask 197632
        %3642 = vst.msk [vmem:[#allocation5 + $0x8] sm:$0x3] %vm3641, %v3636
        %v3643 = vld [vmem:[%s8] sm:$0x1]
        %v3644 = vld [vmem:[#allocation5] sm:$0x1]
        %v3645 = vld [vmem:[%s7] sm:$0xff]
        %v3646 = vld [vmem:[%s7 + $0x8] sm:$0xff]
        %v3647 = vld [vmem:[%s7 + $0x10] sm:$0xff]
        %v3648 = vld [vmem:[%s7 + $0x18] sm:$0x1]
        %v3650 = vsel %vm3639, %v3644, 0
        %v3653 = vsel %vm1669, %v3648, 0
        %3655 = vmatprep.subr.mxu0 0.0
        %3656 = vmatpush1.msra.mxu0 %v3645
        %3657 = vmatprep.subr.mxu0 0.0
        %3658 = vmatpush1.msra.mxu0 %v3646
        %3659 = vmatprep.subr.mxu0 0.0
        %3660 = vmatpush1.msra.mxu0 %v3647
        %3661 = vmatprep.subr.mxu0 0.0
        %3662 = vmatpush1.msra.mxu0 %v3653
        %3663 = vmatprep.subr.mxu0 0.0
        %3664 = vmatpush1.msra.mxu0 0.0
        %3665 = vmatprep.subr.mxu0 0.0
        %3666 = vmatpush1.msra.mxu0 0.0
        %3667 = vmatprep.subr.mxu0 0.0
        %3668 = vmatpush1.msra.mxu0 0.0
        %3669 = vmatprep.subr.mxu0 0.0
        %3670 = vmatpush1.msra.mxu0 0.0
        %3671 = vmatprep.subr.mxu0 0.0
        %3672 = vmatpush1.msra.mxu0 0.0
        %3673 = vmatprep.subr.mxu0 0.0
        %3674 = vmatpush1.msra.mxu0 0.0
        %3675 = vmatprep.subr.mxu0 0.0
        %3676 = vmatpush1.msra.mxu0 0.0
        %3677 = vmatprep.subr.mxu0 0.0
        %3678 = vmatpush1.msra.mxu0 0.0
        %3679 = vmatprep.subr.mxu0 0.0
        %3680 = vmatpush1.msra.mxu0 0.0
        %3681 = vmatprep.subr.mxu0 0.0
        %3682 = vmatpush1.msra.mxu0 0.0
        %3683 = vmatprep.subr.mxu0 0.0
        %3684 = vmatpush1.msra.mxu0 0.0
        %3685 = vmatprep.subr.mxu0 0.0
        %3686 = vmatpush1.msra.mxu0 0.0
        %3687 = vmatprep.subr.mxu0 0.0
        %3688 = vmatpush1.msra.mxu0 0.0
        %3689 = vmatprep.subr.mxu0 0.0
        %3690 = vmatpush1.msra.mxu0 0.0
        %3691 = vmatprep.subr.mxu0 0.0
        %3692 = vmatpush1.msra.mxu0 0.0
        %3693 = vmatprep.subr.mxu0 0.0
        %3694 = vmatpush1.msra.mxu0 0.0
        %3695 = vmatprep.subr.mxu0 0.0
        %3696 = vmatpush1.msra.mxu0 0.0
        %3697 = vmatprep.subr.mxu0 0.0
        %3698 = vmatpush1.msra.mxu0 0.0
        %3699 = vmatprep.subr.mxu0 0.0
        %3700 = vmatpush1.msra.mxu0 0.0
        %3701 = vmatprep.subr.mxu0 0.0
        %3702 = vmatpush1.msra.mxu0 0.0
        %3703 = vmatprep.subr.mxu0 0.0
        %3704 = vmatpush1.msra.mxu0 0.0
        %3705 = vmatprep.subr.mxu0 0.0
        %3706 = vmatpush1.msra.mxu0 0.0
        %3707 = vmatprep.subr.mxu0 0.0
        %3708 = vmatpush1.msra.mxu0 0.0
        %3709 = vmatprep.subr.mxu0 0.0
        %3710 = vmatpush1.msra.mxu0 0.0
        %3711 = vmatprep.subr.mxu0 0.0
        %3712 = vmatpush1.msra.mxu0 0.0
        %3713 = vmatprep.subr.mxu0 0.0
        %3714 = vmatpush1.msra.mxu0 0.0
        %3715 = vmatprep.subr.mxu0 0.0
        %3716 = vmatpush1.msra.mxu0 0.0
        %3717 = vmatprep.subr.mxu0 0.0
        %3718 = vmatpush1.msra.mxu0 0.0
        %3719 = vmatprep.mubr.f32.mxu0 0.0
        %3720 = vmatmul.mubr.f32.gmra.mrb[0].mxu0 %v3650
        %v3721 = vpop.f32.mrb[0].mxu0
        %v3722 = vadd.f32 0.0, %v3721
        %v3723 = vpop.f32.mrb[0].mxu0
        %3724 = vdwg.mxu0
        %v3725 = vadd.f32 %v3643, %v3722
        %v3726 = vld [vmem:[#allocation5 + $0x1] sm:$0x1]
        %s3727 = scalar_lea.vmem %s7, 32
        %v3728 = vld [vmem:[%s3727] sm:$0xff]
        %v3729 = vld [vmem:[%s3727 + $0x8] sm:$0xff]
        %v3730 = vld [vmem:[%s3727 + $0x10] sm:$0xff]
        %v3731 = vld [vmem:[%s3727 + $0x18] sm:$0x1]
        %v3733 = vsel %vm3639, %v3726, 0
        %v3736 = vsel %vm1669, %v3731, 0
        %3738 = vmatprep.subr.mxu0 0.0
        %3739 = vmatpush1.msra.mxu0 %v3728
        %3740 = vmatprep.subr.mxu0 0.0
        %3741 = vmatpush1.msra.mxu0 %v3729
        %3742 = vmatprep.subr.mxu0 0.0
        %3743 = vmatpush1.msra.mxu0 %v3730
        %3744 = vmatprep.subr.mxu0 0.0
        %3745 = vmatpush1.msra.mxu0 %v3736
        %3746 = vmatprep.subr.mxu0 0.0
        %3747 = vmatpush1.msra.mxu0 0.0
        %3748 = vmatprep.subr.mxu0 0.0
        %3749 = vmatpush1.msra.mxu0 0.0
        %3750 = vmatprep.subr.mxu0 0.0
        %3751 = vmatpush1.msra.mxu0 0.0
        %3752 = vmatprep.subr.mxu0 0.0
        %3753 = vmatpush1.msra.mxu0 0.0
        %3754 = vmatprep.subr.mxu0 0.0
        %3755 = vmatpush1.msra.mxu0 0.0
        %3756 = vmatprep.subr.mxu0 0.0
        %3757 = vmatpush1.msra.mxu0 0.0
        %3758 = vmatprep.subr.mxu0 0.0
        %3759 = vmatpush1.msra.mxu0 0.0
        %3760 = vmatprep.subr.mxu0 0.0
        %3761 = vmatpush1.msra.mxu0 0.0
        %3762 = vmatprep.subr.mxu0 0.0
        %3763 = vmatpush1.msra.mxu0 0.0
        %3764 = vmatprep.subr.mxu0 0.0
        %3765 = vmatpush1.msra.mxu0 0.0
        %3766 = vmatprep.subr.mxu0 0.0
        %3767 = vmatpush1.msra.mxu0 0.0
        %3768 = vmatprep.subr.mxu0 0.0
        %3769 = vmatpush1.msra.mxu0 0.0
        %3770 = vmatprep.subr.mxu0 0.0
        %3771 = vmatpush1.msra.mxu0 0.0
        %3772 = vmatprep.subr.mxu0 0.0
        %3773 = vmatpush1.msra.mxu0 0.0
        %3774 = vmatprep.subr.mxu0 0.0
        %3775 = vmatpush1.msra.mxu0 0.0
        %3776 = vmatprep.subr.mxu0 0.0
        %3777 = vmatpush1.msra.mxu0 0.0
        %3778 = vmatprep.subr.mxu0 0.0
        %3779 = vmatpush1.msra.mxu0 0.0
        %3780 = vmatprep.subr.mxu0 0.0
        %3781 = vmatpush1.msra.mxu0 0.0
        %3782 = vmatprep.subr.mxu0 0.0
        %3783 = vmatpush1.msra.mxu0 0.0
        %3784 = vmatprep.subr.mxu0 0.0
        %3785 = vmatpush1.msra.mxu0 0.0
        %3786 = vmatprep.subr.mxu0 0.0
        %3787 = vmatpush1.msra.mxu0 0.0
        %3788 = vmatprep.subr.mxu0 0.0
        %3789 = vmatpush1.msra.mxu0 0.0
        %3790 = vmatprep.subr.mxu0 0.0
        %3791 = vmatpush1.msra.mxu0 0.0
        %3792 = vmatprep.subr.mxu0 0.0
        %3793 = vmatpush1.msra.mxu0 0.0
        %3794 = vmatprep.subr.mxu0 0.0
        %3795 = vmatpush1.msra.mxu0 0.0
        %3796 = vmatprep.subr.mxu0 0.0
        %3797 = vmatpush1.msra.mxu0 0.0
        %3798 = vmatprep.subr.mxu0 0.0
        %3799 = vmatpush1.msra.mxu0 0.0
        %3800 = vmatprep.subr.mxu0 0.0
        %3801 = vmatpush1.msra.mxu0 0.0
        %3802 = vmatprep.mubr.f32.mxu0 0.0
        %3803 = vmatmul.mubr.f32.gmra.mrb[0].mxu0 %v3733
        %v3804 = vpop.f32.mrb[0].mxu0
        %v3805 = vadd.f32 0.0, %v3804
        %v3806 = vpop.f32.mrb[0].mxu0
        %3807 = vdwg.mxu0
        %v3808 = vadd.f32 %v3725, %v3805
        %v3809 = vld [vmem:[#allocation5 + $0x2] sm:$0x1]
        %s3810 = scalar_lea.vmem %s7, 64
        %v3811 = vld [vmem:[%s3810] sm:$0xff]
        %v3812 = vld [vmem:[%s3810 + $0x8] sm:$0xff]
        %v3813 = vld [vmem:[%s3810 + $0x10] sm:$0xff]
        %v3814 = vld [vmem:[%s3810 + $0x18] sm:$0x1]
        %v3816 = vsel %vm3639, %v3809, 0
        %v3819 = vsel %vm1669, %v3814, 0
        %3821 = vmatprep.subr.mxu0 0.0
        %3822 = vmatpush1.msra.mxu0 %v3811
        %3823 = vmatprep.subr.mxu0 0.0
        %3824 = vmatpush1.msra.mxu0 %v3812
        %3825 = vmatprep.subr.mxu0 0.0
        %3826 = vmatpush1.msra.mxu0 %v3813
        %3827 = vmatprep.subr.mxu0 0.0
        %3828 = vmatpush1.msra.mxu0 %v3819
        %3829 = vmatprep.subr.mxu0 0.0
        %3830 = vmatpush1.msra.mxu0 0.0
        %3831 = vmatprep.subr.mxu0 0.0
        %3832 = vmatpush1.msra.mxu0 0.0
        %3833 = vmatprep.subr.mxu0 0.0
        %3834 = vmatpush1.msra.mxu0 0.0
        %3835 = vmatprep.subr.mxu0 0.0
        %3836 = vmatpush1.msra.mxu0 0.0
        %3837 = vmatprep.subr.mxu0 0.0
        %3838 = vmatpush1.msra.mxu0 0.0
        %3839 = vmatprep.subr.mxu0 0.0
        %3840 = vmatpush1.msra.mxu0 0.0
        %3841 = vmatprep.subr.mxu0 0.0
        %3842 = vmatpush1.msra.mxu0 0.0
        %3843 = vmatprep.subr.mxu0 0.0
        %3844 = vmatpush1.msra.mxu0 0.0
        %3845 = vmatprep.subr.mxu0 0.0
        %3846 = vmatpush1.msra.mxu0 0.0
        %3847 = vmatprep.subr.mxu0 0.0
        %3848 = vmatpush1.msra.mxu0 0.0
        %3849 = vmatprep.subr.mxu0 0.0
        %3850 = vmatpush1.msra.mxu0 0.0
        %3851 = vmatprep.subr.mxu0 0.0
        %3852 = vmatpush1.msra.mxu0 0.0
        %3853 = vmatprep.subr.mxu0 0.0
        %3854 = vmatpush1.msra.mxu0 0.0
        %3855 = vmatprep.subr.mxu0 0.0
        %3856 = vmatpush1.msra.mxu0 0.0
        %3857 = vmatprep.subr.mxu0 0.0
        %3858 = vmatpush1.msra.mxu0 0.0
        %3859 = vmatprep.subr.mxu0 0.0
        %3860 = vmatpush1.msra.mxu0 0.0
        %3861 = vmatprep.subr.mxu0 0.0
        %3862 = vmatpush1.msra.mxu0 0.0
        %3863 = vmatprep.subr.mxu0 0.0
        %3864 = vmatpush1.msra.mxu0 0.0
        %3865 = vmatprep.subr.mxu0 0.0
        %3866 = vmatpush1.msra.mxu0 0.0
        %3867 = vmatprep.subr.mxu0 0.0
        %3868 = vmatpush1.msra.mxu0 0.0
        %3869 = vmatprep.subr.mxu0 0.0
        %3870 = vmatpush1.msra.mxu0 0.0
        %3871 = vmatprep.subr.mxu0 0.0
        %3872 = vmatpush1.msra.mxu0 0.0
        %3873 = vmatprep.subr.mxu0 0.0
        %3874 = vmatpush1.msra.mxu0 0.0
        %3875 = vmatprep.subr.mxu0 0.0
        %3876 = vmatpush1.msra.mxu0 0.0
        %3877 = vmatprep.subr.mxu0 0.0
        %3878 = vmatpush1.msra.mxu0 0.0
        %3879 = vmatprep.subr.mxu0 0.0
        %3880 = vmatpush1.msra.mxu0 0.0
        %3881 = vmatprep.subr.mxu0 0.0
        %3882 = vmatpush1.msra.mxu0 0.0
        %3883 = vmatprep.subr.mxu0 0.0
        %3884 = vmatpush1.msra.mxu0 0.0
        %3885 = vmatprep.mubr.f32.mxu0 0.0
        %3886 = vmatmul.mubr.f32.gmra.mrb[0].mxu0 %v3816
        %v3887 = vpop.f32.mrb[0].mxu0
        %v3888 = vadd.f32 0.0, %v3887
        %v3889 = vpop.f32.mrb[0].mxu0
        %3890 = vdwg.mxu0
        %v3891 = vadd.f32 %v3808, %v3888
        %v3892 = vld [vmem:[#allocation5 + $0x3] sm:$0x1]
        %s3893 = scalar_lea.vmem %s7, 96
        %v3894 = vld [vmem:[%s3893] sm:$0xff]
        %v3895 = vld [vmem:[%s3893 + $0x8] sm:$0xff]
        %v3896 = vld [vmem:[%s3893 + $0x10] sm:$0xff]
        %v3897 = vld [vmem:[%s3893 + $0x18] sm:$0x1]
        %v3899 = vsel %vm3639, %v3892, 0
        %v3902 = vsel %vm1669, %v3897, 0
        %3904 = vmatprep.subr.mxu0 0.0
        %3905 = vmatpush1.msra.mxu0 %v3894
        %3906 = vmatprep.subr.mxu0 0.0
        %3907 = vmatpush1.msra.mxu0 %v3895
        %3908 = vmatprep.subr.mxu0 0.0
        %3909 = vmatpush1.msra.mxu0 %v3896
        %3910 = vmatprep.subr.mxu0 0.0
        %3911 = vmatpush1.msra.mxu0 %v3902
        %3912 = vmatprep.subr.mxu0 0.0
        %3913 = vmatpush1.msra.mxu0 0.0
        %3914 = vmatprep.subr.mxu0 0.0
        %3915 = vmatpush1.msra.mxu0 0.0
        %3916 = vmatprep.subr.mxu0 0.0
        %3917 = vmatpush1.msra.mxu0 0.0
        %3918 = vmatprep.subr.mxu0 0.0
        %3919 = vmatpush1.msra.mxu0 0.0
        %3920 = vmatprep.subr.mxu0 0.0
        %3921 = vmatpush1.msra.mxu0 0.0
        %3922 = vmatprep.subr.mxu0 0.0
        %3923 = vmatpush1.msra.mxu0 0.0
        %3924 = vmatprep.subr.mxu0 0.0
        %3925 = vmatpush1.msra.mxu0 0.0
        %3926 = vmatprep.subr.mxu0 0.0
        %3927 = vmatpush1.msra.mxu0 0.0
        %3928 = vmatprep.subr.mxu0 0.0
        %3929 = vmatpush1.msra.mxu0 0.0
        %3930 = vmatprep.subr.mxu0 0.0
        %3931 = vmatpush1.msra.mxu0 0.0
        %3932 = vmatprep.subr.mxu0 0.0
        %3933 = vmatpush1.msra.mxu0 0.0
        %3934 = vmatprep.subr.mxu0 0.0
        %3935 = vmatpush1.msra.mxu0 0.0
        %3936 = vmatprep.subr.mxu0 0.0
        %3937 = vmatpush1.msra.mxu0 0.0
        %3938 = vmatprep.subr.mxu0 0.0
        %3939 = vmatpush1.msra.mxu0 0.0
        %3940 = vmatprep.subr.mxu0 0.0
        %3941 = vmatpush1.msra.mxu0 0.0
        %3942 = vmatprep.subr.mxu0 0.0
        %3943 = vmatpush1.msra.mxu0 0.0
        %3944 = vmatprep.subr.mxu0 0.0
        %3945 = vmatpush1.msra.mxu0 0.0
        %3946 = vmatprep.subr.mxu0 0.0
        %3947 = vmatpush1.msra.mxu0 0.0
        %3948 = vmatprep.subr.mxu0 0.0
        %3949 = vmatpush1.msra.mxu0 0.0
        %3950 = vmatprep.subr.mxu0 0.0
        %3951 = vmatpush1.msra.mxu0 0.0
        %3952 = vmatprep.subr.mxu0 0.0
        %3953 = vmatpush1.msra.mxu0 0.0
        %3954 = vmatprep.subr.mxu0 0.0
        %3955 = vmatpush1.msra.mxu0 0.0
        %3956 = vmatprep.subr.mxu0 0.0
        %3957 = vmatpush1.msra.mxu0 0.0
        %3958 = vmatprep.subr.mxu0 0.0
        %3959 = vmatpush1.msra.mxu0 0.0
        %3960 = vmatprep.subr.mxu0 0.0
        %3961 = vmatpush1.msra.mxu0 0.0
        %3962 = vmatprep.subr.mxu0 0.0
        %3963 = vmatpush1.msra.mxu0 0.0
        %3964 = vmatprep.subr.mxu0 0.0
        %3965 = vmatpush1.msra.mxu0 0.0
        %3966 = vmatprep.subr.mxu0 0.0
        %3967 = vmatpush1.msra.mxu0 0.0
        %3968 = vmatprep.mubr.f32.mxu0 0.0
        %3969 = vmatmul.mubr.f32.gmra.mrb[0].mxu0 %v3899
        %v3970 = vpop.f32.mrb[0].mxu0
        %v3971 = vadd.f32 0.0, %v3970
        %v3972 = vpop.f32.mrb[0].mxu0
        %3973 = vdwg.mxu0
        %v3974 = vadd.f32 %v3891, %v3971
        %v3975 = vld [vmem:[#allocation5 + $0x4] sm:$0x1]
        %s3976 = scalar_lea.vmem %s7, 128
        %v3977 = vld [vmem:[%s3976] sm:$0xff]
        %v3978 = vld [vmem:[%s3976 + $0x8] sm:$0xff]
        %v3979 = vld [vmem:[%s3976 + $0x10] sm:$0xff]
        %v3980 = vld [vmem:[%s3976 + $0x18] sm:$0x1]
        %v3982 = vsel %vm3639, %v3975, 0
        %v3985 = vsel %vm1669, %v3980, 0
        %3987 = vmatprep.subr.mxu0 0.0
        %3988 = vmatpush1.msra.mxu0 %v3977
        %3989 = vmatprep.subr.mxu0 0.0
        %3990 = vmatpush1.msra.mxu0 %v3978
        %3991 = vmatprep.subr.mxu0 0.0
        %3992 = vmatpush1.msra.mxu0 %v3979
        %3993 = vmatprep.subr.mxu0 0.0
        %3994 = vmatpush1.msra.mxu0 %v3985
        %3995 = vmatprep.subr.mxu0 0.0
        %3996 = vmatpush1.msra.mxu0 0.0
        %3997 = vmatprep.subr.mxu0 0.0
        %3998 = vmatpush1.msra.mxu0 0.0
        %3999 = vmatprep.subr.mxu0 0.0
        %4000 = vmatpush1.msra.mxu0 0.0
        %4001 = vmatprep.subr.mxu0 0.0
        %4002 = vmatpush1.msra.mxu0 0.0
        %4003 = vmatprep.subr.mxu0 0.0
        %4004 = vmatpush1.msra.mxu0 0.0
        %4005 = vmatprep.subr.mxu0 0.0
        %4006 = vmatpush1.msra.mxu0 0.0
        %4007 = vmatprep.subr.mxu0 0.0
        %4008 = vmatpush1.msra.mxu0 0.0
        %4009 = vmatprep.subr.mxu0 0.0
        %4010 = vmatpush1.msra.mxu0 0.0
        %4011 = vmatprep.subr.mxu0 0.0
        %4012 = vmatpush1.msra.mxu0 0.0
        %4013 = vmatprep.subr.mxu0 0.0
        %4014 = vmatpush1.msra.mxu0 0.0
        %4015 = vmatprep.subr.mxu0 0.0
        %4016 = vmatpush1.msra.mxu0 0.0
        %4017 = vmatprep.subr.mxu0 0.0
        %4018 = vmatpush1.msra.mxu0 0.0
        %4019 = vmatprep.subr.mxu0 0.0
        %4020 = vmatpush1.msra.mxu0 0.0
        %4021 = vmatprep.subr.mxu0 0.0
        %4022 = vmatpush1.msra.mxu0 0.0
        %4023 = vmatprep.subr.mxu0 0.0
        %4024 = vmatpush1.msra.mxu0 0.0
        %4025 = vmatprep.subr.mxu0 0.0
        %4026 = vmatpush1.msra.mxu0 0.0
        %4027 = vmatprep.subr.mxu0 0.0
        %4028 = vmatpush1.msra.mxu0 0.0
        %4029 = vmatprep.subr.mxu0 0.0
        %4030 = vmatpush1.msra.mxu0 0.0
        %4031 = vmatprep.subr.mxu0 0.0
        %4032 = vmatpush1.msra.mxu0 0.0
        %4033 = vmatprep.subr.mxu0 0.0
        %4034 = vmatpush1.msra.mxu0 0.0
        %4035 = vmatprep.subr.mxu0 0.0
        %4036 = vmatpush1.msra.mxu0 0.0
        %4037 = vmatprep.subr.mxu0 0.0
        %4038 = vmatpush1.msra.mxu0 0.0
        %4039 = vmatprep.subr.mxu0 0.0
        %4040 = vmatpush1.msra.mxu0 0.0
        %4041 = vmatprep.subr.mxu0 0.0
        %4042 = vmatpush1.msra.mxu0 0.0
        %4043 = vmatprep.subr.mxu0 0.0
        %4044 = vmatpush1.msra.mxu0 0.0
        %4045 = vmatprep.subr.mxu0 0.0
        %4046 = vmatpush1.msra.mxu0 0.0
        %4047 = vmatprep.subr.mxu0 0.0
        %4048 = vmatpush1.msra.mxu0 0.0
        %4049 = vmatprep.subr.mxu0 0.0
        %4050 = vmatpush1.msra.mxu0 0.0
        %4051 = vmatprep.mubr.f32.mxu0 0.0
        %4052 = vmatmul.mubr.f32.gmra.mrb[0].mxu0 %v3982
        %v4053 = vpop.f32.mrb[0].mxu0
        %v4054 = vadd.f32 0.0, %v4053
        %v4055 = vpop.f32.mrb[0].mxu0
        %4056 = vdwg.mxu0
        %v4057 = vadd.f32 %v3974, %v4054
        %v4058 = vld [vmem:[#allocation5 + $0x5] sm:$0x1]
        %s4059 = scalar_lea.vmem %s7, 160
        %v4060 = vld [vmem:[%s4059] sm:$0xff]
        %v4061 = vld [vmem:[%s4059 + $0x8] sm:$0xff]
        %v4062 = vld [vmem:[%s4059 + $0x10] sm:$0xff]
        %v4063 = vld [vmem:[%s4059 + $0x18] sm:$0x1]
        %v4065 = vsel %vm3639, %v4058, 0
        %v4068 = vsel %vm1669, %v4063, 0
        %4070 = vmatprep.subr.mxu0 0.0
        %4071 = vmatpush1.msra.mxu0 %v4060
        %4072 = vmatprep.subr.mxu0 0.0
        %4073 = vmatpush1.msra.mxu0 %v4061
        %4074 = vmatprep.subr.mxu0 0.0
        %4075 = vmatpush1.msra.mxu0 %v4062
        %4076 = vmatprep.subr.mxu0 0.0
        %4077 = vmatpush1.msra.mxu0 %v4068
        %4078 = vmatprep.subr.mxu0 0.0
        %4079 = vmatpush1.msra.mxu0 0.0
        %4080 = vmatprep.subr.mxu0 0.0
        %4081 = vmatpush1.msra.mxu0 0.0
        %4082 = vmatprep.subr.mxu0 0.0
        %4083 = vmatpush1.msra.mxu0 0.0
        %4084 = vmatprep.subr.mxu0 0.0
        %4085 = vmatpush1.msra.mxu0 0.0
        %4086 = vmatprep.subr.mxu0 0.0
        %4087 = vmatpush1.msra.mxu0 0.0
        %4088 = vmatprep.subr.mxu0 0.0
        %4089 = vmatpush1.msra.mxu0 0.0
        %4090 = vmatprep.subr.mxu0 0.0
        %4091 = vmatpush1.msra.mxu0 0.0
        %4092 = vmatprep.subr.mxu0 0.0
        %4093 = vmatpush1.msra.mxu0 0.0
        %4094 = vmatprep.subr.mxu0 0.0
        %4095 = vmatpush1.msra.mxu0 0.0
        %4096 = vmatprep.subr.mxu0 0.0
        %4097 = vmatpush1.msra.mxu0 0.0
        %4098 = vmatprep.subr.mxu0 0.0
        %4099 = vmatpush1.msra.mxu0 0.0
        %4100 = vmatprep.subr.mxu0 0.0
        %4101 = vmatpush1.msra.mxu0 0.0
        %4102 = vmatprep.subr.mxu0 0.0
        %4103 = vmatpush1.msra.mxu0 0.0
        %4104 = vmatprep.subr.mxu0 0.0
        %4105 = vmatpush1.msra.mxu0 0.0
        %4106 = vmatprep.subr.mxu0 0.0
        %4107 = vmatpush1.msra.mxu0 0.0
        %4108 = vmatprep.subr.mxu0 0.0
        %4109 = vmatpush1.msra.mxu0 0.0
        %4110 = vmatprep.subr.mxu0 0.0
        %4111 = vmatpush1.msra.mxu0 0.0
        %4112 = vmatprep.subr.mxu0 0.0
        %4113 = vmatpush1.msra.mxu0 0.0
        %4114 = vmatprep.subr.mxu0 0.0
        %4115 = vmatpush1.msra.mxu0 0.0
        %4116 = vmatprep.subr.mxu0 0.0
        %4117 = vmatpush1.msra.mxu0 0.0
        %4118 = vmatprep.subr.mxu0 0.0
        %4119 = vmatpush1.msra.mxu0 0.0
        %4120 = vmatprep.subr.mxu0 0.0
        %4121 = vmatpush1.msra.mxu0 0.0
        %4122 = vmatprep.subr.mxu0 0.0
        %4123 = vmatpush1.msra.mxu0 0.0
        %4124 = vmatprep.subr.mxu0 0.0
        %4125 = vmatpush1.msra.mxu0 0.0
        %4126 = vmatprep.subr.mxu0 0.0
        %4127 = vmatpush1.msra.mxu0 0.0
        %4128 = vmatprep.subr.mxu0 0.0
        %4129 = vmatpush1.msra.mxu0 0.0
        %4130 = vmatprep.subr.mxu0 0.0
        %4131 = vmatpush1.msra.mxu0 0.0
        %4132 = vmatprep.subr.mxu0 0.0
        %4133 = vmatpush1.msra.mxu0 0.0
        %4134 = vmatprep.mubr.f32.mxu0 0.0
        %4135 = vmatmul.mubr.f32.gmra.mrb[0].mxu0 %v4065
        %v4136 = vpop.f32.mrb[0].mxu0
        %v4137 = vadd.f32 0.0, %v4136
        %v4138 = vpop.f32.mrb[0].mxu0
        %4139 = vdwg.mxu0
        %v4140 = vadd.f32 %v4057, %v4137
        %v4141 = vld [vmem:[#allocation5 + $0x6] sm:$0x1]
        %s4142 = scalar_lea.vmem %s7, 192
        %v4143 = vld [vmem:[%s4142] sm:$0xff]
        %v4144 = vld [vmem:[%s4142 + $0x8] sm:$0xff]
        %v4145 = vld [vmem:[%s4142 + $0x10] sm:$0xff]
        %v4146 = vld [vmem:[%s4142 + $0x18] sm:$0x1]
        %v4148 = vsel %vm3639, %v4141, 0
        %v4151 = vsel %vm1669, %v4146, 0
        %4153 = vmatprep.subr.mxu0 0.0
        %4154 = vmatpush1.msra.mxu0 %v4143
        %4155 = vmatprep.subr.mxu0 0.0
        %4156 = vmatpush1.msra.mxu0 %v4144
        %4157 = vmatprep.subr.mxu0 0.0
        %4158 = vmatpush1.msra.mxu0 %v4145
        %4159 = vmatprep.subr.mxu0 0.0
        %4160 = vmatpush1.msra.mxu0 %v4151
        %4161 = vmatprep.subr.mxu0 0.0
        %4162 = vmatpush1.msra.mxu0 0.0
        %4163 = vmatprep.subr.mxu0 0.0
        %4164 = vmatpush1.msra.mxu0 0.0
        %4165 = vmatprep.subr.mxu0 0.0
        %4166 = vmatpush1.msra.mxu0 0.0
        %4167 = vmatprep.subr.mxu0 0.0
        %4168 = vmatpush1.msra.mxu0 0.0
        %4169 = vmatprep.subr.mxu0 0.0
        %4170 = vmatpush1.msra.mxu0 0.0
        %4171 = vmatprep.subr.mxu0 0.0
        %4172 = vmatpush1.msra.mxu0 0.0
        %4173 = vmatprep.subr.mxu0 0.0
        %4174 = vmatpush1.msra.mxu0 0.0
        %4175 = vmatprep.subr.mxu0 0.0
        %4176 = vmatpush1.msra.mxu0 0.0
        %4177 = vmatprep.subr.mxu0 0.0
        %4178 = vmatpush1.msra.mxu0 0.0
        %4179 = vmatprep.subr.mxu0 0.0
        %4180 = vmatpush1.msra.mxu0 0.0
        %4181 = vmatprep.subr.mxu0 0.0
        %4182 = vmatpush1.msra.mxu0 0.0
        %4183 = vmatprep.subr.mxu0 0.0
        %4184 = vmatpush1.msra.mxu0 0.0
        %4185 = vmatprep.subr.mxu0 0.0
        %4186 = vmatpush1.msra.mxu0 0.0
        %4187 = vmatprep.subr.mxu0 0.0
        %4188 = vmatpush1.msra.mxu0 0.0
        %4189 = vmatprep.subr.mxu0 0.0
        %4190 = vmatpush1.msra.mxu0 0.0
        %4191 = vmatprep.subr.mxu0 0.0
        %4192 = vmatpush1.msra.mxu0 0.0
        %4193 = vmatprep.subr.mxu0 0.0
        %4194 = vmatpush1.msra.mxu0 0.0
        %4195 = vmatprep.subr.mxu0 0.0
        %4196 = vmatpush1.msra.mxu0 0.0
        %4197 = vmatprep.subr.mxu0 0.0
        %4198 = vmatpush1.msra.mxu0 0.0
        %4199 = vmatprep.subr.mxu0 0.0
        %4200 = vmatpush1.msra.mxu0 0.0
        %4201 = vmatprep.subr.mxu0 0.0
        %4202 = vmatpush1.msra.mxu0 0.0
        %4203 = vmatprep.subr.mxu0 0.0
        %4204 = vmatpush1.msra.mxu0 0.0
        %4205 = vmatprep.subr.mxu0 0.0
        %4206 = vmatpush1.msra.mxu0 0.0
        %4207 = vmatprep.subr.mxu0 0.0
        %4208 = vmatpush1.msra.mxu0 0.0
        %4209 = vmatprep.subr.mxu0 0.0
        %4210 = vmatpush1.msra.mxu0 0.0
        %4211 = vmatprep.subr.mxu0 0.0
        %4212 = vmatpush1.msra.mxu0 0.0
        %4213 = vmatprep.subr.mxu0 0.0
        %4214 = vmatpush1.msra.mxu0 0.0
        %4215 = vmatprep.subr.mxu0 0.0
        %4216 = vmatpush1.msra.mxu0 0.0
        %4217 = vmatprep.mubr.f32.mxu0 0.0
        %4218 = vmatmul.mubr.f32.gmra.mrb[0].mxu0 %v4148
        %v4219 = vpop.f32.mrb[0].mxu0
        %v4220 = vadd.f32 0.0, %v4219
        %v4221 = vpop.f32.mrb[0].mxu0
        %4222 = vdwg.mxu0
        %v4223 = vadd.f32 %v4140, %v4220
        %v4224 = vld [vmem:[#allocation5 + $0x7] sm:$0x1]
        %s4225 = scalar_lea.vmem %s7, 224
        %v4226 = vld [vmem:[%s4225] sm:$0xff]
        %v4227 = vld [vmem:[%s4225 + $0x8] sm:$0xff]
        %v4228 = vld [vmem:[%s4225 + $0x10] sm:$0xff]
        %v4229 = vld [vmem:[%s4225 + $0x18] sm:$0x1]
        %v4231 = vsel %vm3639, %v4224, 0
        %v4234 = vsel %vm1669, %v4229, 0
        %4236 = vmatprep.subr.mxu0 0.0
        %4237 = vmatpush1.msra.mxu0 %v4226
        %4238 = vmatprep.subr.mxu0 0.0
        %4239 = vmatpush1.msra.mxu0 %v4227
        %4240 = vmatprep.subr.mxu0 0.0
        %4241 = vmatpush1.msra.mxu0 %v4228
        %4242 = vmatprep.subr.mxu0 0.0
        %4243 = vmatpush1.msra.mxu0 %v4234
        %4244 = vmatprep.subr.mxu0 0.0
        %4245 = vmatpush1.msra.mxu0 0.0
        %4246 = vmatprep.subr.mxu0 0.0
        %4247 = vmatpush1.msra.mxu0 0.0
        %4248 = vmatprep.subr.mxu0 0.0
        %4249 = vmatpush1.msra.mxu0 0.0
        %4250 = vmatprep.subr.mxu0 0.0
        %4251 = vmatpush1.msra.mxu0 0.0
        %4252 = vmatprep.subr.mxu0 0.0
        %4253 = vmatpush1.msra.mxu0 0.0
        %4254 = vmatprep.subr.mxu0 0.0
        %4255 = vmatpush1.msra.mxu0 0.0
        %4256 = vmatprep.subr.mxu0 0.0
        %4257 = vmatpush1.msra.mxu0 0.0
        %4258 = vmatprep.subr.mxu0 0.0
        %4259 = vmatpush1.msra.mxu0 0.0
        %4260 = vmatprep.subr.mxu0 0.0
        %4261 = vmatpush1.msra.mxu0 0.0
        %4262 = vmatprep.subr.mxu0 0.0
        %4263 = vmatpush1.msra.mxu0 0.0
        %4264 = vmatprep.subr.mxu0 0.0
        %4265 = vmatpush1.msra.mxu0 0.0
        %4266 = vmatprep.subr.mxu0 0.0
        %4267 = vmatpush1.msra.mxu0 0.0
        %4268 = vmatprep.subr.mxu0 0.0
        %4269 = vmatpush1.msra.mxu0 0.0
        %4270 = vmatprep.subr.mxu0 0.0
        %4271 = vmatpush1.msra.mxu0 0.0
        %4272 = vmatprep.subr.mxu0 0.0
        %4273 = vmatpush1.msra.mxu0 0.0
        %4274 = vmatprep.subr.mxu0 0.0
        %4275 = vmatpush1.msra.mxu0 0.0
        %4276 = vmatprep.subr.mxu0 0.0
        %4277 = vmatpush1.msra.mxu0 0.0
        %4278 = vmatprep.subr.mxu0 0.0
        %4279 = vmatpush1.msra.mxu0 0.0
        %4280 = vmatprep.subr.mxu0 0.0
        %4281 = vmatpush1.msra.mxu0 0.0
        %4282 = vmatprep.subr.mxu0 0.0
        %4283 = vmatpush1.msra.mxu0 0.0
        %4284 = vmatprep.subr.mxu0 0.0
        %4285 = vmatpush1.msra.mxu0 0.0
        %4286 = vmatprep.subr.mxu0 0.0
        %4287 = vmatpush1.msra.mxu0 0.0
        %4288 = vmatprep.subr.mxu0 0.0
        %4289 = vmatpush1.msra.mxu0 0.0
        %4290 = vmatprep.subr.mxu0 0.0
        %4291 = vmatpush1.msra.mxu0 0.0
        %4292 = vmatprep.subr.mxu0 0.0
        %4293 = vmatpush1.msra.mxu0 0.0
        %4294 = vmatprep.subr.mxu0 0.0
        %4295 = vmatpush1.msra.mxu0 0.0
        %4296 = vmatprep.subr.mxu0 0.0
        %4297 = vmatpush1.msra.mxu0 0.0
        %4298 = vmatprep.subr.mxu0 0.0
        %4299 = vmatpush1.msra.mxu0 0.0
        %4300 = vmatprep.mubr.f32.mxu0 0.0
        %4301 = vmatmul.mubr.f32.gmra.mrb[0].mxu0 %v4231
        %v4302 = vpop.f32.mrb[0].mxu0
        %v4303 = vadd.f32 0.0, %v4302
        %v4304 = vpop.f32.mrb[0].mxu0
        %4305 = vdwg.mxu0
        %v4306 = vadd.f32 %v4223, %v4303
        %v4307 = vld [vmem:[#allocation5 + $0x8] sm:$0x1]
        %s4308 = scalar_lea.vmem %s7, 256
        %v4309 = vld [vmem:[%s4308] sm:$0xff]
        %v4310 = vld [vmem:[%s4308 + $0x8] sm:$0xff]
        %v4311 = vld [vmem:[%s4308 + $0x10] sm:$0xff]
        %v4312 = vld [vmem:[%s4308 + $0x18] sm:$0x1]
        %v4314 = vsel %vm3639, %v4307, 0
        %v4317 = vsel %vm1669, %v4312, 0
        %4319 = vmatprep.subr.mxu0 0.0
        %4320 = vmatpush1.msra.mxu0 %v4309
        %4321 = vmatprep.subr.mxu0 0.0
        %4322 = vmatpush1.msra.mxu0 %v4310
        %4323 = vmatprep.subr.mxu0 0.0
        %4324 = vmatpush1.msra.mxu0 %v4311
        %4325 = vmatprep.subr.mxu0 0.0
        %4326 = vmatpush1.msra.mxu0 %v4317
        %4327 = vmatprep.subr.mxu0 0.0
        %4328 = vmatpush1.msra.mxu0 0.0
        %4329 = vmatprep.subr.mxu0 0.0
        %4330 = vmatpush1.msra.mxu0 0.0
        %4331 = vmatprep.subr.mxu0 0.0
        %4332 = vmatpush1.msra.mxu0 0.0
        %4333 = vmatprep.subr.mxu0 0.0
        %4334 = vmatpush1.msra.mxu0 0.0
        %4335 = vmatprep.subr.mxu0 0.0
        %4336 = vmatpush1.msra.mxu0 0.0
        %4337 = vmatprep.subr.mxu0 0.0
        %4338 = vmatpush1.msra.mxu0 0.0
        %4339 = vmatprep.subr.mxu0 0.0
        %4340 = vmatpush1.msra.mxu0 0.0
        %4341 = vmatprep.subr.mxu0 0.0
        %4342 = vmatpush1.msra.mxu0 0.0
        %4343 = vmatprep.subr.mxu0 0.0
        %4344 = vmatpush1.msra.mxu0 0.0
        %4345 = vmatprep.subr.mxu0 0.0
        %4346 = vmatpush1.msra.mxu0 0.0
        %4347 = vmatprep.subr.mxu0 0.0
        %4348 = vmatpush1.msra.mxu0 0.0
        %4349 = vmatprep.subr.mxu0 0.0
        %4350 = vmatpush1.msra.mxu0 0.0
        %4351 = vmatprep.subr.mxu0 0.0
        %4352 = vmatpush1.msra.mxu0 0.0
        %4353 = vmatprep.subr.mxu0 0.0
        %4354 = vmatpush1.msra.mxu0 0.0
        %4355 = vmatprep.subr.mxu0 0.0
        %4356 = vmatpush1.msra.mxu0 0.0
        %4357 = vmatprep.subr.mxu0 0.0
        %4358 = vmatpush1.msra.mxu0 0.0
        %4359 = vmatprep.subr.mxu0 0.0
        %4360 = vmatpush1.msra.mxu0 0.0
        %4361 = vmatprep.subr.mxu0 0.0
        %4362 = vmatpush1.msra.mxu0 0.0
        %4363 = vmatprep.subr.mxu0 0.0
        %4364 = vmatpush1.msra.mxu0 0.0
        %4365 = vmatprep.subr.mxu0 0.0
        %4366 = vmatpush1.msra.mxu0 0.0
        %4367 = vmatprep.subr.mxu0 0.0
        %4368 = vmatpush1.msra.mxu0 0.0
        %4369 = vmatprep.subr.mxu0 0.0
        %4370 = vmatpush1.msra.mxu0 0.0
        %4371 = vmatprep.subr.mxu0 0.0
        %4372 = vmatpush1.msra.mxu0 0.0
        %4373 = vmatprep.subr.mxu0 0.0
        %4374 = vmatpush1.msra.mxu0 0.0
        %4375 = vmatprep.subr.mxu0 0.0
        %4376 = vmatpush1.msra.mxu0 0.0
        %4377 = vmatprep.subr.mxu0 0.0
        %4378 = vmatpush1.msra.mxu0 0.0
        %4379 = vmatprep.subr.mxu0 0.0
        %4380 = vmatpush1.msra.mxu0 0.0
        %4381 = vmatprep.subr.mxu0 0.0
        %4382 = vmatpush1.msra.mxu0 0.0
        %4383 = vmatprep.mubr.f32.mxu0 0.0
        %4384 = vmatmul.mubr.f32.gmra.mrb[0].mxu0 %v4314
        %v4385 = vpop.f32.mrb[0].mxu0
        %v4386 = vadd.f32 0.0, %v4385
        %v4387 = vpop.f32.mrb[0].mxu0
        %4388 = vdwg.mxu0
        %v4389 = vadd.f32 %v4306, %v4386
        %v4390 = vld [vmem:[#allocation5 + $0x9] sm:$0x1]
        %s4391 = scalar_lea.vmem %s7, 288
        %v4392 = vld [vmem:[%s4391] sm:$0xff]
        %v4393 = vld [vmem:[%s4391 + $0x8] sm:$0xff]
        %v4394 = vld [vmem:[%s4391 + $0x10] sm:$0xff]
        %v4395 = vld [vmem:[%s4391 + $0x18] sm:$0x1]
        %v4397 = vsel %vm3639, %v4390, 0
        %v4400 = vsel %vm1669, %v4395, 0
        %4402 = vmatprep.subr.mxu0 0.0
        %4403 = vmatpush1.msra.mxu0 %v4392
        %4404 = vmatprep.subr.mxu0 0.0
        %4405 = vmatpush1.msra.mxu0 %v4393
        %4406 = vmatprep.subr.mxu0 0.0
        %4407 = vmatpush1.msra.mxu0 %v4394
        %4408 = vmatprep.subr.mxu0 0.0
        %4409 = vmatpush1.msra.mxu0 %v4400
        %4410 = vmatprep.subr.mxu0 0.0
        %4411 = vmatpush1.msra.mxu0 0.0
        %4412 = vmatprep.subr.mxu0 0.0
        %4413 = vmatpush1.msra.mxu0 0.0
        %4414 = vmatprep.subr.mxu0 0.0
        %4415 = vmatpush1.msra.mxu0 0.0
        %4416 = vmatprep.subr.mxu0 0.0
        %4417 = vmatpush1.msra.mxu0 0.0
        %4418 = vmatprep.subr.mxu0 0.0
        %4419 = vmatpush1.msra.mxu0 0.0
        %4420 = vmatprep.subr.mxu0 0.0
        %4421 = vmatpush1.msra.mxu0 0.0
        %4422 = vmatprep.subr.mxu0 0.0
        %4423 = vmatpush1.msra.mxu0 0.0
        %4424 = vmatprep.subr.mxu0 0.0
        %4425 = vmatpush1.msra.mxu0 0.0
        %4426 = vmatprep.subr.mxu0 0.0
        %4427 = vmatpush1.msra.mxu0 0.0
        %4428 = vmatprep.subr.mxu0 0.0
        %4429 = vmatpush1.msra.mxu0 0.0
        %4430 = vmatprep.subr.mxu0 0.0
        %4431 = vmatpush1.msra.mxu0 0.0
        %4432 = vmatprep.subr.mxu0 0.0
        %4433 = vmatpush1.msra.mxu0 0.0
        %4434 = vmatprep.subr.mxu0 0.0
        %4435 = vmatpush1.msra.mxu0 0.0
        %4436 = vmatprep.subr.mxu0 0.0
        %4437 = vmatpush1.msra.mxu0 0.0
        %4438 = vmatprep.subr.mxu0 0.0
        %4439 = vmatpush1.msra.mxu0 0.0
        %4440 = vmatprep.subr.mxu0 0.0
        %4441 = vmatpush1.msra.mxu0 0.0
        %4442 = vmatprep.subr.mxu0 0.0
        %4443 = vmatpush1.msra.mxu0 0.0
        %4444 = vmatprep.subr.mxu0 0.0
        %4445 = vmatpush1.msra.mxu0 0.0
        %4446 = vmatprep.subr.mxu0 0.0
        %4447 = vmatpush1.msra.mxu0 0.0
        %4448 = vmatprep.subr.mxu0 0.0
        %4449 = vmatpush1.msra.mxu0 0.0
        %4450 = vmatprep.subr.mxu0 0.0
        %4451 = vmatpush1.msra.mxu0 0.0
        %4452 = vmatprep.subr.mxu0 0.0
        %4453 = vmatpush1.msra.mxu0 0.0
        %4454 = vmatprep.subr.mxu0 0.0
        %4455 = vmatpush1.msra.mxu0 0.0
        %4456 = vmatprep.subr.mxu0 0.0
        %4457 = vmatpush1.msra.mxu0 0.0
        %4458 = vmatprep.subr.mxu0 0.0
        %4459 = vmatpush1.msra.mxu0 0.0
        %4460 = vmatprep.subr.mxu0 0.0
        %4461 = vmatpush1.msra.mxu0 0.0
        %4462 = vmatprep.subr.mxu0 0.0
        %4463 = vmatpush1.msra.mxu0 0.0
        %4464 = vmatprep.subr.mxu0 0.0
        %4465 = vmatpush1.msra.mxu0 0.0
        %4466 = vmatprep.mubr.f32.mxu0 0.0
        %4467 = vmatmul.mubr.f32.gmra.mrb[0].mxu0 %v4397
        %v4468 = vpop.f32.mrb[0].mxu0
        %v4469 = vadd.f32 0.0, %v4468
        %v4470 = vpop.f32.mrb[0].mxu0
        %4471 = vdwg.mxu0
        %v4472 = vadd.f32 %v4389, %v4469
        %v4473 = vmax.f32 %v4472, 0.0
        %v4474 = vld [vmem:[%s9] sm:$0xff]
        %v4475 = vld [vmem:[%s9 + $0x8] sm:$0xff]
        %v4476 = vld [vmem:[%s9 + $0x10] sm:$0xff]
        %v4477 = vld [vmem:[%s9 + $0x18] sm:$0xff]
        %v4478 = vld [vmem:[%s9 + $0x20] sm:$0xff]
        %v4479 = vld [vmem:[%s9 + $0x28] sm:$0xff]
        %v4480 = vld [vmem:[%s9 + $0x30] sm:$0x3]
        %v4481 = vld [vmem:[%s10] sm:$0x1]
        %vm4482 = vcmask 408576
        %v4484 = vsel %vm4482, %v4473, 0
        %v4487 = vsel %vm1934, %v4480, 0
        %4489 = vmatprep.subr.mxu0 0.0
        %4490 = vmatpush1.msra.mxu0 %v4474
        %4491 = vmatprep.subr.mxu0 0.0
        %4492 = vmatpush1.msra.mxu0 %v4475
        %4493 = vmatprep.subr.mxu0 0.0
        %4494 = vmatpush1.msra.mxu0 %v4476
        %4495 = vmatprep.subr.mxu0 0.0
        %4496 = vmatpush1.msra.mxu0 %v4477
        %4497 = vmatprep.subr.mxu0 0.0
        %4498 = vmatpush1.msra.mxu0 %v4478
        %4499 = vmatprep.subr.mxu0 0.0
        %4500 = vmatpush1.msra.mxu0 %v4479
        %4501 = vmatprep.subr.mxu0 0.0
        %4502 = vmatpush1.msra.mxu0 %v4487
        %4503 = vmatprep.subr.mxu0 0.0
        %4504 = vmatpush1.msra.mxu0 0.0
        %4505 = vmatprep.subr.mxu0 0.0
        %4506 = vmatpush1.msra.mxu0 0.0
        %4507 = vmatprep.subr.mxu0 0.0
        %4508 = vmatpush1.msra.mxu0 0.0
        %4509 = vmatprep.subr.mxu0 0.0
        %4510 = vmatpush1.msra.mxu0 0.0
        %4511 = vmatprep.subr.mxu0 0.0
        %4512 = vmatpush1.msra.mxu0 0.0
        %4513 = vmatprep.subr.mxu0 0.0
        %4514 = vmatpush1.msra.mxu0 0.0
        %4515 = vmatprep.subr.mxu0 0.0
        %4516 = vmatpush1.msra.mxu0 0.0
        %4517 = vmatprep.subr.mxu0 0.0
        %4518 = vmatpush1.msra.mxu0 0.0
        %4519 = vmatprep.subr.mxu0 0.0
        %4520 = vmatpush1.msra.mxu0 0.0
        %4521 = vmatprep.subr.mxu0 0.0
        %4522 = vmatpush1.msra.mxu0 0.0
        %4523 = vmatprep.subr.mxu0 0.0
        %4524 = vmatpush1.msra.mxu0 0.0
        %4525 = vmatprep.subr.mxu0 0.0
        %4526 = vmatpush1.msra.mxu0 0.0
        %4527 = vmatprep.subr.mxu0 0.0
        %4528 = vmatpush1.msra.mxu0 0.0
        %4529 = vmatprep.subr.mxu0 0.0
        %4530 = vmatpush1.msra.mxu0 0.0
        %4531 = vmatprep.subr.mxu0 0.0
        %4532 = vmatpush1.msra.mxu0 0.0
        %4533 = vmatprep.subr.mxu0 0.0
        %4534 = vmatpush1.msra.mxu0 0.0
        %4535 = vmatprep.subr.mxu0 0.0
        %4536 = vmatpush1.msra.mxu0 0.0
        %4537 = vmatprep.subr.mxu0 0.0
        %4538 = vmatpush1.msra.mxu0 0.0
        %4539 = vmatprep.subr.mxu0 0.0
        %4540 = vmatpush1.msra.mxu0 0.0
        %4541 = vmatprep.subr.mxu0 0.0
        %4542 = vmatpush1.msra.mxu0 0.0
        %4543 = vmatprep.subr.mxu0 0.0
        %4544 = vmatpush1.msra.mxu0 0.0
        %4545 = vmatprep.subr.mxu0 0.0
        %4546 = vmatpush1.msra.mxu0 0.0
        %4547 = vmatprep.subr.mxu0 0.0
        %4548 = vmatpush1.msra.mxu0 0.0
        %4549 = vmatprep.subr.mxu0 0.0
        %4550 = vmatpush1.msra.mxu0 0.0
        %4551 = vmatprep.subr.mxu0 0.0
        %4552 = vmatpush1.msra.mxu0 0.0
        %4553 = vmatprep.mubr.f32.mxu0 0.0
        %4554 = vmatmul.mubr.f32.gmra.mrb[0].mxu0 %v4484
        %v4555 = vpop.f32.mrb[0].mxu0
        %v4556 = vadd.f32 %v4481, %v4555
        %v4557 = vpop.f32.mrb[0].mxu0
        %4558 = vdwg.mxu0
        %vm4559 = vcmask 73728
        %v4560 = vsel %vm4559, %v4556, -inf
        %4561 = vmax.xlane.f32.xlu0 %v4560
        %v4562 = vpop.xlane.xlu0 %4561
        %v4563 = vsub.f32 %v4556, %v4562
        %v4564 = vmul.f32 %v4563, 1.442695
        %v4565 = vpow.pop %v4564
        %v4566 = vsel %vm4559, %v4565, 0.0
        %4567 = vadd.xlane.f32.xlu0 %v4566
        %v4568 = vpop.xlane.xlu0 %4567
        %v4569 = vlog2.pop %v4568
        %v4570 = vmul.f32 %v4569, 0.6931472
        %v4571 = vsub.f32 %v4563, %v4570
        %4572 = vst.msk [vmem:[%s376] sm:$0x1] %vm4559, %v4571
        %s4573 = sand.u32 %s269, 1
        %s4574 = scalar_lea.sflag [#allocation7], %s4573
        %s4575 = sand.u32 %s269, 1
        %s4576 = scalar_lea.vmem [#allocation6], %s4575
        // Predicated region
        $region65: #{hand_classify_forward.1} parent=63 // pred_check
          %p4577 = pneg %p279
        $region66: #{hand_classify_forward.1} parent=63 // pred_check_branch
          %4579 = sbr.rel (%p4577) target = $region68
        $region67: #{hand_classify_forward.1} parent=63 // pred_region
          %s4581 = ssub.s32 16, 16
          %4582 = vsyncadd %s4574, %s4581
          %s4583 = smul.addr %s25, 16
          %s4584 = scalar_lea.hbm %s11, %s4583
          %s4586 = sshll.u32 %s4576, 4
          %s4587 = int_to_ptr.vmem [resolvable:$true] %s4586
          %4589 = dma.vmem_to_hbm [thread:$0]  %s4587, 16, %s4584, %s4574
        $region68: #{hand_classify_forward.1} parent=63 // pred_fallthru
          _
      $region64: #{hand_classify_forward.1} parent=5 // pred_fallthru
        _
      %p4590 = scmp.le.s32.totalorder 2, %s20
      // Predicated region
      $region69: #{hand_classify_forward.1} parent=5 // pred_check
        %p4591 = pneg %p4590
      $region70: #{hand_classify_forward.1} parent=5 // pred_check_branch
        %4593 = sbr.rel (%p4591) target = $region72
      $region71: #{hand_classify_forward.1} parent=5 // pred_region
        %s4594 = ssub.s32 %s20, 2
        // Predicated region
        $region73: #{hand_classify_forward.1} parent=71 // pred_check
          %p4595 = pneg %p285
        $region74: #{hand_classify_forward.1} parent=71 // pred_check_branch
          %4597 = sbr.rel (%p4595) target = $region76
        $region75: #{hand_classify_forward.1} parent=71 // pred_region
          %s4598 = sand.u32 %s270, 1
          %s4599 = scalar_lea.sflag [#allocation7], %s4598
          %s4600 = sand.u32 %s270, 1
          %s4601 = scalar_lea.vmem [#allocation6], %s4600
          %4602 = dma.done %s4599, 16
        $region76: #{hand_classify_forward.1} parent=71 // pred_fallthru
          _
      $region72: #{hand_classify_forward.1} parent=5 // pred_fallthru
        _
    $region6: #{hand_classify_forward.1} parent=1 // loop_footer
      %s24 = sadd.s32 1, %s20
    $region7: #{hand_classify_forward.1} parent=1 // loop_footer_branch
      %19 = sbr.rel target = $region3
    $region8: #{hand_classify_forward.1} parent=1 // loop_exit
      _
    %4603 = vsyncpa [#allocation7], 1
    %s4604 = scalar_lea.sflag [#allocation7], 1
    %4605 = vsyncpa %s4604, 1

</llo_original>
